<compile_context>
chip_gen: v7x
topology: tpu7x:2x2x1
jax: 0.10.0
libtpu: 0.0.40
codegen_flags: <defaults>
</compile_context>

<pallas_src>
import math
from functools import partial

import numpy as np
import jax
import jax.numpy as jnp
from jax.experimental import pallas as pl
from jax.experimental.pallas import tpu as pltpu


# ----------------------------------------------------------------------------
# Stem-2 kernel: relu(a @ w + bias) in one block (bf16 operands, f32 accumulate)
# ----------------------------------------------------------------------------
def _stem_kernel(a_ref, w_ref, b_ref, o_ref):
    acc = jnp.dot(a_ref[...], w_ref[...], preferred_element_type=jnp.float32)
    o_ref[...] = jnp.maximum(acc + b_ref[...], 0.0).astype(o_ref.dtype)


def stem_matmul_relu(a, w, bias, out_dtype=jnp.bfloat16):
    """a:(M,K) bf16, w:(K,N) bf16 (BN folded), bias:(N,) f32. Single block."""
    M, K = a.shape
    N = w.shape[1]
    Mp = -(-M // 8) * 8
    if Mp != M:
        a = jnp.pad(a, ((0, Mp - M), (0, 0)))
    bias2 = bias.reshape(1, N).astype(jnp.float32)
    out = pl.pallas_call(
        _stem_kernel,
        out_shape=jax.ShapeDtypeStruct((Mp, N), out_dtype),
        grid=(1,),
        in_specs=[pl.BlockSpec((Mp, K), lambda i: (0, 0)),
                  pl.BlockSpec((K, N), lambda i: (0, 0)),
                  pl.BlockSpec((1, N), lambda i: (0, 0))],
        out_specs=pl.BlockSpec((Mp, N), lambda i: (0, 0)),
        compiler_params=pltpu.CompilerParams(
            dimension_semantics=("arbitrary",)),
    )(a, w, bias2)
    return out[:M] if Mp != M else out


# ----------------------------------------------------------------------------
# Fused kernel: stem conv3 + all ResBlocks + head(s), transposed (C, B*H*W)
# activation resident in VMEM/vregs for the whole chain (lane-dense, M=128).
# ----------------------------------------------------------------------------
def _make_fused_kernel(n_chain, n_heads, Wr, M):
    taps = [(di, dj) for di in (-1, 0, 1) for dj in (-1, 0, 1)]  # = (ki,kj) row-major

    def kernel(mask_ref, pt_ref, w3s_ref, b3s_ref,
               w3_ref, b1_ref, w1_ref, b2_ref, *o_refs):
        # Fused stem conv3: H = W3s^T @ patches^T + b3   -> (C, M) f32 trunk.
        h = (jnp.dot(w3s_ref[...], pt_ref[...],
                     preferred_element_type=jnp.float32) + b3s_ref[...])

        masks = [mask_ref[t] for t in range(9)]          # each (1, M), 0/1 f32

        def resblock(x, r):
            # x + BN2(Conv1x1(ReLU(BN1(Conv3x3(ReLU(x)))))), BN folded, transposed.
            a0 = jnp.maximum(x, 0.0)                     # ReLU once (f32, (C, M))
            acc = None
            for t, (di, dj) in enumerate(taps):
                d = di * Wr + dj                         # flat spatial offset
                if d == 0:
                    a_t = a0
                else:
                    # XLU lane roll + boundary mask replaces the old selection
                    # matmul (valid positions never cross an image boundary).
                    a_t = pltpu.roll(a0, shift=(-d) % M, axis=1) * masks[t]
                tap = jnp.dot(w3_ref[r, t], a_t.astype(jnp.bfloat16),
                              preferred_element_type=jnp.float32)
                acc = tap if acc is None else acc + tap
            a1 = jnp.maximum(acc + b1_ref[r], 0.0).astype(jnp.bfloat16)
            return x + jnp.dot(w1_ref[r], a1,
                               preferred_element_type=jnp.float32) + b2_ref[r]

        for r in range(n_chain):                         # self.res chain
            h = resblock(h, r)
        for k in range(n_heads):                         # res_m (, res_v)
            o_refs[k][...] = resblock(h, n_chain + k)

    return kernel


def res_chain_fused(patches_t, masks, w3s_t, b3s, w3_t, b1, w1_t, b2,
                    *, n_chain, n_heads, Wr):
    C, Kp = w3s_t.shape
    M = patches_t.shape[1]
    Rt = n_chain + n_heads
    out_shape = tuple(jax.ShapeDtypeStruct((C, M), jnp.float32)
                      for _ in range(n_heads))
    out_specs = tuple(pl.BlockSpec((C, M), lambda i: (0, 0))
                      for _ in range(n_heads))
    return pl.pallas_call(
        _make_fused_kernel(n_chain, n_heads, Wr, M),
        out_shape=out_shape,
        grid=(1,),
        in_specs=[
            pl.BlockSpec((9, 1, M), lambda i: (0, 0, 0)),        # tap masks
            pl.BlockSpec((Kp, M), lambda i: (0, 0)),             # stem3 patches^T
            pl.BlockSpec((C, Kp), lambda i: (0, 0)),             # stem3 weight^T
            pl.BlockSpec((C, 1), lambda i: (0, 0)),              # stem3 bias
            pl.BlockSpec((Rt, 9, C, C), lambda i: (0, 0, 0, 0)), # 3x3 weights^T
            pl.BlockSpec((Rt, C, 1), lambda i: (0, 0, 0)),       # bias1
            pl.BlockSpec((Rt, C, C), lambda i: (0, 0, 0)),       # 1x1 weights^T
            pl.BlockSpec((Rt, C, 1), lambda i: (0, 0, 0)),       # bias2
        ],
        out_specs=out_specs,
        compiler_params=pltpu.CompilerParams(
            dimension_semantics=("arbitrary",)),
    )(masks, patches_t, w3s_t, b3s, w3_t, b1, w1_t, b2)


def build_tap_masks(Hr, Wr, batch):
    """mask[t, 0, c] = 1 iff column c (= b*Hr*Wr + i*Wr + j) has tap t in-bounds."""
    Mi = Hr * Wr
    M = batch * Mi
    m = np.zeros((9, 1, M), np.float32)
    t = 0
    for di in (-1, 0, 1):
        for dj in (-1, 0, 1):
            for c in range(M):
                p = c % Mi
                i, j = p // Wr, p % Wr
                if 0 <= i + di < Hr and 0 <= j + dj < Wr:
                    m[t, 0, c] = 1.0
            t += 1
    return m


# ----------------------------------------------------------------------------
# Host-side helpers (XLA ops around the 2 pallas_calls)
# ----------------------------------------------------------------------------
def im2col(x, kh, kw, stride, pad):
    """Patch extraction for the stride-2 stem convs (NHWC)."""
    # TODO(synk): stride-2 4x4 spatial gathers have no clean in-kernel Pallas
    # equivalent; done with host-side strided slices.
    B, H, W, C = x.shape
    xp = jnp.pad(x, ((0, 0), (pad, pad), (pad, pad), (0, 0)))
    Ho = (H + 2 * pad - kh) // stride + 1
    Wo = (W + 2 * pad - kw) // stride + 1
    cols = []
    for i in range(kh):
        for j in range(kw):
            patch = jax.lax.slice(
                xp, (0, i, j, 0),
                (B, i + (Ho - 1) * stride + 1, j + (Wo - 1) * stride + 1, C),
                (1, stride, stride, 1))
            cols.append(patch)
    patches = jnp.concatenate(cols, axis=-1)             # (B, Ho, Wo, kh*kw*C)
    return patches.reshape(B * Ho * Wo, kh * kw * C), (B, Ho, Wo)


def stem1_embed(x_labels, emb, bias, n_class):
    """Conv1 (4x4/s2/p1) of a one-hot input == 16 embedding gathers + adds."""
    B, H, W = x_labels.shape
    xi = x_labels.astype(jnp.int32)
    xp = jnp.pad(xi, ((0, 0), (1, 1), (1, 1)), constant_values=n_class)  # zero row
    Ho, Wo = H // 2, W // 2
    acc = None
    for ki in range(4):
        for kj in range(4):
            idx = jax.lax.slice(xp, (0, ki, kj),
                                (B, ki + 2 * Ho - 1, kj + 2 * Wo - 1),
                                (1, 2, 2))                # (B, Ho, Wo)
            g = jnp.take(emb[ki, kj], idx, axis=0)        # (B, Ho, Wo, C//2)
            acc = g if acc is None else acc + g
    return jnp.maximum(acc + bias, 0.0).astype(jnp.bfloat16)


# ----------------------------------------------------------------------------
# One-time parameter preparation (BN folding, transposes, bf16 casts) — hoisted
# out of the jitted forward.
# ----------------------------------------------------------------------------
def fold_bn(bias, bn, eps=1e-5):
    gamma, beta, mean, var = bn
    scale = gamma / jnp.sqrt(var + eps)
    shift = (bias - mean) * scale + beta
    return scale, shift


def prepare_params(P, n_class, dim_z, flg_var_q):
    C = dim_z
    # Stem1 -> embedding tables (BN folded; extra zero row = zero-padding class).
    s1, t1 = fold_bn(P["b1"], P["bn1"])
    w1f = P["w1"] * s1                                    # (4,4,n_class,C//2)
    emb1 = jnp.concatenate(
        [w1f, jnp.zeros((4, 4, 1, C // 2), jnp.float32)], axis=2)
    # Stem2 (BN folded).
    s2, t2 = fold_bn(P["b2"], P["bn2"])
    w2 = (P["w2"] * s2).reshape(4 * 4 * (C // 2), C).astype(jnp.bfloat16)
    # Stem3 (no BN), transposed for the fused kernel.
    w3s_t = P["w3"].reshape(4 * 4 * C, C).T.astype(jnp.bfloat16)   # (C, 16C)
    b3s = P["b3"].reshape(C, 1).astype(jnp.float32)
    # ResBlocks (BN folded, transposed).
    blocks = list(P["res"]) + [P["res_m"]] + ([P["res_v"]] if flg_var_q else [])
    w3t, b1s, w1t, b2s = [], [], [], []
    for rb in blocks:
        sc1, sh1 = fold_bn(rb["b1"], rb["bn1"])
        sc2, sh2 = fold_bn(rb["b2"], rb["bn2"])
        w3 = (rb["w1"] * sc1).reshape(9, C, C)            # (tap, Cin, Cout)
        w3t.append(jnp.transpose(w3, (0, 2, 1)))          # (tap, Cout, Cin)
        b1s.append(sh1.reshape(C, 1))
        w1t.append((rb["w2"] * sc2).reshape(C, C).T)      # (Cout, Cin)
        b2s.append(sh2.reshape(C, 1))
    return dict(
        emb1=emb1.astype(jnp.float32), bias1=t1.astype(jnp.float32),
        w2=w2, bias2=t2.astype(jnp.float32),
        w3s_t=w3s_t, b3s=b3s,
        w3_t=jnp.stack(w3t).astype(jnp.bfloat16),
        b1=jnp.stack(b1s).astype(jnp.float32),
        w1_t=jnp.stack(w1t).astype(jnp.bfloat16),
        b2=jnp.stack(b2s).astype(jnp.float32),
    )


# ----------------------------------------------------------------------------
# Encoder forward (Pallas)
# ----------------------------------------------------------------------------
@partial(jax.jit, static_argnums=(2, 3, 4, 5))
def encoder_forward(x_labels, prm, n_class, dim_z, num_rb, flg_var_q=False):
    B, H, W = x_labels.shape
    assert H % 8 == 0 and W % 8 == 0, "im2col path assumes H, W divisible by 8"
    C = dim_z

    # Stem conv1: one-hot conv == embedding lookup (host XLA gathers, no matmul).
    h1 = stem1_embed(x_labels, prm["emb1"], prm["bias1"], n_class)  # (B,H/2,W/2,C/2)

    # Stem conv2: host im2col + single-block fused matmul+bias+ReLU (Pallas).
    a2, (_, H2, W2) = im2col(h1, 4, 4, 2, 1)
    h2 = stem_matmul_relu(a2, prm["w2"], prm["bias2"])              # (B*H2*W2, C)
    h2 = h2.reshape(B, H2, W2, C)

    # Stem conv3 patches, transposed so the fused kernel is lane-dense (M lanes).
    a3, (_, Hr, Wr) = im2col(h2, 4, 4, 2, 1)                        # (B*Hr*Wr, 16C)
    patches_t = a3.T                                                # (16C, M)
    masks = jnp.asarray(build_tap_masks(Hr, Wr, B), jnp.float32)

    n_heads = 2 if flg_var_q else 1
    outs = res_chain_fused(patches_t, masks, prm["w3s_t"], prm["b3s"],
                           prm["w3_t"], prm["b1"], prm["w1_t"], prm["b2"],
                           n_chain=num_rb - 1, n_heads=n_heads, Wr=Wr)

    def to_nchw(o):                                                 # o: (C, B*Hr*Wr)
        return jnp.transpose(o.reshape(C, B, Hr, Wr), (1, 0, 2, 3))

    if flg_var_q:
        return to_nchw(outs[0]), to_nchw(outs[1])
    return to_nchw(outs[0])


# ----------------------------------------------------------------------------
# Plain-JAX f32 reference (semantics of the PyTorch module)
# ----------------------------------------------------------------------------
def _conv_ref(x, w, stride, pad):
    return jax.lax.conv_general_dilated(
        x, w, (stride, stride), [(pad, pad), (pad, pad)],
        dimension_numbers=("NHWC", "HWIO", "NHWC"),
        precision=jax.lax.Precision.HIGHEST)


def _bn_ref(x, bias, gamma, beta, mean, var, eps=1e-5):
    return (x + bias - mean) / jnp.sqrt(var + eps) * gamma + beta


def encoder_forward_ref(x_labels, P, n_class, flg_var_q=False):
    h = jax.nn.one_hot(x_labels.astype(jnp.int32), n_class, dtype=jnp.float32)
    h = jnp.maximum(_bn_ref(_conv_ref(h, P["w1"], 2, 1), P["b1"], *P["bn1"]), 0.)
    h = jnp.maximum(_bn_ref(_conv_ref(h, P["w2"], 2, 1), P["b2"], *P["bn2"]), 0.)
    h = _conv_ref(h, P["w3"], 2, 1) + P["b3"]

    def rb_ref(x, rb):
        t = jnp.maximum(x, 0.)
        t = _conv_ref(t, rb["w1"], 1, 1)
        t = jnp.maximum(_bn_ref(t, rb["b1"], *rb["bn1"]), 0.)
        t = _conv_ref(t, rb["w2"], 1, 0)
        t = _bn_ref(t, rb["b2"], *rb["bn2"])
        return x + t

    for rb in P["res"]:
        h = rb_ref(h, rb)
    mu = jnp.transpose(rb_ref(h, P["res_m"]), (0, 3, 1, 2))
    if flg_var_q:
        log_var = jnp.transpose(rb_ref(h, P["res_v"]), (0, 3, 1, 2))
        return mu, log_var
    return mu


# ----------------------------------------------------------------------------
# Deterministic parameter init (shapes from the module's __init__)
# ----------------------------------------------------------------------------
def init_params(key, n_class, dim_z, num_rb, flg_var_q=False):
    keys = iter(jax.random.split(key, 256))

    def conv_p(cin, cout, k):
        w = jax.random.normal(next(keys), (k, k, cin, cout), jnp.float32)
        w = w / math.sqrt(k * k * cin)
        b = 0.05 * jax.random.normal(next(keys), (cout,), jnp.float32)
        return w, b

    def bn_p(c):
        gamma = 1.0 + 0.1 * jax.random.normal(next(keys), (c,), jnp.float32)
        beta = 0.1 * jax.random.normal(next(keys), (c,), jnp.float32)
        mean = 0.1 * jax.random.normal(next(keys), (c,), jnp.float32)
        var = jax.random.uniform(next(keys), (c,), jnp.float32, 0.5, 1.5)
        return (gamma, beta, mean, var)

    def resblock_p(c):
        w1, b1 = conv_p(c, c, 3)
        w2, b2 = conv_p(c, c, 1)
        return {"w1": w1, "b1": b1, "bn1": bn_p(c),
                "w2": w2, "b2": b2, "bn2": bn_p(c)}

    P = {}
    P["w1"], P["b1"] = conv_p(n_class, dim_z // 2, 4)
    P["bn1"] = bn_p(dim_z // 2)
    P["w2"], P["b2"] = conv_p(dim_z // 2, dim_z, 4)
    P["bn2"] = bn_p(dim_z)
    P["w3"], P["b3"] = conv_p(dim_z, dim_z, 4)
    P["res"] = [resblock_p(dim_z) for _ in range(num_rb - 1)]
    P["res_m"] = resblock_p(dim_z)
    if flg_var_q:
        P["res_v"] = resblock_p(dim_z)
    return P


# ----------------------------------------------------------------------------
if __name__ == "__main__":
    # Config consistent with the module: cfgs.num_class=10, cfgs.num_rb=2,
    # 64x64 label map (the "64" in the module name) -> 8x8 latents.
    num_class, num_rb, dim_z = 10, 2, 32
    n_class = int(np.ceil(num_class / 2) * 2)             # 10

    key = jax.random.PRNGKey(0)
    kx, kp = jax.random.split(key)
    B, H, W = 2, 64, 64
    # PyTorch passes float labels and casts: x.to(torch.int).long()
    x = jax.random.randint(kx, (B, H, W), 0, n_class).astype(jnp.float32)

    # Init once with res_v so both paths can share the same parameters.
    P = init_params(kp, n_class, dim_z, num_rb, flg_var_q=True)

    # ---- default path (flg_var_q=False): mu only ----
    prm = prepare_params(P, n_class, dim_z, flg_var_q=False)
    mu = jax.block_until_ready(encoder_forward(x, prm, n_class, dim_z, num_rb, False))
    assert mu.shape == (B, dim_z, H // 8, W // 8), mu.shape
    mu_ref = jax.block_until_ready(encoder_forward_ref(x, P, n_class, False))
    # bf16 MXU operands with f32 accumulate/residual trunk; tolerance sized for
    # bf16 operand quantization across the matmul chain.
    assert bool(jnp.allclose(mu, mu_ref, atol=2e-2, rtol=2e-2)), (
        float(jnp.max(jnp.abs(mu - mu_ref))))

    # ---- variance path (flg_var_q=True): (mu, log_var) ----
    prm_v = prepare_params(P, n_class, dim_z, flg_var_q=True)
    mu2, log_var = encoder_forward(x, prm_v, n_class, dim_z, num_rb, True)
    mu2, log_var = jax.block_until_ready((mu2, log_var))
    mu_ref2, log_var_ref = encoder_forward_ref(x, P, n_class, True)
    assert bool(jnp.allclose(mu2, mu_ref2, atol=2e-2, rtol=2e-2)), (
        float(jnp.max(jnp.abs(mu2 - mu_ref2))))
    assert bool(jnp.allclose(log_var, log_var_ref, atol=2e-2, rtol=2e-2)), (
        float(jnp.max(jnp.abs(log_var - log_var_ref))))

    print("KERNEL_OK")
</pallas_src>

<mosaic_0001>
module attributes {stable_mosaic.version = 11 : i64} {
  func.func @_stem_kernel(%arg0: i32, %arg1: memref<512x256xbf16, #tpu.memory_space<vmem>>, %arg2: memref<256x32xbf16, #tpu.memory_space<vmem>>, %arg3: memref<1x32xf32, #tpu.memory_space<vmem>>, %arg4: memref<512x32xbf16, #tpu.memory_space<vmem>>) attributes {dimension_semantics = [#tpu.dimension_semantics<arbitrary>], iteration_bounds = array<i64: 1>, scalar_prefetch = 0 : i64, scratch_operands = 0 : i64, tpu.core_type = #tpu.core_type<tc>, window_params = [{pipeline_mode = #tpu.pipeline_mode<synchronous>, transform_indices = @transform_0, window_bounds = array<i64: 512, 256>}, {pipeline_mode = #tpu.pipeline_mode<synchronous>, transform_indices = @transform_1, window_bounds = array<i64: 256, 32>}, {pipeline_mode = #tpu.pipeline_mode<synchronous>, transform_indices = @transform_2, window_bounds = array<i64: 1, 32>}, {pipeline_mode = #tpu.pipeline_mode<synchronous>, transform_indices = @transform_3, window_bounds = array<i64: 512, 32>}]} {
    %c0 = arith.constant 0 : index
    %c0_0 = arith.constant 0 : index
    %0 = vector.load %arg1[%c0, %c0_0] : memref<512x256xbf16, #tpu.memory_space<vmem>>, vector<512x256xbf16>
    %c0_1 = arith.constant 0 : index
    %c0_2 = arith.constant 0 : index
    %1 = vector.load %arg2[%c0_1, %c0_2] : memref<256x32xbf16, #tpu.memory_space<vmem>>, vector<256x32xbf16>
    %cst = arith.constant dense<0.000000e+00> : vector<512x32xf32>
    %2 = tpu.matmul %0, %1, %cst {dimension_numbers = #tpu.dot_dimension_numbers<[1], [0], [0], [1], [0, 0, 1, 1], [], []>} : vector<512x256xbf16>, vector<256x32xbf16>, vector<512x32xf32> -> vector<512x32xf32>
    %c0_3 = arith.constant 0 : index
    %c0_4 = arith.constant 0 : index
    %3 = vector.load %arg3[%c0_3, %c0_4] : memref<1x32xf32, #tpu.memory_space<vmem>>, vector<1x32xf32>
    %4 = vector.broadcast %3 : vector<1x32xf32> to vector<512x32xf32>
    %5 = arith.addf %2, %4 : vector<512x32xf32>
    %cst_5 = arith.constant 0.000000e+00 : f32
    %6 = vector.broadcast %cst_5 : f32 to vector<512x32xf32>
    %7 = arith.maximumf %5, %6 : vector<512x32xf32>
    %8 = arith.truncf %7 : vector<512x32xf32> to vector<512x32xbf16>
    %c0_6 = arith.constant 0 : index
    %c0_7 = arith.constant 0 : index
    %9 = vector.load %arg4[%c0_6, %c0_7] : memref<512x32xbf16, #tpu.memory_space<vmem>>, vector<512x32xbf16>
    tpu.vector_store %arg4[%c0_6, %c0_7], %8 {strides = array<i32>} : memref<512x32xbf16, #tpu.memory_space<vmem>>, vector<512x32xbf16>,
    return
  }
  func.func @transform_0(%arg0: i32) -> (i32, i32) {
    %c0_i32 = arith.constant 0 : i32
    %c0_i32_0 = arith.constant 0 : i32
    %c0_i32_1 = arith.constant 0 : i32
    return %c0_i32, %c0_i32_0 : i32, i32
  }
  func.func @transform_1(%arg0: i32) -> (i32, i32) {
    %c0_i32 = arith.constant 0 : i32
    %c0_i32_0 = arith.constant 0 : i32
    %c0_i32_1 = arith.constant 0 : i32
    return %c0_i32, %c0_i32_0 : i32, i32
  }
  func.func @transform_2(%arg0: i32) -> (i32, i32) {
    %c0_i32 = arith.constant 0 : i32
    %c0_i32_0 = arith.constant 0 : i32
    %c0_i32_1 = arith.constant 0 : i32
    return %c0_i32, %c0_i32_0 : i32, i32
  }
  func.func @transform_3(%arg0: i32) -> (i32, i32) {
    %c0_i32 = arith.constant 0 : i32
    %c0_i32_0 = arith.constant 0 : i32
    %c0_i32_1 = arith.constant 0 : i32
    return %c0_i32, %c0_i32_0 : i32, i32
  }
}

module attributes {stable_mosaic.version = 11 : i64} {
  func.func @kernel(%arg0: i32, %arg1: memref<9x1x128xf32, #tpu.memory_space<vmem>>, %arg2: memref<512x128xbf16, #tpu.memory_space<vmem>>, %arg3: memref<32x512xbf16, #tpu.memory_space<vmem>>, %arg4: memref<32x1xf32, #tpu.memory_space<vmem>>, %arg5: memref<2x9x32x32xbf16, #tpu.memory_space<vmem>>, %arg6: memref<2x32x1xf32, #tpu.memory_space<vmem>>, %arg7: memref<2x32x32xbf16, #tpu.memory_space<vmem>>, %arg8: memref<2x32x1xf32, #tpu.memory_space<vmem>>, %arg9: memref<32x128xf32, #tpu.memory_space<vmem>>) attributes {dimension_semantics = [#tpu.dimension_semantics<arbitrary>], iteration_bounds = array<i64: 1>, scalar_prefetch = 0 : i64, scratch_operands = 0 : i64, tpu.core_type = #tpu.core_type<tc>, window_params = [{pipeline_mode = #tpu.pipeline_mode<synchronous>, transform_indices = @transform_0, window_bounds = array<i64: 9, 1, 128>}, {pipeline_mode = #tpu.pipeline_mode<synchronous>, transform_indices = @transform_1, window_bounds = array<i64: 512, 128>}, {pipeline_mode = #tpu.pipeline_mode<synchronous>, transform_indices = @transform_2, window_bounds = array<i64: 32, 512>}, {pipeline_mode = #tpu.pipeline_mode<synchronous>, transform_indices = @transform_3, window_bounds = array<i64: 32, 1>}, {pipeline_mode = #tpu.pipeline_mode<synchronous>, transform_indices = @transform_4, window_bounds = array<i64: 2, 9, 32, 32>}, {pipeline_mode = #tpu.pipeline_mode<synchronous>, transform_indices = @transform_5, window_bounds = array<i64: 2, 32, 1>}, {pipeline_mode = #tpu.pipeline_mode<synchronous>, transform_indices = @transform_6, window_bounds = array<i64: 2, 32, 32>}, {pipeline_mode = #tpu.pipeline_mode<synchronous>, transform_indices = @transform_7, window_bounds = array<i64: 2, 32, 1>}, {pipeline_mode = #tpu.pipeline_mode<synchronous>, transform_indices = @transform_8, window_bounds = array<i64: 32, 128>}]} {
    %c0 = arith.constant 0 : index
    %c0_0 = arith.constant 0 : index
    %0 = vector.load %arg3[%c0, %c0_0] : memref<32x512xbf16, #tpu.memory_space<vmem>>, vector<32x512xbf16>
    %c0_1 = arith.constant 0 : index
    %c0_2 = arith.constant 0 : index
    %1 = vector.load %arg2[%c0_1, %c0_2] : memref<512x128xbf16, #tpu.memory_space<vmem>>, vector<512x128xbf16>
    %cst = arith.constant dense<0.000000e+00> : vector<32x128xf32>
    %2 = tpu.matmul %0, %1, %cst {dimension_numbers = #tpu.dot_dimension_numbers<[1], [0], [0], [1], [0, 0, 1, 1], [], []>} : vector<32x512xbf16>, vector<512x128xbf16>, vector<32x128xf32> -> vector<32x128xf32>
    %c0_3 = arith.constant 0 : index
    %c0_4 = arith.constant 0 : index
    %3 = vector.load %arg4[%c0_3, %c0_4] : memref<32x1xf32, #tpu.memory_space<vmem>>, vector<32x1xf32>
    %4 = vector.broadcast %3 : vector<32x1xf32> to vector<32x128xf32>
    %5 = arith.addf %2, %4 : vector<32x128xf32>
    %c0_5 = arith.constant 0 : index
    %c0_6 = arith.constant 0 : index
    %c0_7 = arith.constant 0 : index
    %6 = vector.load %arg1[%c0_5, %c0_6, %c0_7] : memref<9x1x128xf32, #tpu.memory_space<vmem>>, vector<1x1x128xf32>
    %7 = vector.shape_cast %6 : vector<1x1x128xf32> to vector<1x128xf32>
    %c1 = arith.constant 1 : index
    %c0_8 = arith.constant 0 : index
    %c0_9 = arith.constant 0 : index
    %8 = vector.load %arg1[%c1, %c0_8, %c0_9] : memref<9x1x128xf32, #tpu.memory_space<vmem>>, vector<1x1x128xf32>
    %9 = vector.shape_cast %8 : vector<1x1x128xf32> to vector<1x128xf32>
    %c2 = arith.constant 2 : index
    %c0_10 = arith.constant 0 : index
    %c0_11 = arith.constant 0 : index
    %10 = vector.load %arg1[%c2, %c0_10, %c0_11] : memref<9x1x128xf32, #tpu.memory_space<vmem>>, vector<1x1x128xf32>
    %11 = vector.shape_cast %10 : vector<1x1x128xf32> to vector<1x128xf32>
    %c3 = arith.constant 3 : index
    %c0_12 = arith.constant 0 : index
    %c0_13 = arith.constant 0 : index
    %12 = vector.load %arg1[%c3, %c0_12, %c0_13] : memref<9x1x128xf32, #tpu.memory_space<vmem>>, vector<1x1x128xf32>
    %13 = vector.shape_cast %12 : vector<1x1x128xf32> to vector<1x128xf32>
    %c5 = arith.constant 5 : index
    %c0_14 = arith.constant 0 : index
    %c0_15 = arith.constant 0 : index
    %14 = vector.load %arg1[%c5, %c0_14, %c0_15] : memref<9x1x128xf32, #tpu.memory_space<vmem>>, vector<1x1x128xf32>
    %15 = vector.shape_cast %14 : vector<1x1x128xf32> to vector<1x128xf32>
    %c6 = arith.constant 6 : index
    %c0_16 = arith.constant 0 : index
    %c0_17 = arith.constant 0 : index
    %16 = vector.load %arg1[%c6, %c0_16, %c0_17] : memref<9x1x128xf32, #tpu.memory_space<vmem>>, vector<1x1x128xf32>
    %17 = vector.shape_cast %16 : vector<1x1x128xf32> to vector<1x128xf32>
    %c7 = arith.constant 7 : index
    %c0_18 = arith.constant 0 : index
    %c0_19 = arith.constant 0 : index
    %18 = vector.load %arg1[%c7, %c0_18, %c0_19] : memref<9x1x128xf32, #tpu.memory_space<vmem>>, vector<1x1x128xf32>
    %19 = vector.shape_cast %18 : vector<1x1x128xf32> to vector<1x128xf32>
    %c8 = arith.constant 8 : index
    %c0_20 = arith.constant 0 : index
    %c0_21 = arith.constant 0 : index
    %20 = vector.load %arg1[%c8, %c0_20, %c0_21] : memref<9x1x128xf32, #tpu.memory_space<vmem>>, vector<1x1x128xf32>
    %21 = vector.shape_cast %20 : vector<1x1x128xf32> to vector<1x128xf32>
    %cst_22 = arith.constant 0.000000e+00 : f32
    %22 = vector.broadcast %cst_22 : f32 to vector<32x128xf32>
    %23 = arith.maximumf %5, %22 : vector<32x128xf32>
    %c9_i32 = arith.constant 9 : i32
    %24 = tpu.dynamic_rotate %23 by %c9_i32 dim 1 : vector<32x128xf32>, i32 -> vector<32x128xf32>
    %25 = vector.broadcast %7 : vector<1x128xf32> to vector<32x128xf32>
    %26 = arith.mulf %24, %25 : vector<32x128xf32>
    %c0_23 = arith.constant 0 : index
    %c0_24 = arith.constant 0 : index
    %c0_25 = arith.constant 0 : index
    %c0_26 = arith.constant 0 : index
    %27 = vector.load %arg5[%c0_23, %c0_24, %c0_25, %c0_26] : memref<2x9x32x32xbf16, #tpu.memory_space<vmem>>, vector<1x1x32x32xbf16>
    %28 = vector.shape_cast %27 : vector<1x1x32x32xbf16> to vector<32x32xbf16>
    %29 = arith.truncf %26 : vector<32x128xf32> to vector<32x128xbf16>
    %cst_27 = arith.constant dense<0.000000e+00> : vector<32x128xf32>
    %30 = tpu.matmul %28, %29, %cst_27 {dimension_numbers = #tpu.dot_dimension_numbers<[1], [0], [0], [1], [0, 0, 1, 1], [], []>} : vector<32x32xbf16>, vector<32x128xbf16>, vector<32x128xf32> -> vector<32x128xf32>
    %c8_i32 = arith.constant 8 : i32
    %31 = tpu.dynamic_rotate %23 by %c8_i32 dim 1 : vector<32x128xf32>, i32 -> vector<32x128xf32>
    %32 = vector.broadcast %9 : vector<1x128xf32> to vector<32x128xf32>
    %33 = arith.mulf %31, %32 : vector<32x128xf32>
    %c0_28 = arith.constant 0 : index
    %c1_29 = arith.constant 1 : index
    %c0_30 = arith.constant 0 : index
    %c0_31 = arith.constant 0 : index
    %34 = vector.load %arg5[%c0_28, %c1_29, %c0_30, %c0_31] : memref<2x9x32x32xbf16, #tpu.memory_space<vmem>>, vector<1x1x32x32xbf16>
    %35 = vector.shape_cast %34 : vector<1x1x32x32xbf16> to vector<32x32xbf16>
    %36 = arith.truncf %33 : vector<32x128xf32> to vector<32x128xbf16>
    %cst_32 = arith.constant dense<0.000000e+00> : vector<32x128xf32>
    %37 = tpu.matmul %35, %36, %cst_32 {dimension_numbers = #tpu.dot_dimension_numbers<[1], [0], [0], [1], [0, 0, 1, 1], [], []>} : vector<32x32xbf16>, vector<32x128xbf16>, vector<32x128xf32> -> vector<32x128xf32>
    %38 = arith.addf %30, %37 : vector<32x128xf32>
    %c7_i32 = arith.constant 7 : i32
    %39 = tpu.dynamic_rotate %23 by %c7_i32 dim 1 : vector<32x128xf32>, i32 -> vector<32x128xf32>
    %40 = vector.broadcast %11 : vector<1x128xf32> to vector<32x128xf32>
    %41 = arith.mulf %39, %40 : vector<32x128xf32>
    %c0_33 = arith.constant 0 : index
    %c2_34 = arith.constant 2 : index
    %c0_35 = arith.constant 0 : index
    %c0_36 = arith.constant 0 : index
    %42 = vector.load %arg5[%c0_33, %c2_34, %c0_35, %c0_36] : memref<2x9x32x32xbf16, #tpu.memory_space<vmem>>, vector<1x1x32x32xbf16>
    %43 = vector.shape_cast %42 : vector<1x1x32x32xbf16> to vector<32x32xbf16>
    %44 = arith.truncf %41 : vector<32x128xf32> to vector<32x128xbf16>
    %cst_37 = arith.constant dense<0.000000e+00> : vector<32x128xf32>
    %45 = tpu.matmul %43, %44, %cst_37 {dimension_numbers = #tpu.dot_dimension_numbers<[1], [0], [0], [1], [0, 0, 1, 1], [], []>} : vector<32x32xbf16>, vector<32x128xbf16>, vector<32x128xf32> -> vector<32x128xf32>
    %46 = arith.addf %38, %45 : vector<32x128xf32>
    %c1_i32 = arith.constant 1 : i32
    %47 = tpu.dynamic_rotate %23 by %c1_i32 dim 1 : vector<32x128xf32>, i32 -> vector<32x128xf32>
    %48 = vector.broadcast %13 : vector<1x128xf32> to vector<32x128xf32>
    %49 = arith.mulf %47, %48 : vector<32x128xf32>
    %c0_38 = arith.constant 0 : index
    %c3_39 = arith.constant 3 : index
    %c0_40 = arith.constant 0 : index
    %c0_41 = arith.constant 0 : index
    %50 = vector.load %arg5[%c0_38, %c3_39, %c0_40, %c0_41] : memref<2x9x32x32xbf16, #tpu.memory_space<vmem>>, vector<1x1x32x32xbf16>
    %51 = vector.shape_cast %50 : vector<1x1x32x32xbf16> to vector<32x32xbf16>
    %52 = arith.truncf %49 : vector<32x128xf32> to vector<32x128xbf16>
    %cst_42 = arith.constant dense<0.000000e+00> : vector<32x128xf32>
    %53 = tpu.matmul %51, %52, %cst_42 {dimension_numbers = #tpu.dot_dimension_numbers<[1], [0], [0], [1], [0, 0, 1, 1], [], []>} : vector<32x32xbf16>, vector<32x128xbf16>, vector<32x128xf32> -> vector<32x128xf32>
    %54 = arith.addf %46, %53 : vector<32x128xf32>
    %c0_43 = arith.constant 0 : index
    %c4 = arith.constant 4 : index
    %c0_44 = arith.constant 0 : index
    %c0_45 = arith.constant 0 : index
    %55 = vector.load %arg5[%c0_43, %c4, %c0_44, %c0_45] : memref<2x9x32x32xbf16, #tpu.memory_space<vmem>>, vector<1x1x32x32xbf16>
    %56 = vector.shape_cast %55 : vector<1x1x32x32xbf16> to vector<32x32xbf16>
    %57 = arith.truncf %23 : vector<32x128xf32> to vector<32x128xbf16>
    %cst_46 = arith.constant dense<0.000000e+00> : vector<32x128xf32>
    %58 = tpu.matmul %56, %57, %cst_46 {dimension_numbers = #tpu.dot_dimension_numbers<[1], [0], [0], [1], [0, 0, 1, 1], [], []>} : vector<32x32xbf16>, vector<32x128xbf16>, vector<32x128xf32> -> vector<32x128xf32>
    %59 = arith.addf %54, %58 : vector<32x128xf32>
    %c127_i32 = arith.constant 127 : i32
    %60 = tpu.dynamic_rotate %23 by %c127_i32 dim 1 : vector<32x128xf32>, i32 -> vector<32x128xf32>
    %61 = vector.broadcast %15 : vector<1x128xf32> to vector<32x128xf32>
    %62 = arith.mulf %60, %61 : vector<32x128xf32>
    %c0_47 = arith.constant 0 : index
    %c5_48 = arith.constant 5 : index
    %c0_49 = arith.constant 0 : index
    %c0_50 = arith.constant 0 : index
    %63 = vector.load %arg5[%c0_47, %c5_48, %c0_49, %c0_50] : memref<2x9x32x32xbf16, #tpu.memory_space<vmem>>, vector<1x1x32x32xbf16>
    %64 = vector.shape_cast %63 : vector<1x1x32x32xbf16> to vector<32x32xbf16>
    %65 = arith.truncf %62 : vector<32x128xf32> to vector<32x128xbf16>
    %cst_51 = arith.constant dense<0.000000e+00> : vector<32x128xf32>
    %66 = tpu.matmul %64, %65, %cst_51 {dimension_numbers = #tpu.dot_dimension_numbers<[1], [0], [0], [1], [0, 0, 1, 1], [], []>} : vector<32x32xbf16>, vector<32x128xbf16>, vector<32x128xf32> -> vector<32x128xf32>
    %67 = arith.addf %59, %66 : vector<32x128xf32>
    %c121_i32 = arith.constant 121 : i32
    %68 = tpu.dynamic_rotate %23 by %c121_i32 dim 1 : vector<32x128xf32>, i32 -> vector<32x128xf32>
    %69 = vector.broadcast %17 : vector<1x128xf32> to vector<32x128xf32>
    %70 = arith.mulf %68, %69 : vector<32x128xf32>
    %c0_52 = arith.constant 0 : index
    %c6_53 = arith.constant 6 : index
    %c0_54 = arith.constant 0 : index
    %c0_55 = arith.constant 0 : index
    %71 = vector.load %arg5[%c0_52, %c6_53, %c0_54, %c0_55] : memref<2x9x32x32xbf16, #tpu.memory_space<vmem>>, vector<1x1x32x32xbf16>
    %72 = vector.shape_cast %71 : vector<1x1x32x32xbf16> to vector<32x32xbf16>
    %73 = arith.truncf %70 : vector<32x128xf32> to vector<32x128xbf16>
    %cst_56 = arith.constant dense<0.000000e+00> : vector<32x128xf32>
    %74 = tpu.matmul %72, %73, %cst_56 {dimension_numbers = #tpu.dot_dimension_numbers<[1], [0], [0], [1], [0, 0, 1, 1], [], []>} : vector<32x32xbf16>, vector<32x128xbf16>, vector<32x128xf32> -> vector<32x128xf32>
    %75 = arith.addf %67, %74 : vector<32x128xf32>
    %c120_i32 = arith.constant 120 : i32
    %76 = tpu.dynamic_rotate %23 by %c120_i32 dim 1 : vector<32x128xf32>, i32 -> vector<32x128xf32>
    %77 = vector.broadcast %19 : vector<1x128xf32> to vector<32x128xf32>
    %78 = arith.mulf %76, %77 : vector<32x128xf32>
    %c0_57 = arith.constant 0 : index
    %c7_58 = arith.constant 7 : index
    %c0_59 = arith.constant 0 : index
    %c0_60 = arith.constant 0 : index
    %79 = vector.load %arg5[%c0_57, %c7_58, %c0_59, %c0_60] : memref<2x9x32x32xbf16, #tpu.memory_space<vmem>>, vector<1x1x32x32xbf16>
    %80 = vector.shape_cast %79 : vector<1x1x32x32xbf16> to vector<32x32xbf16>
    %81 = arith.truncf %78 : vector<32x128xf32> to vector<32x128xbf16>
    %cst_61 = arith.constant dense<0.000000e+00> : vector<32x128xf32>
    %82 = tpu.matmul %80, %81, %cst_61 {dimension_numbers = #tpu.dot_dimension_numbers<[1], [0], [0], [1], [0, 0, 1, 1], [], []>} : vector<32x32xbf16>, vector<32x128xbf16>, vector<32x128xf32> -> vector<32x128xf32>
    %83 = arith.addf %75, %82 : vector<32x128xf32>
    %c119_i32 = arith.constant 119 : i32
    %84 = tpu.dynamic_rotate %23 by %c119_i32 dim 1 : vector<32x128xf32>, i32 -> vector<32x128xf32>
    %85 = vector.broadcast %21 : vector<1x128xf32> to vector<32x128xf32>
    %86 = arith.mulf %84, %85 : vector<32x128xf32>
    %c0_62 = arith.constant 0 : index
    %c8_63 = arith.constant 8 : index
    %c0_64 = arith.constant 0 : index
    %c0_65 = arith.constant 0 : index
    %87 = vector.load %arg5[%c0_62, %c8_63, %c0_64, %c0_65] : memref<2x9x32x32xbf16, #tpu.memory_space<vmem>>, vector<1x1x32x32xbf16>
    %88 = vector.shape_cast %87 : vector<1x1x32x32xbf16> to vector<32x32xbf16>
    %89 = arith.truncf %86 : vector<32x128xf32> to vector<32x128xbf16>
    %cst_66 = arith.constant dense<0.000000e+00> : vector<32x128xf32>
    %90 = tpu.matmul %88, %89, %cst_66 {dimension_numbers = #tpu.dot_dimension_numbers<[1], [0], [0], [1], [0, 0, 1, 1], [], []>} : vector<32x32xbf16>, vector<32x128xbf16>, vector<32x128xf32> -> vector<32x128xf32>
    %91 = arith.addf %83, %90 : vector<32x128xf32>
    %c0_67 = arith.constant 0 : index
    %c0_68 = arith.constant 0 : index
    %c0_69 = arith.constant 0 : index
    %92 = vector.load %arg6[%c0_67, %c0_68, %c0_69] : memref<2x32x1xf32, #tpu.memory_space<vmem>>, vector<1x32x1xf32>
    %93 = vector.shape_cast %92 : vector<1x32x1xf32> to vector<32x1xf32>
    %94 = vector.broadcast %93 : vector<32x1xf32> to vector<32x128xf32>
    %95 = arith.addf %91, %94 : vector<32x128xf32>
    %cst_70 = arith.constant 0.000000e+00 : f32
    %96 = vector.broadcast %cst_70 : f32 to vector<32x128xf32>
    %97 = arith.maximumf %95, %96 : vector<32x128xf32>
    %98 = arith.truncf %97 : vector<32x128xf32> to vector<32x128xbf16>
    %c0_71 = arith.constant 0 : index
    %c0_72 = arith.constant 0 : index
    %c0_73 = arith.constant 0 : index
    %99 = vector.load %arg7[%c0_71, %c0_72, %c0_73] : memref<2x32x32xbf16, #tpu.memory_space<vmem>>, vector<1x32x32xbf16>
    %100 = vector.shape_cast %99 : vector<1x32x32xbf16> to vector<32x32xbf16>
    %cst_74 = arith.constant dense<0.000000e+00> : vector<32x128xf32>
    %101 = tpu.matmul %100, %98, %cst_74 {dimension_numbers = #tpu.dot_dimension_numbers<[1], [0], [0], [1], [0, 0, 1, 1], [], []>} : vector<32x32xbf16>, vector<32x128xbf16>, vector<32x128xf32> -> vector<32x128xf32>
    %102 = arith.addf %5, %101 : vector<32x128xf32>
    %c0_75 = arith.constant 0 : index
    %c0_76 = arith.constant 0 : index
    %c0_77 = arith.constant 0 : index
    %103 = vector.load %arg8[%c0_75, %c0_76, %c0_77] : memref<2x32x1xf32, #tpu.memory_space<vmem>>, vector<1x32x1xf32>
    %104 = vector.shape_cast %103 : vector<1x32x1xf32> to vector<32x1xf32>
    %105 = vector.broadcast %104 : vector<32x1xf32> to vector<32x128xf32>
    %106 = arith.addf %102, %105 : vector<32x128xf32>
    %cst_78 = arith.constant 0.000000e+00 : f32
    %107 = vector.broadcast %cst_78 : f32 to vector<32x128xf32>
    %108 = arith.maximumf %106, %107 : vector<32x128xf32>
    %c9_i32_79 = arith.constant 9 : i32
    %109 = tpu.dynamic_rotate %108 by %c9_i32_79 dim 1 : vector<32x128xf32>, i32 -> vector<32x128xf32>
    %110 = vector.broadcast %7 : vector<1x128xf32> to vector<32x128xf32>
    %111 = arith.mulf %109, %110 : vector<32x128xf32>
    %c1_80 = arith.constant 1 : index
    %c0_81 = arith.constant 0 : index
    %c0_82 = arith.constant 0 : index
    %c0_83 = arith.constant 0 : index
    %112 = vector.load %arg5[%c1_80, %c0_81, %c0_82, %c0_83] : memref<2x9x32x32xbf16, #tpu.memory_space<vmem>>, vector<1x1x32x32xbf16>
    %113 = vector.shape_cast %112 : vector<1x1x32x32xbf16> to vector<32x32xbf16>
    %114 = arith.truncf %111 : vector<32x128xf32> to vector<32x128xbf16>
    %cst_84 = arith.constant dense<0.000000e+00> : vector<32x128xf32>
    %115 = tpu.matmul %113, %114, %cst_84 {dimension_numbers = #tpu.dot_dimension_numbers<[1], [0], [0], [1], [0, 0, 1, 1], [], []>} : vector<32x32xbf16>, vector<32x128xbf16>, vector<32x128xf32> -> vector<32x128xf32>
    %c8_i32_85 = arith.constant 8 : i32
    %116 = tpu.dynamic_rotate %108 by %c8_i32_85 dim 1 : vector<32x128xf32>, i32 -> vector<32x128xf32>
    %117 = vector.broadcast %9 : vector<1x128xf32> to vector<32x128xf32>
    %118 = arith.mulf %116, %117 : vector<32x128xf32>
    %c1_86 = arith.constant 1 : index
    %c1_87 = arith.constant 1 : index
    %c0_88 = arith.constant 0 : index
    %c0_89 = arith.constant 0 : index
    %119 = vector.load %arg5[%c1_86, %c1_87, %c0_88, %c0_89] : memref<2x9x32x32xbf16, #tpu.memory_space<vmem>>, vector<1x1x32x32xbf16>
    %120 = vector.shape_cast %119 : vector<1x1x32x32xbf16> to vector<32x32xbf16>
    %121 = arith.truncf %118 : vector<32x128xf32> to vector<32x128xbf16>
    %cst_90 = arith.constant dense<0.000000e+00> : vector<32x128xf32>
    %122 = tpu.matmul %120, %121, %cst_90 {dimension_numbers = #tpu.dot_dimension_numbers<[1], [0], [0], [1], [0, 0, 1, 1], [], []>} : vector<32x32xbf16>, vector<32x128xbf16>, vector<32x128xf32> -> vector<32x128xf32>
    %123 = arith.addf %115, %122 : vector<32x128xf32>
    %c7_i32_91 = arith.constant 7 : i32
    %124 = tpu.dynamic_rotate %108 by %c7_i32_91 dim 1 : vector<32x128xf32>, i32 -> vector<32x128xf32>
    %125 = vector.broadcast %11 : vector<1x128xf32> to vector<32x128xf32>
    %126 = arith.mulf %124, %125 : vector<32x128xf32>
    %c1_92 = arith.constant 1 : index
    %c2_93 = arith.constant 2 : index
    %c0_94 = arith.constant 0 : index
    %c0_95 = arith.constant 0 : index
    %127 = vector.load %arg5[%c1_92, %c2_93, %c0_94, %c0_95] : memref<2x9x32x32xbf16, #tpu.memory_space<vmem>>, vector<1x1x32x32xbf16>
    %128 = vector.shape_cast %127 : vector<1x1x32x32xbf16> to vector<32x32xbf16>
    %129 = arith.truncf %126 : vector<32x128xf32> to vector<32x128xbf16>
    %cst_96 = arith.constant dense<0.000000e+00> : vector<32x128xf32>
    %130 = tpu.matmul %128, %129, %cst_96 {dimension_numbers = #tpu.dot_dimension_numbers<[1], [0], [0], [1], [0, 0, 1, 1], [], []>} : vector<32x32xbf16>, vector<32x128xbf16>, vector<32x128xf32> -> vector<32x128xf32>
    %131 = arith.addf %123, %130 : vector<32x128xf32>
    %c1_i32_97 = arith.constant 1 : i32
    %132 = tpu.dynamic_rotate %108 by %c1_i32_97 dim 1 : vector<32x128xf32>, i32 -> vector<32x128xf32>
    %133 = vector.broadcast %13 : vector<1x128xf32> to vector<32x128xf32>
    %134 = arith.mulf %132, %133 : vector<32x128xf32>
    %c1_98 = arith.constant 1 : index
    %c3_99 = arith.constant 3 : index
    %c0_100 = arith.constant 0 : index
    %c0_101 = arith.constant 0 : index
    %135 = vector.load %arg5[%c1_98, %c3_99, %c0_100, %c0_101] : memref<2x9x32x32xbf16, #tpu.memory_space<vmem>>, vector<1x1x32x32xbf16>
    %136 = vector.shape_cast %135 : vector<1x1x32x32xbf16> to vector<32x32xbf16>
    %137 = arith.truncf %134 : vector<32x128xf32> to vector<32x128xbf16>
    %cst_102 = arith.constant dense<0.000000e+00> : vector<32x128xf32>
    %138 = tpu.matmul %136, %137, %cst_102 {dimension_numbers = #tpu.dot_dimension_numbers<[1], [0], [0], [1], [0, 0, 1, 1], [], []>} : vector<32x32xbf16>, vector<32x128xbf16>, vector<32x128xf32> -> vector<32x128xf32>
    %139 = arith.addf %131, %138 : vector<32x128xf32>
    %c1_103 = arith.constant 1 : index
    %c4_104 = arith.constant 4 : index
    %c0_105 = arith.constant 0 : index
    %c0_106 = arith.constant 0 : index
    %140 = vector.load %arg5[%c1_103, %c4_104, %c0_105, %c0_106] : memref<2x9x32x32xbf16, #tpu.memory_space<vmem>>, vector<1x1x32x32xbf16>
    %141 = vector.shape_cast %140 : vector<1x1x32x32xbf16> to vector<32x32xbf16>
    %142 = arith.truncf %108 : vector<32x128xf32> to vector<32x128xbf16>
    %cst_107 = arith.constant dense<0.000000e+00> : vector<32x128xf32>
    %143 = tpu.matmul %141, %142, %cst_107 {dimension_numbers = #tpu.dot_dimension_numbers<[1], [0], [0], [1], [0, 0, 1, 1], [], []>} : vector<32x32xbf16>, vector<32x128xbf16>, vector<32x128xf32> -> vector<32x128xf32>
    %144 = arith.addf %139, %143 : vector<32x128xf32>
    %c127_i32_108 = arith.constant 127 : i32
    %145 = tpu.dynamic_rotate %108 by %c127_i32_108 dim 1 : vector<32x128xf32>, i32 -> vector<32x128xf32>
    %146 = vector.broadcast %15 : vector<1x128xf32> to vector<32x128xf32>
    %147 = arith.mulf %145, %146 : vector<32x128xf32>
    %c1_109 = arith.constant 1 : index
    %c5_110 = arith.constant 5 : index
    %c0_111 = arith.constant 0 : index
    %c0_112 = arith.constant 0 : index
    %148 = vector.load %arg5[%c1_109, %c5_110, %c0_111, %c0_112] : memref<2x9x32x32xbf16, #tpu.memory_space<vmem>>, vector<1x1x32x32xbf16>
    %149 = vector.shape_cast %148 : vector<1x1x32x32xbf16> to vector<32x32xbf16>
    %150 = arith.truncf %147 : vector<32x128xf32> to vector<32x128xbf16>
    %cst_113 = arith.constant dense<0.000000e+00> : vector<32x128xf32>
    %151 = tpu.matmul %149, %150, %cst_113 {dimension_numbers = #tpu.dot_dimension_numbers<[1], [0], [0], [1], [0, 0, 1, 1], [], []>} : vector<32x32xbf16>, vector<32x128xbf16>, vector<32x128xf32> -> vector<32x128xf32>
    %152 = arith.addf %144, %151 : vector<32x128xf32>
    %c121_i32_114 = arith.constant 121 : i32
    %153 = tpu.dynamic_rotate %108 by %c121_i32_114 dim 1 : vector<32x128xf32>, i32 -> vector<32x128xf32>
    %154 = vector.broadcast %17 : vector<1x128xf32> to vector<32x128xf32>
    %155 = arith.mulf %153, %154 : vector<32x128xf32>
    %c1_115 = arith.constant 1 : index
    %c6_116 = arith.constant 6 : index
    %c0_117 = arith.constant 0 : index
    %c0_118 = arith.constant 0 : index
    %156 = vector.load %arg5[%c1_115, %c6_116, %c0_117, %c0_118] : memref<2x9x32x32xbf16, #tpu.memory_space<vmem>>, vector<1x1x32x32xbf16>
    %157 = vector.shape_cast %156 : vector<1x1x32x32xbf16> to vector<32x32xbf16>
    %158 = arith.truncf %155 : vector<32x128xf32> to vector<32x128xbf16>
    %cst_119 = arith.constant dense<0.000000e+00> : vector<32x128xf32>
    %159 = tpu.matmul %157, %158, %cst_119 {dimension_numbers = #tpu.dot_dimension_numbers<[1], [0], [0], [1], [0, 0, 1, 1], [], []>} : vector<32x32xbf16>, vector<32x128xbf16>, vector<32x128xf32> -> vector<32x128xf32>
    %160 = arith.addf %152, %159 : vector<32x128xf32>
    %c120_i32_120 = arith.constant 120 : i32
    %161 = tpu.dynamic_rotate %108 by %c120_i32_120 dim 1 : vector<32x128xf32>, i32 -> vector<32x128xf32>
    %162 = vector.broadcast %19 : vector<1x128xf32> to vector<32x128xf32>
    %163 = arith.mulf %161, %162 : vector<32x128xf32>
    %c1_121 = arith.constant 1 : index
    %c7_122 = arith.constant 7 : index
    %c0_123 = arith.constant 0 : index
    %c0_124 = arith.constant 0 : index
    %164 = vector.load %arg5[%c1_121, %c7_122, %c0_123, %c0_124] : memref<2x9x32x32xbf16, #tpu.memory_space<vmem>>, vector<1x1x32x32xbf16>
    %165 = vector.shape_cast %164 : vector<1x1x32x32xbf16> to vector<32x32xbf16>
    %166 = arith.truncf %163 : vector<32x128xf32> to vector<32x128xbf16>
    %cst_125 = arith.constant dense<0.000000e+00> : vector<32x128xf32>
    %167 = tpu.matmul %165, %166, %cst_125 {dimension_numbers = #tpu.dot_dimension_numbers<[1], [0], [0], [1], [0, 0, 1, 1], [], []>} : vector<32x32xbf16>, vector<32x128xbf16>, vector<32x128xf32> -> vector<32x128xf32>
    %168 = arith.addf %160, %167 : vector<32x128xf32>
    %c119_i32_126 = arith.constant 119 : i32
    %169 = tpu.dynamic_rotate %108 by %c119_i32_126 dim 1 : vector<32x128xf32>, i32 -> vector<32x128xf32>
    %170 = vector.broadcast %21 : vector<1x128xf32> to vector<32x128xf32>
    %171 = arith.mulf %169, %170 : vector<32x128xf32>
    %c1_127 = arith.constant 1 : index
    %c8_128 = arith.constant 8 : index
    %c0_129 = arith.constant 0 : index
    %c0_130 = arith.constant 0 : index
    %172 = vector.load %arg5[%c1_127, %c8_128, %c0_129, %c0_130] : memref<2x9x32x32xbf16, #tpu.memory_space<vmem>>, vector<1x1x32x32xbf16>
    %173 = vector.shape_cast %172 : vector<1x1x32x32xbf16> to vector<32x32xbf16>
    %174 = arith.truncf %171 : vector<32x128xf32> to vector<32x128xbf16>
    %cst_131 = arith.constant dense<0.000000e+00> : vector<32x128xf32>
    %175 = tpu.matmul %173, %174, %cst_131 {dimension_numbers = #tpu.dot_dimension_numbers<[1], [0], [0], [1], [0, 0, 1, 1], [], []>} : vector<32x32xbf16>, vector<32x128xbf16>, vector<32x128xf32> -> vector<32x128xf32>
    %176 = arith.addf %168, %175 : vector<32x128xf32>
    %c1_132 = arith.constant 1 : index
    %c0_133 = arith.constant 0 : index
    %c0_134 = arith.constant 0 : index
    %177 = vector.load %arg6[%c1_132, %c0_133, %c0_134] : memref<2x32x1xf32, #tpu.memory_space<vmem>>, vector<1x32x1xf32>
    %178 = vector.shape_cast %177 : vector<1x32x1xf32> to vector<32x1xf32>
    %179 = vector.broadcast %178 : vector<32x1xf32> to vector<32x128xf32>
    %180 = arith.addf %176, %179 : vector<32x128xf32>
    %cst_135 = arith.constant 0.000000e+00 : f32
    %181 = vector.broadcast %cst_135 : f32 to vector<32x128xf32>
    %182 = arith.maximumf %180, %181 : vector<32x128xf32>
    %183 = arith.truncf %182 : vector<32x128xf32> to vector<32x128xbf16>
    %c1_136 = arith.constant 1 : index
    %c0_137 = arith.constant 0 : index
    %c0_138 = arith.constant 0 : index
    %184 = vector.load %arg7[%c1_136, %c0_137, %c0_138] : memref<2x32x32xbf16, #tpu.memory_space<vmem>>, vector<1x32x32xbf16>
    %185 = vector.shape_cast %184 : vector<1x32x32xbf16> to vector<32x32xbf16>
    %cst_139 = arith.constant dense<0.000000e+00> : vector<32x128xf32>
    %186 = tpu.matmul %185, %183, %cst_139 {dimension_numbers = #tpu.dot_dimension_numbers<[1], [0], [0], [1], [0, 0, 1, 1], [], []>} : vector<32x32xbf16>, vector<32x128xbf16>, vector<32x128xf32> -> vector<32x128xf32>
    %187 = arith.addf %106, %186 : vector<32x128xf32>
    %c1_140 = arith.constant 1 : index
    %c0_141 = arith.constant 0 : index
    %c0_142 = arith.constant 0 : index
    %188 = vector.load %arg8[%c1_140, %c0_141, %c0_142] : memref<2x32x1xf32, #tpu.memory_space<vmem>>, vector<1x32x1xf32>
    %189 = vector.shape_cast %188 : vector<1x32x1xf32> to vector<32x1xf32>
    %190 = vector.broadcast %189 : vector<32x1xf32> to vector<32x128xf32>
    %191 = arith.addf %187, %190 : vector<32x128xf32>
    %c0_143 = arith.constant 0 : index
    %c0_144 = arith.constant 0 : index
    %192 = vector.load %arg9[%c0_143, %c0_144] : memref<32x128xf32, #tpu.memory_space<vmem>>, vector<32x128xf32>
    tpu.vector_store %arg9[%c0_143, %c0_144], %191 {strides = array<i32>} : memref<32x128xf32, #tpu.memory_space<vmem>>, vector<32x128xf32>,
    return
  }
  func.func @transform_0(%arg0: i32) -> (i32, i32, i32) {
    %c0_i32 = arith.constant 0 : i32
    %c0_i32_0 = arith.constant 0 : i32
    %c0_i32_1 = arith.constant 0 : i32
    %c0_i32_2 = arith.constant 0 : i32
    return %c0_i32, %c0_i32_0, %c0_i32_1 : i32, i32, i32
  }
  func.func @transform_1(%arg0: i32) -> (i32, i32) {
    %c0_i32 = arith.constant 0 : i32
    %c0_i32_0 = arith.constant 0 : i32
    %c0_i32_1 = arith.constant 0 : i32
    return %c0_i32, %c0_i32_0 : i32, i32
  }
  func.func @transform_2(%arg0: i32) -> (i32, i32) {
    %c0_i32 = arith.constant 0 : i32
    %c0_i32_0 = arith.constant 0 : i32
    %c0_i32_1 = arith.constant 0 : i32
    return %c0_i32, %c0_i32_0 : i32, i32
  }
  func.func @transform_3(%arg0: i32) -> (i32, i32) {
    %c0_i32 = arith.constant 0 : i32
    %c0_i32_0 = arith.constant 0 : i32
    %c0_i32_1 = arith.constant 0 : i32
    return %c0_i32, %c0_i32_0 : i32, i32
  }
  func.func @transform_4(%arg0: i32) -> (i32, i32, i32, i32) {
    %c0_i32 = arith.constant 0 : i32
    %c0_i32_0 = arith.constant 0 : i32
    %c0_i32_1 = arith.constant 0 : i32
    %c0_i32_2 = arith.constant 0 : i32
    %c0_i32_3 = arith.constant 0 : i32
    return %c0_i32, %c0_i32_0, %c0_i32_1, %c0_i32_2 : i32, i32, i32, i32
  }
  func.func @transform_5(%arg0: i32) -> (i32, i32, i32) {
    %c0_i32 = arith.constant 0 : i32
    %c0_i32_0 = arith.constant 0 : i32
    %c0_i32_1 = arith.constant 0 : i32
    %c0_i32_2 = arith.constant 0 : i32
    return %c0_i32, %c0_i32_0, %c0_i32_1 : i32, i32, i32
  }
  func.func @transform_6(%arg0: i32) -> (i32, i32, i32) {
    %c0_i32 = arith.constant 0 : i32
    %c0_i32_0 = arith.constant 0 : i32
    %c0_i32_1 = arith.constant 0 : i32
    %c0_i32_2 = arith.constant 0 : i32
    return %c0_i32, %c0_i32_0, %c0_i32_1 : i32, i32, i32
  }
  func.func @transform_7(%arg0: i32) -> (i32, i32, i32) {
    %c0_i32 = arith.constant 0 : i32
    %c0_i32_0 = arith.constant 0 : i32
    %c0_i32_1 = arith.constant 0 : i32
    %c0_i32_2 = arith.constant 0 : i32
    return %c0_i32, %c0_i32_0, %c0_i32_1 : i32, i32, i32
  }
  func.func @transform_8(%arg0: i32) -> (i32, i32) {
    %c0_i32 = arith.constant 0 : i32
    %c0_i32_0 = arith.constant 0 : i32
    %c0_i32_1 = arith.constant 0 : i32
    return %c0_i32, %c0_i32_0 : i32, i32
  }
}

</mosaic_0001>

<llo_original>
// kernel: encoder_forward.2
$region0: #{encoder_forward.2}
  #allocation0 [shape = 'u32[]', space=smem, size = 0x4, offset = 0x4, fixed_abs, tag = 'smem constant byte address 0x4 - core index']
  #allocation1 [shape = 'u32[144,128]{1,0:T(1,128)}', space=vmem, size = 0x12000, scoped, tag = 'internal scratch']
  %s0 = inlined_call_operand.vmem [shape: bf16[512,256], index: 0, kind: input, shape index: {}]
  %s1 = inlined_call_operand.vmem [shape: bf16[256,32], index: 1, kind: input, shape index: {}]
  %s2 = inlined_call_operand.vmem [shape: f32[1,32], index: 2, kind: input, shape index: {}]
  %s3 = inlined_call_operand.vmem [shape: bf16[512,32], index: 3, kind: output, shape index: {}]
  %s4 = sld [smem:[#allocation0]]
  $region22: #{encoder_forward.2} parent=0
    _
  %s6 = ssub.s32 1, %s4
  %s7 = scalar_select 0, %s6, %s4
  // Predicated region
  $region2: #{encoder_forward.2} parent=0 // pred_check
    _
  $region3: #{encoder_forward.2} parent=0 // pred_check_branch
    %9 = sbr.rel (0) target = $region5
  $region4: #{encoder_forward.2} parent=0 // pred_region
    _
  $region5: #{encoder_forward.2} parent=0 // pred_fallthru
    _
  // Predicated region
  $region6: #{encoder_forward.2} parent=0 // pred_check
    _
  $region7: #{encoder_forward.2} parent=0 // pred_check_branch
    %11 = sbr.rel (0) target = $region9
  $region8: #{encoder_forward.2} parent=0 // pred_region
    _
  $region9: #{encoder_forward.2} parent=0 // pred_fallthru
    _
  // Predicated region
  $region10: #{encoder_forward.2} parent=0 // pred_check
    _
  $region11: #{encoder_forward.2} parent=0 // pred_check_branch
    %13 = sbr.rel (0) target = $region13
  $region12: #{encoder_forward.2} parent=0 // pred_region
    _
  $region13: #{encoder_forward.2} parent=0 // pred_fallthru
    _
  %v15 = vld [vmem:[%s0] sm:$0xff]
  %v16 = vld [vmem:[%s0 + $0x8] sm:$0xff]
  %v17 = vld [vmem:[%s0 + $0x10] sm:$0xff]
  %v18 = vld [vmem:[%s0 + $0x18] sm:$0xff]
  %v19 = vld [vmem:[%s0 + $0x20] sm:$0xff]
  %v20 = vld [vmem:[%s0 + $0x28] sm:$0xff]
  %v21 = vld [vmem:[%s0 + $0x30] sm:$0xff]
  %v22 = vld [vmem:[%s0 + $0x38] sm:$0xff]
  %v23 = vld [vmem:[%s0 + $0x40] sm:$0xff]
  %v24 = vld [vmem:[%s0 + $0x48] sm:$0xff]
  %v25 = vld [vmem:[%s0 + $0x50] sm:$0xff]
  %v26 = vld [vmem:[%s0 + $0x58] sm:$0xff]
  %v27 = vld [vmem:[%s0 + $0x60] sm:$0xff]
  %v28 = vld [vmem:[%s0 + $0x68] sm:$0xff]
  %v29 = vld [vmem:[%s0 + $0x70] sm:$0xff]
  %v30 = vld [vmem:[%s0 + $0x78] sm:$0xff]
  %v31 = vld [vmem:[%s0 + $0x80] sm:$0xff]
  %v32 = vld [vmem:[%s0 + $0x88] sm:$0xff]
  %v33 = vld [vmem:[%s0 + $0x90] sm:$0xff]
  %v34 = vld [vmem:[%s0 + $0x98] sm:$0xff]
  %v35 = vld [vmem:[%s0 + $0xa0] sm:$0xff]
  %v36 = vld [vmem:[%s0 + $0xa8] sm:$0xff]
  %v37 = vld [vmem:[%s0 + $0xb0] sm:$0xff]
  %v38 = vld [vmem:[%s0 + $0xb8] sm:$0xff]
  %v39 = vld [vmem:[%s0 + $0xc0] sm:$0xff]
  %v40 = vld [vmem:[%s0 + $0xc8] sm:$0xff]
  %v41 = vld [vmem:[%s0 + $0xd0] sm:$0xff]
  %v42 = vld [vmem:[%s0 + $0xd8] sm:$0xff]
  %v43 = vld [vmem:[%s0 + $0xe0] sm:$0xff]
  %v44 = vld [vmem:[%s0 + $0xe8] sm:$0xff]
  %v45 = vld [vmem:[%s0 + $0xf0] sm:$0xff]
  %v46 = vld [vmem:[%s0 + $0xf8] sm:$0xff]
  %v47 = vld [vmem:[%s0 + $0x100] sm:$0xff]
  %v48 = vld [vmem:[%s0 + $0x108] sm:$0xff]
  %v49 = vld [vmem:[%s0 + $0x110] sm:$0xff]
  %v50 = vld [vmem:[%s0 + $0x118] sm:$0xff]
  %v51 = vld [vmem:[%s0 + $0x120] sm:$0xff]
  %v52 = vld [vmem:[%s0 + $0x128] sm:$0xff]
  %v53 = vld [vmem:[%s0 + $0x130] sm:$0xff]
  %v54 = vld [vmem:[%s0 + $0x138] sm:$0xff]
  %v55 = vld [vmem:[%s0 + $0x140] sm:$0xff]
  %v56 = vld [vmem:[%s0 + $0x148] sm:$0xff]
  %v57 = vld [vmem:[%s0 + $0x150] sm:$0xff]
  %v58 = vld [vmem:[%s0 + $0x158] sm:$0xff]
  %v59 = vld [vmem:[%s0 + $0x160] sm:$0xff]
  %v60 = vld [vmem:[%s0 + $0x168] sm:$0xff]
  %v61 = vld [vmem:[%s0 + $0x170] sm:$0xff]
  %v62 = vld [vmem:[%s0 + $0x178] sm:$0xff]
  %v63 = vld [vmem:[%s0 + $0x180] sm:$0xff]
  %v64 = vld [vmem:[%s0 + $0x188] sm:$0xff]
  %v65 = vld [vmem:[%s0 + $0x190] sm:$0xff]
  %v66 = vld [vmem:[%s0 + $0x198] sm:$0xff]
  %v67 = vld [vmem:[%s0 + $0x1a0] sm:$0xff]
  %v68 = vld [vmem:[%s0 + $0x1a8] sm:$0xff]
  %v69 = vld [vmem:[%s0 + $0x1b0] sm:$0xff]
  %v70 = vld [vmem:[%s0 + $0x1b8] sm:$0xff]
  %v71 = vld [vmem:[%s0 + $0x1c0] sm:$0xff]
  %v72 = vld [vmem:[%s0 + $0x1c8] sm:$0xff]
  %v73 = vld [vmem:[%s0 + $0x1d0] sm:$0xff]
  %v74 = vld [vmem:[%s0 + $0x1d8] sm:$0xff]
  %v75 = vld [vmem:[%s0 + $0x1e0] sm:$0xff]
  %v76 = vld [vmem:[%s0 + $0x1e8] sm:$0xff]
  %v77 = vld [vmem:[%s0 + $0x1f0] sm:$0xff]
  %v78 = vld [vmem:[%s0 + $0x1f8] sm:$0xff]
  %v79 = vld [vmem:[%s1] sm:$0xf]
  %v80 = vld [vmem:[%s1 + $0x4] sm:$0xf]
  %v81 = vld [vmem:[%s1 + $0x8] sm:$0xf]
  %v82 = vld [vmem:[%s1 + $0xc] sm:$0xf]
  %v83 = vld [vmem:[%s1 + $0x10] sm:$0xf]
  %v84 = vld [vmem:[%s1 + $0x14] sm:$0xf]
  %v85 = vld [vmem:[%s1 + $0x18] sm:$0xf]
  %v86 = vld [vmem:[%s1 + $0x1c] sm:$0xf]
  %v87 = vld [vmem:[%s1 + $0x20] sm:$0xf]
  %v88 = vld [vmem:[%s1 + $0x24] sm:$0xf]
  %v89 = vld [vmem:[%s1 + $0x28] sm:$0xf]
  %v90 = vld [vmem:[%s1 + $0x2c] sm:$0xf]
  %v91 = vld [vmem:[%s1 + $0x30] sm:$0xf]
  %v92 = vld [vmem:[%s1 + $0x34] sm:$0xf]
  %v93 = vld [vmem:[%s1 + $0x38] sm:$0xf]
  %v94 = vld [vmem:[%s1 + $0x3c] sm:$0xf]
  %v95 = vld [vmem:[%s1 + $0x40] sm:$0xf]
  %v96 = vld [vmem:[%s1 + $0x44] sm:$0xf]
  %v97 = vld [vmem:[%s1 + $0x48] sm:$0xf]
  %v98 = vld [vmem:[%s1 + $0x4c] sm:$0xf]
  %v99 = vld [vmem:[%s1 + $0x50] sm:$0xf]
  %v100 = vld [vmem:[%s1 + $0x54] sm:$0xf]
  %v101 = vld [vmem:[%s1 + $0x58] sm:$0xf]
  %v102 = vld [vmem:[%s1 + $0x5c] sm:$0xf]
  %v103 = vld [vmem:[%s1 + $0x60] sm:$0xf]
  %v104 = vld [vmem:[%s1 + $0x64] sm:$0xf]
  %v105 = vld [vmem:[%s1 + $0x68] sm:$0xf]
  %v106 = vld [vmem:[%s1 + $0x6c] sm:$0xf]
  %v107 = vld [vmem:[%s1 + $0x70] sm:$0xf]
  %v108 = vld [vmem:[%s1 + $0x74] sm:$0xf]
  %v109 = vld [vmem:[%s1 + $0x78] sm:$0xf]
  %v110 = vld [vmem:[%s1 + $0x7c] sm:$0xf]
  %v111 = vld [vmem:[%s2] sm:$0x1]
  %v113 = vlaneseq
  %v114 = vshrl.u32 %v113, 7
  %v115 = vsub.s32 0, %v114
  %v116 = vrot.slane %v111, %v115
  %v182 = vunpack.c.l.b16 %v15
  %v183 = vunpack.c.h.b16 %v15
  %v184 = vunpack.c.l.b16 %v16
  %v185 = vunpack.c.h.b16 %v16
  %v186 = vunpack.c.l.b16 %v17
  %v187 = vunpack.c.h.b16 %v17
  %v188 = vunpack.c.l.b16 %v18
  %v189 = vunpack.c.h.b16 %v18
  %v190 = vunpack.c.l.b16 %v19
  %v191 = vunpack.c.h.b16 %v19
  %v192 = vunpack.c.l.b16 %v20
  %v193 = vunpack.c.h.b16 %v20
  %v194 = vunpack.c.l.b16 %v21
  %v195 = vunpack.c.h.b16 %v21
  %v196 = vunpack.c.l.b16 %v22
  %v197 = vunpack.c.h.b16 %v22
  %v198 = vunpack.c.l.b16 %v23
  %v199 = vunpack.c.h.b16 %v23
  %v200 = vunpack.c.l.b16 %v24
  %v201 = vunpack.c.h.b16 %v24
  %v202 = vunpack.c.l.b16 %v25
  %v203 = vunpack.c.h.b16 %v25
  %v204 = vunpack.c.l.b16 %v26
  %v205 = vunpack.c.h.b16 %v26
  %v206 = vunpack.c.l.b16 %v27
  %v207 = vunpack.c.h.b16 %v27
  %v208 = vunpack.c.l.b16 %v28
  %v209 = vunpack.c.h.b16 %v28
  %v210 = vunpack.c.l.b16 %v29
  %v211 = vunpack.c.h.b16 %v29
  %v212 = vunpack.c.l.b16 %v30
  %v213 = vunpack.c.h.b16 %v30
  %v214 = vunpack.c.l.b16 %v31
  %v215 = vunpack.c.h.b16 %v31
  %v216 = vunpack.c.l.b16 %v32
  %v217 = vunpack.c.h.b16 %v32
  %v218 = vunpack.c.l.b16 %v33
  %v219 = vunpack.c.h.b16 %v33
  %v220 = vunpack.c.l.b16 %v34
  %v221 = vunpack.c.h.b16 %v34
  %v222 = vunpack.c.l.b16 %v35
  %v223 = vunpack.c.h.b16 %v35
  %v224 = vunpack.c.l.b16 %v36
  %v225 = vunpack.c.h.b16 %v36
  %v226 = vunpack.c.l.b16 %v37
  %v227 = vunpack.c.h.b16 %v37
  %v228 = vunpack.c.l.b16 %v38
  %v229 = vunpack.c.h.b16 %v38
  %v230 = vunpack.c.l.b16 %v39
  %v231 = vunpack.c.h.b16 %v39
  %v232 = vunpack.c.l.b16 %v40
  %v233 = vunpack.c.h.b16 %v40
  %v234 = vunpack.c.l.b16 %v41
  %v235 = vunpack.c.h.b16 %v41
  %v236 = vunpack.c.l.b16 %v42
  %v237 = vunpack.c.h.b16 %v42
  %v238 = vunpack.c.l.b16 %v43
  %v239 = vunpack.c.h.b16 %v43
  %v240 = vunpack.c.l.b16 %v44
  %v241 = vunpack.c.h.b16 %v44
  %v242 = vunpack.c.l.b16 %v45
  %v243 = vunpack.c.h.b16 %v45
  %v244 = vunpack.c.l.b16 %v46
  %v245 = vunpack.c.h.b16 %v46
  %v246 = vunpack.c.l.b16 %v47
  %v247 = vunpack.c.h.b16 %v47
  %v248 = vunpack.c.l.b16 %v48
  %v249 = vunpack.c.h.b16 %v48
  %v250 = vunpack.c.l.b16 %v49
  %v251 = vunpack.c.h.b16 %v49
  %v252 = vunpack.c.l.b16 %v50
  %v253 = vunpack.c.h.b16 %v50
  %v254 = vunpack.c.l.b16 %v51
  %v255 = vunpack.c.h.b16 %v51
  %v256 = vunpack.c.l.b16 %v52
  %v257 = vunpack.c.h.b16 %v52
  %v258 = vunpack.c.l.b16 %v53
  %v259 = vunpack.c.h.b16 %v53
  %v260 = vunpack.c.l.b16 %v54
  %v261 = vunpack.c.h.b16 %v54
  %v262 = vunpack.c.l.b16 %v55
  %v263 = vunpack.c.h.b16 %v55
  %v264 = vunpack.c.l.b16 %v56
  %v265 = vunpack.c.h.b16 %v56
  %v266 = vunpack.c.l.b16 %v57
  %v267 = vunpack.c.h.b16 %v57
  %v268 = vunpack.c.l.b16 %v58
  %v269 = vunpack.c.h.b16 %v58
  %v270 = vunpack.c.l.b16 %v59
  %v271 = vunpack.c.h.b16 %v59
  %v272 = vunpack.c.l.b16 %v60
  %v273 = vunpack.c.h.b16 %v60
  %v274 = vunpack.c.l.b16 %v61
  %v275 = vunpack.c.h.b16 %v61
  %v276 = vunpack.c.l.b16 %v62
  %v277 = vunpack.c.h.b16 %v62
  %v278 = vunpack.c.l.b16 %v63
  %v279 = vunpack.c.h.b16 %v63
  %v280 = vunpack.c.l.b16 %v64
  %v281 = vunpack.c.h.b16 %v64
  %v282 = vunpack.c.l.b16 %v65
  %v283 = vunpack.c.h.b16 %v65
  %v284 = vunpack.c.l.b16 %v66
  %v285 = vunpack.c.h.b16 %v66
  %v286 = vunpack.c.l.b16 %v67
  %v287 = vunpack.c.h.b16 %v67
  %v288 = vunpack.c.l.b16 %v68
  %v289 = vunpack.c.h.b16 %v68
  %v290 = vunpack.c.l.b16 %v69
  %v291 = vunpack.c.h.b16 %v69
  %v292 = vunpack.c.l.b16 %v70
  %v293 = vunpack.c.h.b16 %v70
  %v294 = vunpack.c.l.b16 %v71
  %v295 = vunpack.c.h.b16 %v71
  %v296 = vunpack.c.l.b16 %v72
  %v297 = vunpack.c.h.b16 %v72
  %v298 = vunpack.c.l.b16 %v73
  %v299 = vunpack.c.h.b16 %v73
  %v300 = vunpack.c.l.b16 %v74
  %v301 = vunpack.c.h.b16 %v74
  %v302 = vunpack.c.l.b16 %v75
  %v303 = vunpack.c.h.b16 %v75
  %v304 = vunpack.c.l.b16 %v76
  %v305 = vunpack.c.h.b16 %v76
  %v306 = vunpack.c.l.b16 %v77
  %v307 = vunpack.c.h.b16 %v77
  %v308 = vunpack.c.l.b16 %v78
  %v309 = vunpack.c.h.b16 %v78
  %v310 = vpack.c.b16 %v184, %v182
  %v311 = vpack.c.b16 %v185, %v183
  %v312 = vpack.c.b16 %v188, %v186
  %v313 = vpack.c.b16 %v189, %v187
  %v314 = vpack.c.b16 %v192, %v190
  %v315 = vpack.c.b16 %v193, %v191
  %v316 = vpack.c.b16 %v196, %v194
  %v317 = vpack.c.b16 %v197, %v195
  %v318 = vpack.c.b16 %v200, %v198
  %v319 = vpack.c.b16 %v201, %v199
  %v320 = vpack.c.b16 %v204, %v202
  %v321 = vpack.c.b16 %v205, %v203
  %v322 = vpack.c.b16 %v208, %v206
  %v323 = vpack.c.b16 %v209, %v207
  %v324 = vpack.c.b16 %v212, %v210
  %v325 = vpack.c.b16 %v213, %v211
  %v326 = vpack.c.b16 %v216, %v214
  %v327 = vpack.c.b16 %v217, %v215
  %v328 = vpack.c.b16 %v220, %v218
  %v329 = vpack.c.b16 %v221, %v219
  %v330 = vpack.c.b16 %v224, %v222
  %v331 = vpack.c.b16 %v225, %v223
  %v332 = vpack.c.b16 %v228, %v226
  %v333 = vpack.c.b16 %v229, %v227
  %v334 = vpack.c.b16 %v232, %v230
  %v335 = vpack.c.b16 %v233, %v231
  %v336 = vpack.c.b16 %v236, %v234
  %v337 = vpack.c.b16 %v237, %v235
  %v338 = vpack.c.b16 %v240, %v238
  %v339 = vpack.c.b16 %v241, %v239
  %v340 = vpack.c.b16 %v244, %v242
  %v341 = vpack.c.b16 %v245, %v243
  %v342 = vpack.c.b16 %v248, %v246
  %v343 = vpack.c.b16 %v249, %v247
  %v344 = vpack.c.b16 %v252, %v250
  %v345 = vpack.c.b16 %v253, %v251
  %v346 = vpack.c.b16 %v256, %v254
  %v347 = vpack.c.b16 %v257, %v255
  %v348 = vpack.c.b16 %v260, %v258
  %v349 = vpack.c.b16 %v261, %v259
  %v350 = vpack.c.b16 %v264, %v262
  %v351 = vpack.c.b16 %v265, %v263
  %v352 = vpack.c.b16 %v268, %v266
  %v353 = vpack.c.b16 %v269, %v267
  %v354 = vpack.c.b16 %v272, %v270
  %v355 = vpack.c.b16 %v273, %v271
  %v356 = vpack.c.b16 %v276, %v274
  %v357 = vpack.c.b16 %v277, %v275
  %v358 = vpack.c.b16 %v280, %v278
  %v359 = vpack.c.b16 %v281, %v279
  %v360 = vpack.c.b16 %v284, %v282
  %v361 = vpack.c.b16 %v285, %v283
  %v362 = vpack.c.b16 %v288, %v286
  %v363 = vpack.c.b16 %v289, %v287
  %v364 = vpack.c.b16 %v292, %v290
  %v365 = vpack.c.b16 %v293, %v291
  %v366 = vpack.c.b16 %v296, %v294
  %v367 = vpack.c.b16 %v297, %v295
  %v368 = vpack.c.b16 %v300, %v298
  %v369 = vpack.c.b16 %v301, %v299
  %v370 = vpack.c.b16 %v304, %v302
  %v371 = vpack.c.b16 %v305, %v303
  %v372 = vpack.c.b16 %v308, %v306
  %v373 = vpack.c.b16 %v309, %v307
  %v470 = vunpack.c.l.b16 %v79
  %v471 = vunpack.c.l.b16 %v80
  %v472 = vunpack.c.l.b16 %v81
  %v473 = vunpack.c.l.b16 %v82
  %v474 = vunpack.c.l.b16 %v83
  %v475 = vunpack.c.l.b16 %v84
  %v476 = vunpack.c.l.b16 %v85
  %v477 = vunpack.c.l.b16 %v86
  %v478 = vunpack.c.l.b16 %v87
  %v479 = vunpack.c.l.b16 %v88
  %v480 = vunpack.c.l.b16 %v89
  %v481 = vunpack.c.l.b16 %v90
  %v482 = vunpack.c.l.b16 %v91
  %v483 = vunpack.c.l.b16 %v92
  %v484 = vunpack.c.l.b16 %v93
  %v485 = vunpack.c.l.b16 %v94
  %v486 = vunpack.c.l.b16 %v95
  %v487 = vunpack.c.l.b16 %v96
  %v488 = vunpack.c.l.b16 %v97
  %v489 = vunpack.c.l.b16 %v98
  %v490 = vunpack.c.l.b16 %v99
  %v491 = vunpack.c.l.b16 %v100
  %v492 = vunpack.c.l.b16 %v101
  %v493 = vunpack.c.l.b16 %v102
  %v494 = vunpack.c.l.b16 %v103
  %v495 = vunpack.c.l.b16 %v104
  %v496 = vunpack.c.l.b16 %v105
  %v497 = vunpack.c.l.b16 %v106
  %v498 = vunpack.c.l.b16 %v107
  %v499 = vunpack.c.l.b16 %v108
  %v500 = vunpack.c.l.b16 %v109
  %v501 = vunpack.c.l.b16 %v110
  %v502 = vpack.c.b16 %v471, %v470
  %v503 = vpack.c.b16 %v473, %v472
  %v504 = vpack.c.b16 %v475, %v474
  %v505 = vpack.c.b16 %v477, %v476
  %v506 = vpack.c.b16 %v479, %v478
  %v507 = vpack.c.b16 %v481, %v480
  %v508 = vpack.c.b16 %v483, %v482
  %v509 = vpack.c.b16 %v485, %v484
  %v510 = vpack.c.b16 %v487, %v486
  %v511 = vpack.c.b16 %v489, %v488
  %v512 = vpack.c.b16 %v491, %v490
  %v513 = vpack.c.b16 %v493, %v492
  %v514 = vpack.c.b16 %v495, %v494
  %v515 = vpack.c.b16 %v497, %v496
  %v516 = vpack.c.b16 %v499, %v498
  %v517 = vpack.c.b16 %v501, %v500
  %534 = vmatprep.subr.bf16.mxu0 0
  %535 = vmatpush1.bf16.msra.mxu0 %v502
  %536 = vmatprep.subr.bf16.mxu0 0
  %537 = vmatpush1.bf16.msra.mxu0 %v503
  %538 = vmatprep.subr.bf16.mxu0 0
  %539 = vmatpush1.bf16.msra.mxu0 %v504
  %540 = vmatprep.subr.bf16.mxu0 0
  %541 = vmatpush1.bf16.msra.mxu0 %v505
  %542 = vmatprep.subr.bf16.mxu0 0
  %543 = vmatpush1.bf16.msra.mxu0 %v506
  %544 = vmatprep.subr.bf16.mxu0 0
  %545 = vmatpush1.bf16.msra.mxu0 %v507
  %546 = vmatprep.subr.bf16.mxu0 0
  %547 = vmatpush1.bf16.msra.mxu0 %v508
  %548 = vmatprep.subr.bf16.mxu0 0
  %549 = vmatpush1.bf16.msra.mxu0 %v509
  %550 = vmatprep.subr.bf16.mxu0 0
  %551 = vmatpush1.bf16.msra.mxu0 %v510
  %552 = vmatprep.subr.bf16.mxu0 0
  %553 = vmatpush1.bf16.msra.mxu0 %v511
  %554 = vmatprep.subr.bf16.mxu0 0
  %555 = vmatpush1.bf16.msra.mxu0 %v512
  %556 = vmatprep.subr.bf16.mxu0 0
  %557 = vmatpush1.bf16.msra.mxu0 %v513
  %558 = vmatprep.subr.bf16.mxu0 0
  %559 = vmatpush1.bf16.msra.mxu0 %v514
  %560 = vmatprep.subr.bf16.mxu0 0
  %561 = vmatpush1.bf16.msra.mxu0 %v515
  %562 = vmatprep.subr.bf16.mxu0 0
  %563 = vmatpush1.bf16.msra.mxu0 %v516
  %564 = vmatprep.subr.bf16.mxu0 0
  %565 = vmatpush1.bf16.msra.mxu0 %v517
  %566 = vmatprep.mubr.bf16.mxu0 %v311
  %567 = vmatmul.mubr.bf16.gmra.mrb[0].mxu0 %v310
  %v568 = vpop.f32.mrb[0].mxu0
  %v569 = vadd.f32 %v116, %v568
  %v570 = vpop.f32.mrb[0].mxu0
  %v571 = vpop.f32.mrb[0].mxu0
  %v572 = vadd.f32 %v116, %v571
  %v573 = vpop.f32.mrb[0].mxu0
  %574 = vmatprep.mubr.bf16.mxu0 %v313
  %575 = vmatmul.mubr.bf16.gmra.mrb[0].mxu0 %v312
  %v576 = vpop.f32.mrb[0].mxu0
  %v577 = vadd.f32 %v116, %v576
  %v578 = vpop.f32.mrb[0].mxu0
  %v579 = vpop.f32.mrb[0].mxu0
  %v580 = vadd.f32 %v116, %v579
  %v581 = vpop.f32.mrb[0].mxu0
  %582 = vmatprep.mubr.bf16.mxu0 %v315
  %583 = vmatmul.mubr.bf16.gmra.mrb[0].mxu0 %v314
  %v584 = vpop.f32.mrb[0].mxu0
  %v585 = vadd.f32 %v116, %v584
  %v586 = vpop.f32.mrb[0].mxu0
  %v587 = vpop.f32.mrb[0].mxu0
  %v588 = vadd.f32 %v116, %v587
  %v589 = vpop.f32.mrb[0].mxu0
  %590 = vmatprep.mubr.bf16.mxu0 %v317
  %591 = vmatmul.mubr.bf16.gmra.mrb[0].mxu0 %v316
  %v592 = vpop.f32.mrb[0].mxu0
  %v593 = vadd.f32 %v116, %v592
  %v594 = vpop.f32.mrb[0].mxu0
  %v595 = vpop.f32.mrb[0].mxu0
  %v596 = vadd.f32 %v116, %v595
  %v597 = vpop.f32.mrb[0].mxu0
  %598 = vmatprep.mubr.bf16.mxu0 %v319
  %599 = vmatmul.mubr.bf16.gmra.mrb[0].mxu0 %v318
  %v600 = vpop.f32.mrb[0].mxu0
  %v601 = vadd.f32 %v116, %v600
  %v602 = vpop.f32.mrb[0].mxu0
  %v603 = vpop.f32.mrb[0].mxu0
  %v604 = vadd.f32 %v116, %v603
  %v605 = vpop.f32.mrb[0].mxu0
  %606 = vmatprep.mubr.bf16.mxu0 %v321
  %607 = vmatmul.mubr.bf16.gmra.mrb[0].mxu0 %v320
  %v608 = vpop.f32.mrb[0].mxu0
  %v609 = vadd.f32 %v116, %v608
  %v610 = vpop.f32.mrb[0].mxu0
  %v611 = vpop.f32.mrb[0].mxu0
  %v612 = vadd.f32 %v116, %v611
  %v613 = vpop.f32.mrb[0].mxu0
  %614 = vmatprep.mubr.bf16.mxu0 %v323
  %615 = vmatmul.mubr.bf16.gmra.mrb[0].mxu0 %v322
  %v616 = vpop.f32.mrb[0].mxu0
  %v617 = vadd.f32 %v116, %v616
  %v618 = vpop.f32.mrb[0].mxu0
  %v619 = vpop.f32.mrb[0].mxu0
  %v620 = vadd.f32 %v116, %v619
  %v621 = vpop.f32.mrb[0].mxu0
  %622 = vmatprep.mubr.bf16.mxu0 %v325
  %623 = vmatmul.mubr.bf16.gmra.mrb[0].mxu0 %v324
  %v624 = vpop.f32.mrb[0].mxu0
  %v625 = vadd.f32 %v116, %v624
  %v626 = vpop.f32.mrb[0].mxu0
  %v627 = vpop.f32.mrb[0].mxu0
  %v628 = vadd.f32 %v116, %v627
  %v629 = vpop.f32.mrb[0].mxu0
  %630 = vmatprep.mubr.bf16.mxu0 %v327
  %631 = vmatmul.mubr.bf16.gmra.mrb[0].mxu0 %v326
  %v632 = vpop.f32.mrb[0].mxu0
  %v633 = vadd.f32 %v116, %v632
  %v634 = vpop.f32.mrb[0].mxu0
  %v635 = vpop.f32.mrb[0].mxu0
  %v636 = vadd.f32 %v116, %v635
  %v637 = vpop.f32.mrb[0].mxu0
  %638 = vmatprep.mubr.bf16.mxu0 %v329
  %639 = vmatmul.mubr.bf16.gmra.mrb[0].mxu0 %v328
  %v640 = vpop.f32.mrb[0].mxu0
  %v641 = vadd.f32 %v116, %v640
  %v642 = vpop.f32.mrb[0].mxu0
  %v643 = vpop.f32.mrb[0].mxu0
  %v644 = vadd.f32 %v116, %v643
  %v645 = vpop.f32.mrb[0].mxu0
  %646 = vmatprep.mubr.bf16.mxu0 %v331
  %647 = vmatmul.mubr.bf16.gmra.mrb[0].mxu0 %v330
  %v648 = vpop.f32.mrb[0].mxu0
  %v649 = vadd.f32 %v116, %v648
  %v650 = vpop.f32.mrb[0].mxu0
  %v651 = vpop.f32.mrb[0].mxu0
  %v652 = vadd.f32 %v116, %v651
  %v653 = vpop.f32.mrb[0].mxu0
  %654 = vmatprep.mubr.bf16.mxu0 %v333
  %655 = vmatmul.mubr.bf16.gmra.mrb[0].mxu0 %v332
  %v656 = vpop.f32.mrb[0].mxu0
  %v657 = vadd.f32 %v116, %v656
  %v658 = vpop.f32.mrb[0].mxu0
  %v659 = vpop.f32.mrb[0].mxu0
  %v660 = vadd.f32 %v116, %v659
  %v661 = vpop.f32.mrb[0].mxu0
  %662 = vmatprep.mubr.bf16.mxu0 %v335
  %663 = vmatmul.mubr.bf16.gmra.mrb[0].mxu0 %v334
  %v664 = vpop.f32.mrb[0].mxu0
  %v665 = vadd.f32 %v116, %v664
  %v666 = vpop.f32.mrb[0].mxu0
  %v667 = vpop.f32.mrb[0].mxu0
  %v668 = vadd.f32 %v116, %v667
  %v669 = vpop.f32.mrb[0].mxu0
  %670 = vmatprep.mubr.bf16.mxu0 %v337
  %671 = vmatmul.mubr.bf16.gmra.mrb[0].mxu0 %v336
  %v672 = vpop.f32.mrb[0].mxu0
  %v673 = vadd.f32 %v116, %v672
  %v674 = vpop.f32.mrb[0].mxu0
  %v675 = vpop.f32.mrb[0].mxu0
  %v676 = vadd.f32 %v116, %v675
  %v677 = vpop.f32.mrb[0].mxu0
  %678 = vmatprep.mubr.bf16.mxu0 %v339
  %679 = vmatmul.mubr.bf16.gmra.mrb[0].mxu0 %v338
  %v680 = vpop.f32.mrb[0].mxu0
  %v681 = vadd.f32 %v116, %v680
  %v682 = vpop.f32.mrb[0].mxu0
  %v683 = vpop.f32.mrb[0].mxu0
  %v684 = vadd.f32 %v116, %v683
  %v685 = vpop.f32.mrb[0].mxu0
  %686 = vmatprep.mubr.bf16.mxu0 %v341
  %687 = vmatmul.mubr.bf16.gmra.mrb[0].mxu0 %v340
  %v688 = vpop.f32.mrb[0].mxu0
  %v689 = vadd.f32 %v116, %v688
  %v690 = vpop.f32.mrb[0].mxu0
  %v691 = vpop.f32.mrb[0].mxu0
  %v692 = vadd.f32 %v116, %v691
  %v693 = vpop.f32.mrb[0].mxu0
  %694 = vmatprep.mubr.bf16.mxu0 %v343
  %695 = vmatmul.mubr.bf16.gmra.mrb[0].mxu0 %v342
  %v696 = vpop.f32.mrb[0].mxu0
  %v697 = vadd.f32 %v116, %v696
  %v698 = vpop.f32.mrb[0].mxu0
  %v699 = vpop.f32.mrb[0].mxu0
  %v700 = vadd.f32 %v116, %v699
  %v701 = vpop.f32.mrb[0].mxu0
  %702 = vmatprep.mubr.bf16.mxu0 %v345
  %703 = vmatmul.mubr.bf16.gmra.mrb[0].mxu0 %v344
  %v704 = vpop.f32.mrb[0].mxu0
  %v705 = vadd.f32 %v116, %v704
  %v706 = vpop.f32.mrb[0].mxu0
  %v707 = vpop.f32.mrb[0].mxu0
  %v708 = vadd.f32 %v116, %v707
  %v709 = vpop.f32.mrb[0].mxu0
  %710 = vmatprep.mubr.bf16.mxu0 %v347
  %711 = vmatmul.mubr.bf16.gmra.mrb[0].mxu0 %v346
  %v712 = vpop.f32.mrb[0].mxu0
  %v713 = vadd.f32 %v116, %v712
  %v714 = vpop.f32.mrb[0].mxu0
  %v715 = vpop.f32.mrb[0].mxu0
  %v716 = vadd.f32 %v116, %v715
  %v717 = vpop.f32.mrb[0].mxu0
  %718 = vmatprep.mubr.bf16.mxu0 %v349
  %719 = vmatmul.mubr.bf16.gmra.mrb[0].mxu0 %v348
  %v720 = vpop.f32.mrb[0].mxu0
  %v721 = vadd.f32 %v116, %v720
  %v722 = vpop.f32.mrb[0].mxu0
  %v723 = vpop.f32.mrb[0].mxu0
  %v724 = vadd.f32 %v116, %v723
  %v725 = vpop.f32.mrb[0].mxu0
  %726 = vmatprep.mubr.bf16.mxu0 %v351
  %727 = vmatmul.mubr.bf16.gmra.mrb[0].mxu0 %v350
  %v728 = vpop.f32.mrb[0].mxu0
  %v729 = vadd.f32 %v116, %v728
  %v730 = vpop.f32.mrb[0].mxu0
  %v731 = vpop.f32.mrb[0].mxu0
  %v732 = vadd.f32 %v116, %v731
  %v733 = vpop.f32.mrb[0].mxu0
  %734 = vmatprep.mubr.bf16.mxu0 %v353
  %735 = vmatmul.mubr.bf16.gmra.mrb[0].mxu0 %v352
  %v736 = vpop.f32.mrb[0].mxu0
  %v737 = vadd.f32 %v116, %v736
  %v738 = vpop.f32.mrb[0].mxu0
  %v739 = vpop.f32.mrb[0].mxu0
  %v740 = vadd.f32 %v116, %v739
  %v741 = vpop.f32.mrb[0].mxu0
  %742 = vmatprep.mubr.bf16.mxu0 %v355
  %743 = vmatmul.mubr.bf16.gmra.mrb[0].mxu0 %v354
  %v744 = vpop.f32.mrb[0].mxu0
  %v745 = vadd.f32 %v116, %v744
  %v746 = vpop.f32.mrb[0].mxu0
  %v747 = vpop.f32.mrb[0].mxu0
  %v748 = vadd.f32 %v116, %v747
  %v749 = vpop.f32.mrb[0].mxu0
  %750 = vmatprep.mubr.bf16.mxu0 %v357
  %751 = vmatmul.mubr.bf16.gmra.mrb[0].mxu0 %v356
  %v752 = vpop.f32.mrb[0].mxu0
  %v753 = vadd.f32 %v116, %v752
  %v754 = vpop.f32.mrb[0].mxu0
  %v755 = vpop.f32.mrb[0].mxu0
  %v756 = vadd.f32 %v116, %v755
  %v757 = vpop.f32.mrb[0].mxu0
  %758 = vmatprep.mubr.bf16.mxu0 %v359
  %759 = vmatmul.mubr.bf16.gmra.mrb[0].mxu0 %v358
  %v760 = vpop.f32.mrb[0].mxu0
  %v761 = vadd.f32 %v116, %v760
  %v762 = vpop.f32.mrb[0].mxu0
  %v763 = vpop.f32.mrb[0].mxu0
  %v764 = vadd.f32 %v116, %v763
  %v765 = vpop.f32.mrb[0].mxu0
  %766 = vmatprep.mubr.bf16.mxu0 %v361
  %767 = vmatmul.mubr.bf16.gmra.mrb[0].mxu0 %v360
  %v768 = vpop.f32.mrb[0].mxu0
  %v769 = vadd.f32 %v116, %v768
  %v770 = vpop.f32.mrb[0].mxu0
  %v771 = vpop.f32.mrb[0].mxu0
  %v772 = vadd.f32 %v116, %v771
  %v773 = vpop.f32.mrb[0].mxu0
  %774 = vmatprep.mubr.bf16.mxu0 %v363
  %775 = vmatmul.mubr.bf16.gmra.mrb[0].mxu0 %v362
  %v776 = vpop.f32.mrb[0].mxu0
  %v777 = vadd.f32 %v116, %v776
  %v778 = vpop.f32.mrb[0].mxu0
  %v779 = vpop.f32.mrb[0].mxu0
  %v780 = vadd.f32 %v116, %v779
  %v781 = vpop.f32.mrb[0].mxu0
  %782 = vmatprep.mubr.bf16.mxu0 %v365
  %783 = vmatmul.mubr.bf16.gmra.mrb[0].mxu0 %v364
  %v784 = vpop.f32.mrb[0].mxu0
  %v785 = vadd.f32 %v116, %v784
  %v786 = vpop.f32.mrb[0].mxu0
  %v787 = vpop.f32.mrb[0].mxu0
  %v788 = vadd.f32 %v116, %v787
  %v789 = vpop.f32.mrb[0].mxu0
  %790 = vmatprep.mubr.bf16.mxu0 %v367
  %791 = vmatmul.mubr.bf16.gmra.mrb[0].mxu0 %v366
  %v792 = vpop.f32.mrb[0].mxu0
  %v793 = vadd.f32 %v116, %v792
  %v794 = vpop.f32.mrb[0].mxu0
  %v795 = vpop.f32.mrb[0].mxu0
  %v796 = vadd.f32 %v116, %v795
  %v797 = vpop.f32.mrb[0].mxu0
  %798 = vmatprep.mubr.bf16.mxu0 %v369
  %799 = vmatmul.mubr.bf16.gmra.mrb[0].mxu0 %v368
  %v800 = vpop.f32.mrb[0].mxu0
  %v801 = vadd.f32 %v116, %v800
  %v802 = vpop.f32.mrb[0].mxu0
  %v803 = vpop.f32.mrb[0].mxu0
  %v804 = vadd.f32 %v116, %v803
  %v805 = vpop.f32.mrb[0].mxu0
  %806 = vmatprep.mubr.bf16.mxu0 %v371
  %807 = vmatmul.mubr.bf16.gmra.mrb[0].mxu0 %v370
  %v808 = vpop.f32.mrb[0].mxu0
  %v809 = vadd.f32 %v116, %v808
  %v810 = vpop.f32.mrb[0].mxu0
  %v811 = vpop.f32.mrb[0].mxu0
  %v812 = vadd.f32 %v116, %v811
  %v813 = vpop.f32.mrb[0].mxu0
  %814 = vmatprep.mubr.bf16.mxu0 %v373
  %815 = vmatmul.mubr.bf16.gmra.mrb[0].mxu0 %v372
  %v816 = vpop.f32.mrb[0].mxu0
  %v817 = vadd.f32 %v116, %v816
  %v818 = vpop.f32.mrb[0].mxu0
  %v819 = vpop.f32.mrb[0].mxu0
  %v820 = vadd.f32 %v116, %v819
  %v821 = vpop.f32.mrb[0].mxu0
  %822 = vdwg.mxu0
  %v823 = vmax.f32 %v569, 0.0
  %v824 = vmax.f32 %v572, 0.0
  %v825 = vmax.f32 %v577, 0.0
  %v826 = vmax.f32 %v580, 0.0
  %v827 = vmax.f32 %v585, 0.0
  %v828 = vmax.f32 %v588, 0.0
  %v829 = vmax.f32 %v593, 0.0
  %v830 = vmax.f32 %v596, 0.0
  %v831 = vmax.f32 %v601, 0.0
  %v832 = vmax.f32 %v604, 0.0
  %v833 = vmax.f32 %v609, 0.0
  %v834 = vmax.f32 %v612, 0.0
  %v835 = vmax.f32 %v617, 0.0
  %v836 = vmax.f32 %v620, 0.0
  %v837 = vmax.f32 %v625, 0.0
  %v838 = vmax.f32 %v628, 0.0
  %v839 = vmax.f32 %v633, 0.0
  %v840 = vmax.f32 %v636, 0.0
  %v841 = vmax.f32 %v641, 0.0
  %v842 = vmax.f32 %v644, 0.0
  %v843 = vmax.f32 %v649, 0.0
  %v844 = vmax.f32 %v652, 0.0
  %v845 = vmax.f32 %v657, 0.0
  %v846 = vmax.f32 %v660, 0.0
  %v847 = vmax.f32 %v665, 0.0
  %v848 = vmax.f32 %v668, 0.0
  %v849 = vmax.f32 %v673, 0.0
  %v850 = vmax.f32 %v676, 0.0
  %v851 = vmax.f32 %v681, 0.0
  %v852 = vmax.f32 %v684, 0.0
  %v853 = vmax.f32 %v689, 0.0
  %v854 = vmax.f32 %v692, 0.0
  %v855 = vmax.f32 %v697, 0.0
  %v856 = vmax.f32 %v700, 0.0
  %v857 = vmax.f32 %v705, 0.0
  %v858 = vmax.f32 %v708, 0.0
  %v859 = vmax.f32 %v713, 0.0
  %v860 = vmax.f32 %v716, 0.0
  %v861 = vmax.f32 %v721, 0.0
  %v862 = vmax.f32 %v724, 0.0
  %v863 = vmax.f32 %v729, 0.0
  %v864 = vmax.f32 %v732, 0.0
  %v865 = vmax.f32 %v737, 0.0
  %v866 = vmax.f32 %v740, 0.0
  %v867 = vmax.f32 %v745, 0.0
  %v868 = vmax.f32 %v748, 0.0
  %v869 = vmax.f32 %v753, 0.0
  %v870 = vmax.f32 %v756, 0.0
  %v871 = vmax.f32 %v761, 0.0
  %v872 = vmax.f32 %v764, 0.0
  %v873 = vmax.f32 %v769, 0.0
  %v874 = vmax.f32 %v772, 0.0
  %v875 = vmax.f32 %v777, 0.0
  %v876 = vmax.f32 %v780, 0.0
  %v877 = vmax.f32 %v785, 0.0
  %v878 = vmax.f32 %v788, 0.0
  %v879 = vmax.f32 %v793, 0.0
  %v880 = vmax.f32 %v796, 0.0
  %v881 = vmax.f32 %v801, 0.0
  %v882 = vmax.f32 %v804, 0.0
  %v883 = vmax.f32 %v809, 0.0
  %v884 = vmax.f32 %v812, 0.0
  %v885 = vmax.f32 %v817, 0.0
  %v886 = vmax.f32 %v820, 0.0
  %v887 = vpack.c.bf16 %v824, %v823
  %v888 = vpack.c.bf16 %v826, %v825
  %v889 = vpack.c.bf16 %v828, %v827
  %v890 = vpack.c.bf16 %v830, %v829
  %v891 = vpack.c.bf16 %v832, %v831
  %v892 = vpack.c.bf16 %v834, %v833
  %v893 = vpack.c.bf16 %v836, %v835
  %v894 = vpack.c.bf16 %v838, %v837
  %v895 = vpack.c.bf16 %v840, %v839
  %v896 = vpack.c.bf16 %v842, %v841
  %v897 = vpack.c.bf16 %v844, %v843
  %v898 = vpack.c.bf16 %v846, %v845
  %v899 = vpack.c.bf16 %v848, %v847
  %v900 = vpack.c.bf16 %v850, %v849
  %v901 = vpack.c.bf16 %v852, %v851
  %v902 = vpack.c.bf16 %v854, %v853
  %v903 = vpack.c.bf16 %v856, %v855
  %v904 = vpack.c.bf16 %v858, %v857
  %v905 = vpack.c.bf16 %v860, %v859
  %v906 = vpack.c.bf16 %v862, %v861
  %v907 = vpack.c.bf16 %v864, %v863
  %v908 = vpack.c.bf16 %v866, %v865
  %v909 = vpack.c.bf16 %v868, %v867
  %v910 = vpack.c.bf16 %v870, %v869
  %v911 = vpack.c.bf16 %v872, %v871
  %v912 = vpack.c.bf16 %v874, %v873
  %v913 = vpack.c.bf16 %v876, %v875
  %v914 = vpack.c.bf16 %v878, %v877
  %v915 = vpack.c.bf16 %v880, %v879
  %v916 = vpack.c.bf16 %v882, %v881
  %v917 = vpack.c.bf16 %v884, %v883
  %v918 = vpack.c.bf16 %v886, %v885
  %v951 = vunpack.c.l.b16 %v887
  %v952 = vunpack.c.h.b16 %v887
  %v953 = vunpack.c.l.b16 %v888
  %v954 = vunpack.c.h.b16 %v888
  %v955 = vunpack.c.l.b16 %v889
  %v956 = vunpack.c.h.b16 %v889
  %v957 = vunpack.c.l.b16 %v890
  %v958 = vunpack.c.h.b16 %v890
  %v959 = vunpack.c.l.b16 %v891
  %v960 = vunpack.c.h.b16 %v891
  %v961 = vunpack.c.l.b16 %v892
  %v962 = vunpack.c.h.b16 %v892
  %v963 = vunpack.c.l.b16 %v893
  %v964 = vunpack.c.h.b16 %v893
  %v965 = vunpack.c.l.b16 %v894
  %v966 = vunpack.c.h.b16 %v894
  %v967 = vunpack.c.l.b16 %v895
  %v968 = vunpack.c.h.b16 %v895
  %v969 = vunpack.c.l.b16 %v896
  %v970 = vunpack.c.h.b16 %v896
  %v971 = vunpack.c.l.b16 %v897
  %v972 = vunpack.c.h.b16 %v897
  %v973 = vunpack.c.l.b16 %v898
  %v974 = vunpack.c.h.b16 %v898
  %v975 = vunpack.c.l.b16 %v899
  %v976 = vunpack.c.h.b16 %v899
  %v977 = vunpack.c.l.b16 %v900
  %v978 = vunpack.c.h.b16 %v900
  %v979 = vunpack.c.l.b16 %v901
  %v980 = vunpack.c.h.b16 %v901
  %v981 = vunpack.c.l.b16 %v902
  %v982 = vunpack.c.h.b16 %v902
  %v983 = vunpack.c.l.b16 %v903
  %v984 = vunpack.c.h.b16 %v903
  %v985 = vunpack.c.l.b16 %v904
  %v986 = vunpack.c.h.b16 %v904
  %v987 = vunpack.c.l.b16 %v905
  %v988 = vunpack.c.h.b16 %v905
  %v989 = vunpack.c.l.b16 %v906
  %v990 = vunpack.c.h.b16 %v906
  %v991 = vunpack.c.l.b16 %v907
  %v992 = vunpack.c.h.b16 %v907
  %v993 = vunpack.c.l.b16 %v908
  %v994 = vunpack.c.h.b16 %v908
  %v995 = vunpack.c.l.b16 %v909
  %v996 = vunpack.c.h.b16 %v909
  %v997 = vunpack.c.l.b16 %v910
  %v998 = vunpack.c.h.b16 %v910
  %v999 = vunpack.c.l.b16 %v911
  %v1000 = vunpack.c.h.b16 %v911
  %v1001 = vunpack.c.l.b16 %v912
  %v1002 = vunpack.c.h.b16 %v912
  %v1003 = vunpack.c.l.b16 %v913
  %v1004 = vunpack.c.h.b16 %v913
  %v1005 = vunpack.c.l.b16 %v914
  %v1006 = vunpack.c.h.b16 %v914
  %v1007 = vunpack.c.l.b16 %v915
  %v1008 = vunpack.c.h.b16 %v915
  %v1009 = vunpack.c.l.b16 %v916
  %v1010 = vunpack.c.h.b16 %v916
  %v1011 = vunpack.c.l.b16 %v917
  %v1012 = vunpack.c.h.b16 %v917
  %v1013 = vunpack.c.l.b16 %v918
  %v1014 = vunpack.c.h.b16 %v918
  %v1015 = vpack.c.b16 %v951, %v951
  %v1016 = vpack.c.b16 %v952, %v952
  %v1017 = vpack.c.b16 %v953, %v953
  %v1018 = vpack.c.b16 %v954, %v954
  %v1019 = vpack.c.b16 %v955, %v955
  %v1020 = vpack.c.b16 %v956, %v956
  %v1021 = vpack.c.b16 %v957, %v957
  %v1022 = vpack.c.b16 %v958, %v958
  %v1023 = vpack.c.b16 %v959, %v959
  %v1024 = vpack.c.b16 %v960, %v960
  %v1025 = vpack.c.b16 %v961, %v961
  %v1026 = vpack.c.b16 %v962, %v962
  %v1027 = vpack.c.b16 %v963, %v963
  %v1028 = vpack.c.b16 %v964, %v964
  %v1029 = vpack.c.b16 %v965, %v965
  %v1030 = vpack.c.b16 %v966, %v966
  %v1031 = vpack.c.b16 %v967, %v967
  %v1032 = vpack.c.b16 %v968, %v968
  %v1033 = vpack.c.b16 %v969, %v969
  %v1034 = vpack.c.b16 %v970, %v970
  %v1035 = vpack.c.b16 %v971, %v971
  %v1036 = vpack.c.b16 %v972, %v972
  %v1037 = vpack.c.b16 %v973, %v973
  %v1038 = vpack.c.b16 %v974, %v974
  %v1039 = vpack.c.b16 %v975, %v975
  %v1040 = vpack.c.b16 %v976, %v976
  %v1041 = vpack.c.b16 %v977, %v977
  %v1042 = vpack.c.b16 %v978, %v978
  %v1043 = vpack.c.b16 %v979, %v979
  %v1044 = vpack.c.b16 %v980, %v980
  %v1045 = vpack.c.b16 %v981, %v981
  %v1046 = vpack.c.b16 %v982, %v982
  %v1047 = vpack.c.b16 %v983, %v983
  %v1048 = vpack.c.b16 %v984, %v984
  %v1049 = vpack.c.b16 %v985, %v985
  %v1050 = vpack.c.b16 %v986, %v986
  %v1051 = vpack.c.b16 %v987, %v987
  %v1052 = vpack.c.b16 %v988, %v988
  %v1053 = vpack.c.b16 %v989, %v989
  %v1054 = vpack.c.b16 %v990, %v990
  %v1055 = vpack.c.b16 %v991, %v991
  %v1056 = vpack.c.b16 %v992, %v992
  %v1057 = vpack.c.b16 %v993, %v993
  %v1058 = vpack.c.b16 %v994, %v994
  %v1059 = vpack.c.b16 %v995, %v995
  %v1060 = vpack.c.b16 %v996, %v996
  %v1061 = vpack.c.b16 %v997, %v997
  %v1062 = vpack.c.b16 %v998, %v998
  %v1063 = vpack.c.b16 %v999, %v999
  %v1064 = vpack.c.b16 %v1000, %v1000
  %v1065 = vpack.c.b16 %v1001, %v1001
  %v1066 = vpack.c.b16 %v1002, %v1002
  %v1067 = vpack.c.b16 %v1003, %v1003
  %v1068 = vpack.c.b16 %v1004, %v1004
  %v1069 = vpack.c.b16 %v1005, %v1005
  %v1070 = vpack.c.b16 %v1006, %v1006
  %v1071 = vpack.c.b16 %v1007, %v1007
  %v1072 = vpack.c.b16 %v1008, %v1008
  %v1073 = vpack.c.b16 %v1009, %v1009
  %v1074 = vpack.c.b16 %v1010, %v1010
  %v1075 = vpack.c.b16 %v1011, %v1011
  %v1076 = vpack.c.b16 %v1012, %v1012
  %v1077 = vpack.c.b16 %v1013, %v1013
  %v1078 = vpack.c.b16 %v1014, %v1014
  %vm1143 = vcmask 257024
  %1144 = vst.msk [vmem:[%s3] sm:$0xf] %vm1143, %v1015
  %1145 = vst.msk [vmem:[%s3 + $0x4] sm:$0xf] %vm1143, %v1016
  %1146 = vst.msk [vmem:[%s3 + $0x8] sm:$0xf] %vm1143, %v1017
  %1147 = vst.msk [vmem:[%s3 + $0xc] sm:$0xf] %vm1143, %v1018
  %1148 = vst.msk [vmem:[%s3 + $0x10] sm:$0xf] %vm1143, %v1019
  %1149 = vst.msk [vmem:[%s3 + $0x14] sm:$0xf] %vm1143, %v1020
  %1150 = vst.msk [vmem:[%s3 + $0x18] sm:$0xf] %vm1143, %v1021
  %1151 = vst.msk [vmem:[%s3 + $0x1c] sm:$0xf] %vm1143, %v1022
  %1152 = vst.msk [vmem:[%s3 + $0x20] sm:$0xf] %vm1143, %v1023
  %1153 = vst.msk [vmem:[%s3 + $0x24] sm:$0xf] %vm1143, %v1024
  %1154 = vst.msk [vmem:[%s3 + $0x28] sm:$0xf] %vm1143, %v1025
  %1155 = vst.msk [vmem:[%s3 + $0x2c] sm:$0xf] %vm1143, %v1026
  %1156 = vst.msk [vmem:[%s3 + $0x30] sm:$0xf] %vm1143, %v1027
  %1157 = vst.msk [vmem:[%s3 + $0x34] sm:$0xf] %vm1143, %v1028
  %1158 = vst.msk [vmem:[%s3 + $0x38] sm:$0xf] %vm1143, %v1029
  %1159 = vst.msk [vmem:[%s3 + $0x3c] sm:$0xf] %vm1143, %v1030
  %1160 = vst.msk [vmem:[%s3 + $0x40] sm:$0xf] %vm1143, %v1031
  %1161 = vst.msk [vmem:[%s3 + $0x44] sm:$0xf] %vm1143, %v1032
  %1162 = vst.msk [vmem:[%s3 + $0x48] sm:$0xf] %vm1143, %v1033
  %1163 = vst.msk [vmem:[%s3 + $0x4c] sm:$0xf] %vm1143, %v1034
  %1164 = vst.msk [vmem:[%s3 + $0x50] sm:$0xf] %vm1143, %v1035
  %1165 = vst.msk [vmem:[%s3 + $0x54] sm:$0xf] %vm1143, %v1036
  %1166 = vst.msk [vmem:[%s3 + $0x58] sm:$0xf] %vm1143, %v1037
  %1167 = vst.msk [vmem:[%s3 + $0x5c] sm:$0xf] %vm1143, %v1038
  %1168 = vst.msk [vmem:[%s3 + $0x60] sm:$0xf] %vm1143, %v1039
  %1169 = vst.msk [vmem:[%s3 + $0x64] sm:$0xf] %vm1143, %v1040
  %1170 = vst.msk [vmem:[%s3 + $0x68] sm:$0xf] %vm1143, %v1041
  %1171 = vst.msk [vmem:[%s3 + $0x6c] sm:$0xf] %vm1143, %v1042
  %1172 = vst.msk [vmem:[%s3 + $0x70] sm:$0xf] %vm1143, %v1043
  %1173 = vst.msk [vmem:[%s3 + $0x74] sm:$0xf] %vm1143, %v1044
  %1174 = vst.msk [vmem:[%s3 + $0x78] sm:$0xf] %vm1143, %v1045
  %1175 = vst.msk [vmem:[%s3 + $0x7c] sm:$0xf] %vm1143, %v1046
  %1176 = vst.msk [vmem:[%s3 + $0x80] sm:$0xf] %vm1143, %v1047
  %1177 = vst.msk [vmem:[%s3 + $0x84] sm:$0xf] %vm1143, %v1048
  %1178 = vst.msk [vmem:[%s3 + $0x88] sm:$0xf] %vm1143, %v1049
  %1179 = vst.msk [vmem:[%s3 + $0x8c] sm:$0xf] %vm1143, %v1050
  %1180 = vst.msk [vmem:[%s3 + $0x90] sm:$0xf] %vm1143, %v1051
  %1181 = vst.msk [vmem:[%s3 + $0x94] sm:$0xf] %vm1143, %v1052
  %1182 = vst.msk [vmem:[%s3 + $0x98] sm:$0xf] %vm1143, %v1053
  %1183 = vst.msk [vmem:[%s3 + $0x9c] sm:$0xf] %vm1143, %v1054
  %1184 = vst.msk [vmem:[%s3 + $0xa0] sm:$0xf] %vm1143, %v1055
  %1185 = vst.msk [vmem:[%s3 + $0xa4] sm:$0xf] %vm1143, %v1056
  %1186 = vst.msk [vmem:[%s3 + $0xa8] sm:$0xf] %vm1143, %v1057
  %1187 = vst.msk [vmem:[%s3 + $0xac] sm:$0xf] %vm1143, %v1058
  %1188 = vst.msk [vmem:[%s3 + $0xb0] sm:$0xf] %vm1143, %v1059
  %1189 = vst.msk [vmem:[%s3 + $0xb4] sm:$0xf] %vm1143, %v1060
  %1190 = vst.msk [vmem:[%s3 + $0xb8] sm:$0xf] %vm1143, %v1061
  %1191 = vst.msk [vmem:[%s3 + $0xbc] sm:$0xf] %vm1143, %v1062
  %1192 = vst.msk [vmem:[%s3 + $0xc0] sm:$0xf] %vm1143, %v1063
  %1193 = vst.msk [vmem:[%s3 + $0xc4] sm:$0xf] %vm1143, %v1064
  %1194 = vst.msk [vmem:[%s3 + $0xc8] sm:$0xf] %vm1143, %v1065
  %1195 = vst.msk [vmem:[%s3 + $0xcc] sm:$0xf] %vm1143, %v1066
  %1196 = vst.msk [vmem:[%s3 + $0xd0] sm:$0xf] %vm1143, %v1067
  %1197 = vst.msk [vmem:[%s3 + $0xd4] sm:$0xf] %vm1143, %v1068
  %1198 = vst.msk [vmem:[%s3 + $0xd8] sm:$0xf] %vm1143, %v1069
  %1199 = vst.msk [vmem:[%s3 + $0xdc] sm:$0xf] %vm1143, %v1070
  %1200 = vst.msk [vmem:[%s3 + $0xe0] sm:$0xf] %vm1143, %v1071
  %1201 = vst.msk [vmem:[%s3 + $0xe4] sm:$0xf] %vm1143, %v1072
  %1202 = vst.msk [vmem:[%s3 + $0xe8] sm:$0xf] %vm1143, %v1073
  %1203 = vst.msk [vmem:[%s3 + $0xec] sm:$0xf] %vm1143, %v1074
  %1204 = vst.msk [vmem:[%s3 + $0xf0] sm:$0xf] %vm1143, %v1075
  %1205 = vst.msk [vmem:[%s3 + $0xf4] sm:$0xf] %vm1143, %v1076
  %1206 = vst.msk [vmem:[%s3 + $0xf8] sm:$0xf] %vm1143, %v1077
  %1207 = vst.msk [vmem:[%s3 + $0xfc] sm:$0xf] %vm1143, %v1078
  // Predicated region
  $region14: #{encoder_forward.2} parent=0 // pred_check
    _
  $region15: #{encoder_forward.2} parent=0 // pred_check_branch
    %1209 = sbr.rel (0) target = $region17
  $region16: #{encoder_forward.2} parent=0 // pred_region
    _
  $region17: #{encoder_forward.2} parent=0 // pred_fallthru
    _
  // Predicated region
  $region18: #{encoder_forward.2} parent=0 // pred_check
    _
  $region19: #{encoder_forward.2} parent=0 // pred_check_branch
    %1211 = sbr.rel (0) target = $region21
  $region20: #{encoder_forward.2} parent=0 // pred_region
    _
  $region21: #{encoder_forward.2} parent=0 // pred_fallthru
    _

// kernel: encoder_forward.3
$region0: #{encoder_forward.3}
  #allocation0 [shape = 'u32[]', space=smem, size = 0x4, offset = 0x4, fixed_abs, tag = 'smem constant byte address 0x4 - core index']
  #allocation1 [shape = 'u32[144,128]{1,0:T(1,128)}', space=vmem, size = 0x12000, scoped, tag = 'internal scratch']
  %s0 = inlined_call_operand.vmem [shape: f32[9,1,128], index: 0, kind: input, shape index: {}]
  %s1 = inlined_call_operand.vmem [shape: bf16[512,128], index: 1, kind: input, shape index: {}]
  %s2 = inlined_call_operand.vmem [shape: bf16[32,512], index: 2, kind: input, shape index: {}]
  %s3 = inlined_call_operand.vmem [shape: f32[32,1], index: 3, kind: input, shape index: {}]
  %s4 = inlined_call_operand.vmem [shape: bf16[2,9,32,32], index: 4, kind: input, shape index: {}]
  %s5 = inlined_call_operand.vmem [shape: f32[2,32,1], index: 5, kind: input, shape index: {}]
  %s6 = inlined_call_operand.vmem [shape: bf16[2,32,32], index: 6, kind: input, shape index: {}]
  %s7 = inlined_call_operand.vmem [shape: f32[2,32,1], index: 7, kind: input, shape index: {}]
  %s8 = inlined_call_operand.vmem [shape: f32[32,128], index: 8, kind: output, shape index: {}]
  %s9 = sld [smem:[#allocation0]]
  $region42: #{encoder_forward.3} parent=0
    _
  %s11 = ssub.s32 1, %s9
  %s12 = scalar_select 0, %s11, %s9
  // Predicated region
  $region2: #{encoder_forward.3} parent=0 // pred_check
    _
  $region3: #{encoder_forward.3} parent=0 // pred_check_branch
    %14 = sbr.rel (0) target = $region5
  $region4: #{encoder_forward.3} parent=0 // pred_region
    _
  $region5: #{encoder_forward.3} parent=0 // pred_fallthru
    _
  // Predicated region
  $region6: #{encoder_forward.3} parent=0 // pred_check
    _
  $region7: #{encoder_forward.3} parent=0 // pred_check_branch
    %16 = sbr.rel (0) target = $region9
  $region8: #{encoder_forward.3} parent=0 // pred_region
    _
  $region9: #{encoder_forward.3} parent=0 // pred_fallthru
    _
  // Predicated region
  $region10: #{encoder_forward.3} parent=0 // pred_check
    _
  $region11: #{encoder_forward.3} parent=0 // pred_check_branch
    %18 = sbr.rel (0) target = $region13
  $region12: #{encoder_forward.3} parent=0 // pred_region
    _
  $region13: #{encoder_forward.3} parent=0 // pred_fallthru
    _
  // Predicated region
  $region14: #{encoder_forward.3} parent=0 // pred_check
    _
  $region15: #{encoder_forward.3} parent=0 // pred_check_branch
    %20 = sbr.rel (0) target = $region17
  $region16: #{encoder_forward.3} parent=0 // pred_region
    _
  $region17: #{encoder_forward.3} parent=0 // pred_fallthru
    _
  // Predicated region
  $region18: #{encoder_forward.3} parent=0 // pred_check
    _
  $region19: #{encoder_forward.3} parent=0 // pred_check_branch
    %22 = sbr.rel (0) target = $region21
  $region20: #{encoder_forward.3} parent=0 // pred_region
    _
  $region21: #{encoder_forward.3} parent=0 // pred_fallthru
    _
  // Predicated region
  $region22: #{encoder_forward.3} parent=0 // pred_check
    _
  $region23: #{encoder_forward.3} parent=0 // pred_check_branch
    %24 = sbr.rel (0) target = $region25
  $region24: #{encoder_forward.3} parent=0 // pred_region
    _
  $region25: #{encoder_forward.3} parent=0 // pred_fallthru
    _
  // Predicated region
  $region26: #{encoder_forward.3} parent=0 // pred_check
    _
  $region27: #{encoder_forward.3} parent=0 // pred_check_branch
    %26 = sbr.rel (0) target = $region29
  $region28: #{encoder_forward.3} parent=0 // pred_region
    _
  $region29: #{encoder_forward.3} parent=0 // pred_fallthru
    _
  // Predicated region
  $region30: #{encoder_forward.3} parent=0 // pred_check
    _
  $region31: #{encoder_forward.3} parent=0 // pred_check_branch
    %28 = sbr.rel (0) target = $region33
  $region32: #{encoder_forward.3} parent=0 // pred_region
    _
  $region33: #{encoder_forward.3} parent=0 // pred_fallthru
    _
  %v30 = vld [vmem:[%s2] sm:$0xff]
  %v31 = vld [vmem:[%s2 + $0x8] sm:$0xff]
  %v32 = vld [vmem:[%s2 + $0x10] sm:$0xff]
  %v33 = vld [vmem:[%s2 + $0x18] sm:$0xff]
  %v34 = vld [vmem:[%s2 + $0x20] sm:$0xff]
  %v35 = vld [vmem:[%s2 + $0x28] sm:$0xff]
  %v36 = vld [vmem:[%s2 + $0x30] sm:$0xff]
  %v37 = vld [vmem:[%s2 + $0x38] sm:$0xff]
  %v38 = vld [vmem:[%s1] sm:$0xf]
  %v39 = vld [vmem:[%s1 + $0x4] sm:$0xf]
  %v40 = vld [vmem:[%s1 + $0x8] sm:$0xf]
  %v41 = vld [vmem:[%s1 + $0xc] sm:$0xf]
  %v42 = vld [vmem:[%s1 + $0x10] sm:$0xf]
  %v43 = vld [vmem:[%s1 + $0x14] sm:$0xf]
  %v44 = vld [vmem:[%s1 + $0x18] sm:$0xf]
  %v45 = vld [vmem:[%s1 + $0x1c] sm:$0xf]
  %v46 = vld [vmem:[%s1 + $0x20] sm:$0xf]
  %v47 = vld [vmem:[%s1 + $0x24] sm:$0xf]
  %v48 = vld [vmem:[%s1 + $0x28] sm:$0xf]
  %v49 = vld [vmem:[%s1 + $0x2c] sm:$0xf]
  %v50 = vld [vmem:[%s1 + $0x30] sm:$0xf]
  %v51 = vld [vmem:[%s1 + $0x34] sm:$0xf]
  %v52 = vld [vmem:[%s1 + $0x38] sm:$0xf]
  %v53 = vld [vmem:[%s1 + $0x3c] sm:$0xf]
  %v54 = vld [vmem:[%s1 + $0x40] sm:$0xf]
  %v55 = vld [vmem:[%s1 + $0x44] sm:$0xf]
  %v56 = vld [vmem:[%s1 + $0x48] sm:$0xf]
  %v57 = vld [vmem:[%s1 + $0x4c] sm:$0xf]
  %v58 = vld [vmem:[%s1 + $0x50] sm:$0xf]
  %v59 = vld [vmem:[%s1 + $0x54] sm:$0xf]
  %v60 = vld [vmem:[%s1 + $0x58] sm:$0xf]
  %v61 = vld [vmem:[%s1 + $0x5c] sm:$0xf]
  %v62 = vld [vmem:[%s1 + $0x60] sm:$0xf]
  %v63 = vld [vmem:[%s1 + $0x64] sm:$0xf]
  %v64 = vld [vmem:[%s1 + $0x68] sm:$0xf]
  %v65 = vld [vmem:[%s1 + $0x6c] sm:$0xf]
  %v66 = vld [vmem:[%s1 + $0x70] sm:$0xf]
  %v67 = vld [vmem:[%s1 + $0x74] sm:$0xf]
  %v68 = vld [vmem:[%s1 + $0x78] sm:$0xf]
  %v69 = vld [vmem:[%s1 + $0x7c] sm:$0xf]
  %v70 = vld [vmem:[%s1 + $0x80] sm:$0xf]
  %v71 = vld [vmem:[%s1 + $0x84] sm:$0xf]
  %v72 = vld [vmem:[%s1 + $0x88] sm:$0xf]
  %v73 = vld [vmem:[%s1 + $0x8c] sm:$0xf]
  %v74 = vld [vmem:[%s1 + $0x90] sm:$0xf]
  %v75 = vld [vmem:[%s1 + $0x94] sm:$0xf]
  %v76 = vld [vmem:[%s1 + $0x98] sm:$0xf]
  %v77 = vld [vmem:[%s1 + $0x9c] sm:$0xf]
  %v78 = vld [vmem:[%s1 + $0xa0] sm:$0xf]
  %v79 = vld [vmem:[%s1 + $0xa4] sm:$0xf]
  %v80 = vld [vmem:[%s1 + $0xa8] sm:$0xf]
  %v81 = vld [vmem:[%s1 + $0xac] sm:$0xf]
  %v82 = vld [vmem:[%s1 + $0xb0] sm:$0xf]
  %v83 = vld [vmem:[%s1 + $0xb4] sm:$0xf]
  %v84 = vld [vmem:[%s1 + $0xb8] sm:$0xf]
  %v85 = vld [vmem:[%s1 + $0xbc] sm:$0xf]
  %v86 = vld [vmem:[%s1 + $0xc0] sm:$0xf]
  %v87 = vld [vmem:[%s1 + $0xc4] sm:$0xf]
  %v88 = vld [vmem:[%s1 + $0xc8] sm:$0xf]
  %v89 = vld [vmem:[%s1 + $0xcc] sm:$0xf]
  %v90 = vld [vmem:[%s1 + $0xd0] sm:$0xf]
  %v91 = vld [vmem:[%s1 + $0xd4] sm:$0xf]
  %v92 = vld [vmem:[%s1 + $0xd8] sm:$0xf]
  %v93 = vld [vmem:[%s1 + $0xdc] sm:$0xf]
  %v94 = vld [vmem:[%s1 + $0xe0] sm:$0xf]
  %v95 = vld [vmem:[%s1 + $0xe4] sm:$0xf]
  %v96 = vld [vmem:[%s1 + $0xe8] sm:$0xf]
  %v97 = vld [vmem:[%s1 + $0xec] sm:$0xf]
  %v98 = vld [vmem:[%s1 + $0xf0] sm:$0xf]
  %v99 = vld [vmem:[%s1 + $0xf4] sm:$0xf]
  %v100 = vld [vmem:[%s1 + $0xf8] sm:$0xf]
  %v101 = vld [vmem:[%s1 + $0xfc] sm:$0xf]
  %v102 = vld [vmem:[%s3] sm:$0xff]
  %v103 = vld [vmem:[%s3 + $0x8] sm:$0xff]
  %v104 = vld [vmem:[%s3 + $0x10] sm:$0xff]
  %v105 = vld [vmem:[%s3 + $0x18] sm:$0xff]
  %107 = vset.pattern.permute.xlu0 0
  %108 = vperm.xlu0 %107, %v102
  %v109 = vpop.permute.xlu0 %108
  %112 = vset.pattern.permute.xlu0 0
  %113 = vperm.xlu0 %112, %v103
  %v114 = vpop.permute.xlu0 %113
  %117 = vset.pattern.permute.xlu0 0
  %118 = vperm.xlu0 %117, %v104
  %v119 = vpop.permute.xlu0 %118
  %122 = vset.pattern.permute.xlu0 0
  %123 = vperm.xlu0 %122, %v105
  %v124 = vpop.permute.xlu0 %123
  %v134 = vunpack.c.l.b16 %v30
  %v135 = vunpack.c.h.b16 %v30
  %v136 = vunpack.c.l.b16 %v31
  %v137 = vunpack.c.h.b16 %v31
  %v138 = vunpack.c.l.b16 %v32
  %v139 = vunpack.c.h.b16 %v32
  %v140 = vunpack.c.l.b16 %v33
  %v141 = vunpack.c.h.b16 %v33
  %v142 = vunpack.c.l.b16 %v34
  %v143 = vunpack.c.h.b16 %v34
  %v144 = vunpack.c.l.b16 %v35
  %v145 = vunpack.c.h.b16 %v35
  %v146 = vunpack.c.l.b16 %v36
  %v147 = vunpack.c.h.b16 %v36
  %v148 = vunpack.c.l.b16 %v37
  %v149 = vunpack.c.h.b16 %v37
  %v150 = vpack.c.b16 %v138, %v134
  %v151 = vpack.c.b16 %v139, %v135
  %v152 = vpack.c.b16 %v140, %v136
  %v153 = vpack.c.b16 %v141, %v137
  %v154 = vpack.c.b16 %v146, %v142
  %v155 = vpack.c.b16 %v147, %v143
  %v156 = vpack.c.b16 %v148, %v144
  %v157 = vpack.c.b16 %v149, %v145
  %v230 = vunpack.c.l.b16 %v38
  %v231 = vunpack.c.l.b16 %v39
  %v232 = vunpack.c.l.b16 %v40
  %v233 = vunpack.c.l.b16 %v41
  %v234 = vunpack.c.l.b16 %v42
  %v235 = vunpack.c.l.b16 %v43
  %v236 = vunpack.c.l.b16 %v44
  %v237 = vunpack.c.l.b16 %v45
  %v238 = vunpack.c.l.b16 %v46
  %v239 = vunpack.c.l.b16 %v47
  %v240 = vunpack.c.l.b16 %v48
  %v241 = vunpack.c.l.b16 %v49
  %v242 = vunpack.c.l.b16 %v50
  %v243 = vunpack.c.l.b16 %v51
  %v244 = vunpack.c.l.b16 %v52
  %v245 = vunpack.c.l.b16 %v53
  %v246 = vunpack.c.l.b16 %v54
  %v247 = vunpack.c.l.b16 %v55
  %v248 = vunpack.c.l.b16 %v56
  %v249 = vunpack.c.l.b16 %v57
  %v250 = vunpack.c.l.b16 %v58
  %v251 = vunpack.c.l.b16 %v59
  %v252 = vunpack.c.l.b16 %v60
  %v253 = vunpack.c.l.b16 %v61
  %v254 = vunpack.c.l.b16 %v62
  %v255 = vunpack.c.l.b16 %v63
  %v256 = vunpack.c.l.b16 %v64
  %v257 = vunpack.c.l.b16 %v65
  %v258 = vunpack.c.l.b16 %v66
  %v259 = vunpack.c.l.b16 %v67
  %v260 = vunpack.c.l.b16 %v68
  %v261 = vunpack.c.l.b16 %v69
  %v262 = vunpack.c.l.b16 %v70
  %v263 = vunpack.c.l.b16 %v71
  %v264 = vunpack.c.l.b16 %v72
  %v265 = vunpack.c.l.b16 %v73
  %v266 = vunpack.c.l.b16 %v74
  %v267 = vunpack.c.l.b16 %v75
  %v268 = vunpack.c.l.b16 %v76
  %v269 = vunpack.c.l.b16 %v77
  %v270 = vunpack.c.l.b16 %v78
  %v271 = vunpack.c.l.b16 %v79
  %v272 = vunpack.c.l.b16 %v80
  %v273 = vunpack.c.l.b16 %v81
  %v274 = vunpack.c.l.b16 %v82
  %v275 = vunpack.c.l.b16 %v83
  %v276 = vunpack.c.l.b16 %v84
  %v277 = vunpack.c.l.b16 %v85
  %v278 = vunpack.c.l.b16 %v86
  %v279 = vunpack.c.l.b16 %v87
  %v280 = vunpack.c.l.b16 %v88
  %v281 = vunpack.c.l.b16 %v89
  %v282 = vunpack.c.l.b16 %v90
  %v283 = vunpack.c.l.b16 %v91
  %v284 = vunpack.c.l.b16 %v92
  %v285 = vunpack.c.l.b16 %v93
  %v286 = vunpack.c.l.b16 %v94
  %v287 = vunpack.c.l.b16 %v95
  %v288 = vunpack.c.l.b16 %v96
  %v289 = vunpack.c.l.b16 %v97
  %v290 = vunpack.c.l.b16 %v98
  %v291 = vunpack.c.l.b16 %v99
  %v292 = vunpack.c.l.b16 %v100
  %v293 = vunpack.c.l.b16 %v101
  %v294 = vpack.c.b16 %v231, %v230
  %v295 = vpack.c.b16 %v233, %v232
  %v296 = vpack.c.b16 %v235, %v234
  %v297 = vpack.c.b16 %v237, %v236
  %v298 = vpack.c.b16 %v239, %v238
  %v299 = vpack.c.b16 %v241, %v240
  %v300 = vpack.c.b16 %v243, %v242
  %v301 = vpack.c.b16 %v245, %v244
  %v302 = vpack.c.b16 %v247, %v246
  %v303 = vpack.c.b16 %v249, %v248
  %v304 = vpack.c.b16 %v251, %v250
  %v305 = vpack.c.b16 %v253, %v252
  %v306 = vpack.c.b16 %v255, %v254
  %v307 = vpack.c.b16 %v257, %v256
  %v308 = vpack.c.b16 %v259, %v258
  %v309 = vpack.c.b16 %v261, %v260
  %v310 = vpack.c.b16 %v263, %v262
  %v311 = vpack.c.b16 %v265, %v264
  %v312 = vpack.c.b16 %v267, %v266
  %v313 = vpack.c.b16 %v269, %v268
  %v314 = vpack.c.b16 %v271, %v270
  %v315 = vpack.c.b16 %v273, %v272
  %v316 = vpack.c.b16 %v275, %v274
  %v317 = vpack.c.b16 %v277, %v276
  %v318 = vpack.c.b16 %v279, %v278
  %v319 = vpack.c.b16 %v281, %v280
  %v320 = vpack.c.b16 %v283, %v282
  %v321 = vpack.c.b16 %v285, %v284
  %v322 = vpack.c.b16 %v287, %v286
  %v323 = vpack.c.b16 %v289, %v288
  %v324 = vpack.c.b16 %v291, %v290
  %v325 = vpack.c.b16 %v293, %v292
  %358 = vmatprep.subr.bf16.mxu0 0
  %359 = vmatpush1.bf16.msra.mxu0 %v294
  %360 = vmatprep.subr.bf16.mxu0 0
  %361 = vmatpush1.bf16.msra.mxu0 %v295
  %362 = vmatprep.subr.bf16.mxu0 0
  %363 = vmatpush1.bf16.msra.mxu0 %v296
  %364 = vmatprep.subr.bf16.mxu0 0
  %365 = vmatpush1.bf16.msra.mxu0 %v297
  %366 = vmatprep.subr.bf16.mxu0 0
  %367 = vmatpush1.bf16.msra.mxu0 %v298
  %368 = vmatprep.subr.bf16.mxu0 0
  %369 = vmatpush1.bf16.msra.mxu0 %v299
  %370 = vmatprep.subr.bf16.mxu0 0
  %371 = vmatpush1.bf16.msra.mxu0 %v300
  %372 = vmatprep.subr.bf16.mxu0 0
  %373 = vmatpush1.bf16.msra.mxu0 %v301
  %374 = vmatprep.subr.bf16.mxu0 0
  %375 = vmatpush1.bf16.msra.mxu0 %v302
  %376 = vmatprep.subr.bf16.mxu0 0
  %377 = vmatpush1.bf16.msra.mxu0 %v303
  %378 = vmatprep.subr.bf16.mxu0 0
  %379 = vmatpush1.bf16.msra.mxu0 %v304
  %380 = vmatprep.subr.bf16.mxu0 0
  %381 = vmatpush1.bf16.msra.mxu0 %v305
  %382 = vmatprep.subr.bf16.mxu0 0
  %383 = vmatpush1.bf16.msra.mxu0 %v306
  %384 = vmatprep.subr.bf16.mxu0 0
  %385 = vmatpush1.bf16.msra.mxu0 %v307
  %386 = vmatprep.subr.bf16.mxu0 0
  %387 = vmatpush1.bf16.msra.mxu0 %v308
  %388 = vmatprep.subr.bf16.mxu0 0
  %389 = vmatpush1.bf16.msra.mxu0 %v309
  %390 = vmatprep.mubr.bf16.mxu0 %v151
  %391 = vmatmul.mubr.bf16.gmra.mrb[0].mxu0 %v150
  %v392 = vpop.f32.mrb[0].mxu0
  %v393 = vadd.f32 %v109, %v392
  %v394 = vpop.f32.mrb[0].mxu0
  %v395 = vpop.f32.mrb[0].mxu0
  %v396 = vadd.f32 %v114, %v395
  %v397 = vpop.f32.mrb[0].mxu0
  %398 = vmatprep.mubr.bf16.mxu0 %v155
  %399 = vmatmul.mubr.bf16.gmra.mrb[0].mxu0 %v154
  %v400 = vpop.f32.mrb[0].mxu0
  %v401 = vadd.f32 %v119, %v400
  %v402 = vpop.f32.mrb[0].mxu0
  %v403 = vpop.f32.mrb[0].mxu0
  %v404 = vadd.f32 %v124, %v403
  %v405 = vpop.f32.mrb[0].mxu0
  %406 = vdwg.mxu0
  %407 = vmatprep.subr.bf16.mxu0 0
  %408 = vmatpush1.bf16.msra.mxu0 %v310
  %409 = vmatprep.subr.bf16.mxu0 0
  %410 = vmatpush1.bf16.msra.mxu0 %v311
  %411 = vmatprep.subr.bf16.mxu0 0
  %412 = vmatpush1.bf16.msra.mxu0 %v312
  %413 = vmatprep.subr.bf16.mxu0 0
  %414 = vmatpush1.bf16.msra.mxu0 %v313
  %415 = vmatprep.subr.bf16.mxu0 0
  %416 = vmatpush1.bf16.msra.mxu0 %v314
  %417 = vmatprep.subr.bf16.mxu0 0
  %418 = vmatpush1.bf16.msra.mxu0 %v315
  %419 = vmatprep.subr.bf16.mxu0 0
  %420 = vmatpush1.bf16.msra.mxu0 %v316
  %421 = vmatprep.subr.bf16.mxu0 0
  %422 = vmatpush1.bf16.msra.mxu0 %v317
  %423 = vmatprep.subr.bf16.mxu0 0
  %424 = vmatpush1.bf16.msra.mxu0 %v318
  %425 = vmatprep.subr.bf16.mxu0 0
  %426 = vmatpush1.bf16.msra.mxu0 %v319
  %427 = vmatprep.subr.bf16.mxu0 0
  %428 = vmatpush1.bf16.msra.mxu0 %v320
  %429 = vmatprep.subr.bf16.mxu0 0
  %430 = vmatpush1.bf16.msra.mxu0 %v321
  %431 = vmatprep.subr.bf16.mxu0 0
  %432 = vmatpush1.bf16.msra.mxu0 %v322
  %433 = vmatprep.subr.bf16.mxu0 0
  %434 = vmatpush1.bf16.msra.mxu0 %v323
  %435 = vmatprep.subr.bf16.mxu0 0
  %436 = vmatpush1.bf16.msra.mxu0 %v324
  %437 = vmatprep.subr.bf16.mxu0 0
  %438 = vmatpush1.bf16.msra.mxu0 %v325
  %439 = vmatprep.mubr.bf16.mxu0 %v153
  %440 = vmatmul.mubr.bf16.gmra.mrb[0].mxu0 %v152
  %v441 = vpop.f32.mrb[0].mxu0
  %v442 = vadd.f32 %v393, %v441
  %v443 = vpop.f32.mrb[0].mxu0
  %v444 = vpop.f32.mrb[0].mxu0
  %v445 = vadd.f32 %v396, %v444
  %v446 = vpop.f32.mrb[0].mxu0
  %447 = vmatprep.mubr.bf16.mxu0 %v157
  %448 = vmatmul.mubr.bf16.gmra.mrb[0].mxu0 %v156
  %v449 = vpop.f32.mrb[0].mxu0
  %v450 = vadd.f32 %v401, %v449
  %v451 = vpop.f32.mrb[0].mxu0
  %v452 = vpop.f32.mrb[0].mxu0
  %v453 = vadd.f32 %v404, %v452
  %v454 = vpop.f32.mrb[0].mxu0
  %455 = vdwg.mxu0
  %v456 = vld [vmem:[%s0] sm:$0x1]
  %s457 = scalar_lea.vmem %s0, 1
  %v458 = vld [vmem:[%s457] sm:$0x1]
  %s459 = scalar_lea.vmem %s0, 2
  %v460 = vld [vmem:[%s459] sm:$0x1]
  %s461 = scalar_lea.vmem %s0, 3
  %v462 = vld [vmem:[%s461] sm:$0x1]
  %s463 = scalar_lea.vmem %s0, 5
  %v464 = vld [vmem:[%s463] sm:$0x1]
  %s465 = scalar_lea.vmem %s0, 6
  %v466 = vld [vmem:[%s465] sm:$0x1]
  %s467 = scalar_lea.vmem %s0, 7
  %v468 = vld [vmem:[%s467] sm:$0x1]
  %s469 = scalar_lea.vmem %s0, 8
  %v470 = vld [vmem:[%s469] sm:$0x1]
  %v471 = vmax.f32 %v442, 0.0
  %v472 = vmax.f32 %v445, 0.0
  %v473 = vmax.f32 %v450, 0.0
  %v474 = vmax.f32 %v453, 0.0
  %475 = vrot.lane.b32.xlu0 %v471, 9
  %v476 = vpop.permute.xlu0 %475
  %477 = vrot.lane.b32.xlu0 %v472, 9
  %v478 = vpop.permute.xlu0 %477
  %479 = vrot.lane.b32.xlu0 %v473, 9
  %v480 = vpop.permute.xlu0 %479
  %481 = vrot.lane.b32.xlu0 %v474, 9
  %v482 = vpop.permute.xlu0 %481
  %v484 = vlaneseq
  %v485 = vshrl.u32 %v484, 7
  %v486 = vsub.s32 0, %v485
  %v487 = vrot.slane %v456, %v486
  %v489 = vmul.f32 %v476, %v487
  %v490 = vmul.f32 %v478, %v487
  %v491 = vmul.f32 %v480, %v487
  %v492 = vmul.f32 %v482, %v487
  %v493 = vld [vmem:[%s4] sm:$0xf]
  %v494 = vld [vmem:[%s4 + $0x4] sm:$0xf]
  %v495 = vld [vmem:[%s4 + $0x8] sm:$0xf]
  %v496 = vld [vmem:[%s4 + $0xc] sm:$0xf]
  %v497 = vpack.c.bf16 %v490, %v489
  %v498 = vpack.c.bf16 %v492, %v491
  %499 = vrot.lane.b32.xlu0 %v471, 8
  %v500 = vpop.permute.xlu0 %499
  %501 = vrot.lane.b32.xlu0 %v472, 8
  %v502 = vpop.permute.xlu0 %501
  %503 = vrot.lane.b32.xlu0 %v473, 8
  %v504 = vpop.permute.xlu0 %503
  %505 = vrot.lane.b32.xlu0 %v474, 8
  %v506 = vpop.permute.xlu0 %505
  %v508 = vlaneseq
  %v509 = vshrl.u32 %v508, 7
  %v510 = vsub.s32 0, %v509
  %v511 = vrot.slane %v458, %v510
  %v513 = vmul.f32 %v500, %v511
  %v514 = vmul.f32 %v502, %v511
  %v515 = vmul.f32 %v504, %v511
  %v516 = vmul.f32 %v506, %v511
  %s517 = scalar_lea.vmem %s4, 16
  %v518 = vld [vmem:[%s517] sm:$0xf]
  %v519 = vld [vmem:[%s517 + $0x4] sm:$0xf]
  %v520 = vld [vmem:[%s517 + $0x8] sm:$0xf]
  %v521 = vld [vmem:[%s517 + $0xc] sm:$0xf]
  %v522 = vpack.c.bf16 %v514, %v513
  %v523 = vpack.c.bf16 %v516, %v515
  %v528 = vunpack.c.l.b16 %v518
  %v529 = vunpack.c.l.b16 %v519
  %v530 = vunpack.c.l.b16 %v520
  %v531 = vunpack.c.l.b16 %v521
  %v532 = vpack.c.b16 %v529, %v528
  %v533 = vpack.c.b16 %v531, %v530
  %vm534 = vcmask 261120
  %v536 = vsel %vm534, %v532, 0
  %v539 = vsel %vm534, %v533, 0
  %541 = vmatprep.subr.bf16.mxu0 0
  %542 = vmatpush1.bf16.msra.mxu0 %v522
  %543 = vmatprep.subr.bf16.mxu0 0
  %544 = vmatpush1.bf16.msra.mxu0 %v523
  %545 = vmatprep.subr.bf16.mxu0 0
  %546 = vmatpush1.bf16.msra.mxu0 0
  %547 = vmatprep.subr.bf16.mxu0 0
  %548 = vmatpush1.bf16.msra.mxu0 0
  %549 = vmatprep.subr.bf16.mxu0 0
  %550 = vmatpush1.bf16.msra.mxu0 0
  %551 = vmatprep.subr.bf16.mxu0 0
  %552 = vmatpush1.bf16.msra.mxu0 0
  %553 = vmatprep.subr.bf16.mxu0 0
  %554 = vmatpush1.bf16.msra.mxu0 0
  %555 = vmatprep.subr.bf16.mxu0 0
  %556 = vmatpush1.bf16.msra.mxu0 0
  %557 = vmatprep.subr.bf16.mxu0 0
  %558 = vmatpush1.bf16.msra.mxu0 0
  %559 = vmatprep.subr.bf16.mxu0 0
  %560 = vmatpush1.bf16.msra.mxu0 0
  %561 = vmatprep.subr.bf16.mxu0 0
  %562 = vmatpush1.bf16.msra.mxu0 0
  %563 = vmatprep.subr.bf16.mxu0 0
  %564 = vmatpush1.bf16.msra.mxu0 0
  %565 = vmatprep.subr.bf16.mxu0 0
  %566 = vmatpush1.bf16.msra.mxu0 0
  %567 = vmatprep.subr.bf16.mxu0 0
  %568 = vmatpush1.bf16.msra.mxu0 0
  %569 = vmatprep.subr.bf16.mxu0 0
  %570 = vmatpush1.bf16.msra.mxu0 0
  %571 = vmatprep.subr.bf16.mxu0 0
  %572 = vmatpush1.bf16.msra.mxu0 0
  %573 = vmatprep.mubr.bf16.mxu0 0
  %574 = vmatmul.mubr.bf16.gmra.mrb[0].mxu0 %v536
  %v575 = vpop.f32.mrb[0].mxu0
  %v576 = vadd.f32 0.0, %v575
  %v577 = vpop.f32.mrb[0].mxu0
  %v578 = vpop.f32.mrb[0].mxu0
  %v579 = vadd.f32 0.0, %v578
  %v580 = vpop.f32.mrb[0].mxu0
  %581 = vmatprep.mubr.bf16.mxu0 0
  %582 = vmatmul.mubr.bf16.gmra.mrb[0].mxu0 %v539
  %v583 = vpop.f32.mrb[0].mxu0
  %v584 = vadd.f32 0.0, %v583
  %v585 = vpop.f32.mrb[0].mxu0
  %v586 = vpop.f32.mrb[0].mxu0
  %v587 = vadd.f32 0.0, %v586
  %v588 = vpop.f32.mrb[0].mxu0
  %589 = vdwg.mxu0
  %v594 = vunpack.c.l.b16 %v493
  %v595 = vunpack.c.l.b16 %v494
  %v596 = vunpack.c.l.b16 %v495
  %v597 = vunpack.c.l.b16 %v496
  %v598 = vpack.c.b16 %v595, %v594
  %v599 = vpack.c.b16 %v597, %v596
  %v601 = vsel %vm534, %v598, 0
  %v604 = vsel %vm534, %v599, 0
  %606 = vmatprep.subr.bf16.mxu0 0
  %607 = vmatpush1.bf16.msra.mxu0 %v497
  %608 = vmatprep.subr.bf16.mxu0 0
  %609 = vmatpush1.bf16.msra.mxu0 %v498
  %610 = vmatprep.subr.bf16.mxu0 0
  %611 = vmatpush1.bf16.msra.mxu0 0
  %612 = vmatprep.subr.bf16.mxu0 0
  %613 = vmatpush1.bf16.msra.mxu0 0
  %614 = vmatprep.subr.bf16.mxu0 0
  %615 = vmatpush1.bf16.msra.mxu0 0
  %616 = vmatprep.subr.bf16.mxu0 0
  %617 = vmatpush1.bf16.msra.mxu0 0
  %618 = vmatprep.subr.bf16.mxu0 0
  %619 = vmatpush1.bf16.msra.mxu0 0
  %620 = vmatprep.subr.bf16.mxu0 0
  %621 = vmatpush1.bf16.msra.mxu0 0
  %622 = vmatprep.subr.bf16.mxu0 0
  %623 = vmatpush1.bf16.msra.mxu0 0
  %624 = vmatprep.subr.bf16.mxu0 0
  %625 = vmatpush1.bf16.msra.mxu0 0
  %626 = vmatprep.subr.bf16.mxu0 0
  %627 = vmatpush1.bf16.msra.mxu0 0
  %628 = vmatprep.subr.bf16.mxu0 0
  %629 = vmatpush1.bf16.msra.mxu0 0
  %630 = vmatprep.subr.bf16.mxu0 0
  %631 = vmatpush1.bf16.msra.mxu0 0
  %632 = vmatprep.subr.bf16.mxu0 0
  %633 = vmatpush1.bf16.msra.mxu0 0
  %634 = vmatprep.subr.bf16.mxu0 0
  %635 = vmatpush1.bf16.msra.mxu0 0
  %636 = vmatprep.subr.bf16.mxu0 0
  %637 = vmatpush1.bf16.msra.mxu0 0
  %638 = vmatprep.mubr.bf16.mxu0 0
  %639 = vmatmul.mubr.bf16.gmra.mrb[0].mxu0 %v601
  %v640 = vpop.f32.mrb[0].mxu0
  %v641 = vadd.f32 %v576, %v640
  %v642 = vpop.f32.mrb[0].mxu0
  %v643 = vpop.f32.mrb[0].mxu0
  %v644 = vadd.f32 %v579, %v643
  %v645 = vpop.f32.mrb[0].mxu0
  %646 = vmatprep.mubr.bf16.mxu0 0
  %647 = vmatmul.mubr.bf16.gmra.mrb[0].mxu0 %v604
  %v648 = vpop.f32.mrb[0].mxu0
  %v649 = vadd.f32 %v584, %v648
  %v650 = vpop.f32.mrb[0].mxu0
  %v651 = vpop.f32.mrb[0].mxu0
  %v652 = vadd.f32 %v587, %v651
  %v653 = vpop.f32.mrb[0].mxu0
  %654 = vdwg.mxu0
  %655 = vrot.lane.b32.xlu0 %v471, 7
  %v656 = vpop.permute.xlu0 %655
  %657 = vrot.lane.b32.xlu0 %v472, 7
  %v658 = vpop.permute.xlu0 %657
  %659 = vrot.lane.b32.xlu0 %v473, 7
  %v660 = vpop.permute.xlu0 %659
  %661 = vrot.lane.b32.xlu0 %v474, 7
  %v662 = vpop.permute.xlu0 %661
  %v664 = vlaneseq
  %v665 = vshrl.u32 %v664, 7
  %v666 = vsub.s32 0, %v665
  %v667 = vrot.slane %v460, %v666
  %v669 = vmul.f32 %v656, %v667
  %v670 = vmul.f32 %v658, %v667
  %v671 = vmul.f32 %v660, %v667
  %v672 = vmul.f32 %v662, %v667
  %s673 = scalar_lea.vmem %s4, 32
  %v674 = vld [vmem:[%s673] sm:$0xf]
  %v675 = vld [vmem:[%s673 + $0x4] sm:$0xf]
  %v676 = vld [vmem:[%s673 + $0x8] sm:$0xf]
  %v677 = vld [vmem:[%s673 + $0xc] sm:$0xf]
  %v678 = vpack.c.bf16 %v670, %v669
  %v679 = vpack.c.bf16 %v672, %v671
  %v684 = vunpack.c.l.b16 %v674
  %v685 = vunpack.c.l.b16 %v675
  %v686 = vunpack.c.l.b16 %v676
  %v687 = vunpack.c.l.b16 %v677
  %v688 = vpack.c.b16 %v685, %v684
  %v689 = vpack.c.b16 %v687, %v686
  %v691 = vsel %vm534, %v688, 0
  %v694 = vsel %vm534, %v689, 0
  %696 = vmatprep.subr.bf16.mxu0 0
  %697 = vmatpush1.bf16.msra.mxu0 %v678
  %698 = vmatprep.subr.bf16.mxu0 0
  %699 = vmatpush1.bf16.msra.mxu0 %v679
  %700 = vmatprep.subr.bf16.mxu0 0
  %701 = vmatpush1.bf16.msra.mxu0 0
  %702 = vmatprep.subr.bf16.mxu0 0
  %703 = vmatpush1.bf16.msra.mxu0 0
  %704 = vmatprep.subr.bf16.mxu0 0
  %705 = vmatpush1.bf16.msra.mxu0 0
  %706 = vmatprep.subr.bf16.mxu0 0
  %707 = vmatpush1.bf16.msra.mxu0 0
  %708 = vmatprep.subr.bf16.mxu0 0
  %709 = vmatpush1.bf16.msra.mxu0 0
  %710 = vmatprep.subr.bf16.mxu0 0
  %711 = vmatpush1.bf16.msra.mxu0 0
  %712 = vmatprep.subr.bf16.mxu0 0
  %713 = vmatpush1.bf16.msra.mxu0 0
  %714 = vmatprep.subr.bf16.mxu0 0
  %715 = vmatpush1.bf16.msra.mxu0 0
  %716 = vmatprep.subr.bf16.mxu0 0
  %717 = vmatpush1.bf16.msra.mxu0 0
  %718 = vmatprep.subr.bf16.mxu0 0
  %719 = vmatpush1.bf16.msra.mxu0 0
  %720 = vmatprep.subr.bf16.mxu0 0
  %721 = vmatpush1.bf16.msra.mxu0 0
  %722 = vmatprep.subr.bf16.mxu0 0
  %723 = vmatpush1.bf16.msra.mxu0 0
  %724 = vmatprep.subr.bf16.mxu0 0
  %725 = vmatpush1.bf16.msra.mxu0 0
  %726 = vmatprep.subr.bf16.mxu0 0
  %727 = vmatpush1.bf16.msra.mxu0 0
  %728 = vmatprep.mubr.bf16.mxu0 0
  %729 = vmatmul.mubr.bf16.gmra.mrb[0].mxu0 %v691
  %v730 = vpop.f32.mrb[0].mxu0
  %v731 = vadd.f32 0.0, %v730
  %v732 = vpop.f32.mrb[0].mxu0
  %v733 = vpop.f32.mrb[0].mxu0
  %v734 = vadd.f32 0.0, %v733
  %v735 = vpop.f32.mrb[0].mxu0
  %736 = vmatprep.mubr.bf16.mxu0 0
  %737 = vmatmul.mubr.bf16.gmra.mrb[0].mxu0 %v694
  %v738 = vpop.f32.mrb[0].mxu0
  %v739 = vadd.f32 0.0, %v738
  %v740 = vpop.f32.mrb[0].mxu0
  %v741 = vpop.f32.mrb[0].mxu0
  %v742 = vadd.f32 0.0, %v741
  %v743 = vpop.f32.mrb[0].mxu0
  %744 = vdwg.mxu0
  %v745 = vadd.f32 %v641, %v731
  %v746 = vadd.f32 %v644, %v734
  %v747 = vadd.f32 %v649, %v739
  %v748 = vadd.f32 %v652, %v742
  %749 = vrot.lane.b32.xlu0 %v471, 1
  %v750 = vpop.permute.xlu0 %749
  %751 = vrot.lane.b32.xlu0 %v472, 1
  %v752 = vpop.permute.xlu0 %751
  %753 = vrot.lane.b32.xlu0 %v473, 1
  %v754 = vpop.permute.xlu0 %753
  %755 = vrot.lane.b32.xlu0 %v474, 1
  %v756 = vpop.permute.xlu0 %755
  %v758 = vlaneseq
  %v759 = vshrl.u32 %v758, 7
  %v760 = vsub.s32 0, %v759
  %v761 = vrot.slane %v462, %v760
  %v763 = vmul.f32 %v750, %v761
  %v764 = vmul.f32 %v752, %v761
  %v765 = vmul.f32 %v754, %v761
  %v766 = vmul.f32 %v756, %v761
  %s767 = scalar_lea.vmem %s4, 48
  %v768 = vld [vmem:[%s767] sm:$0xf]
  %v769 = vld [vmem:[%s767 + $0x4] sm:$0xf]
  %v770 = vld [vmem:[%s767 + $0x8] sm:$0xf]
  %v771 = vld [vmem:[%s767 + $0xc] sm:$0xf]
  %v772 = vpack.c.bf16 %v764, %v763
  %v773 = vpack.c.bf16 %v766, %v765
  %v778 = vunpack.c.l.b16 %v768
  %v779 = vunpack.c.l.b16 %v769
  %v780 = vunpack.c.l.b16 %v770
  %v781 = vunpack.c.l.b16 %v771
  %v782 = vpack.c.b16 %v779, %v778
  %v783 = vpack.c.b16 %v781, %v780
  %v785 = vsel %vm534, %v782, 0
  %v788 = vsel %vm534, %v783, 0
  %790 = vmatprep.subr.bf16.mxu0 0
  %791 = vmatpush1.bf16.msra.mxu0 %v772
  %792 = vmatprep.subr.bf16.mxu0 0
  %793 = vmatpush1.bf16.msra.mxu0 %v773
  %794 = vmatprep.subr.bf16.mxu0 0
  %795 = vmatpush1.bf16.msra.mxu0 0
  %796 = vmatprep.subr.bf16.mxu0 0
  %797 = vmatpush1.bf16.msra.mxu0 0
  %798 = vmatprep.subr.bf16.mxu0 0
  %799 = vmatpush1.bf16.msra.mxu0 0
  %800 = vmatprep.subr.bf16.mxu0 0
  %801 = vmatpush1.bf16.msra.mxu0 0
  %802 = vmatprep.subr.bf16.mxu0 0
  %803 = vmatpush1.bf16.msra.mxu0 0
  %804 = vmatprep.subr.bf16.mxu0 0
  %805 = vmatpush1.bf16.msra.mxu0 0
  %806 = vmatprep.subr.bf16.mxu0 0
  %807 = vmatpush1.bf16.msra.mxu0 0
  %808 = vmatprep.subr.bf16.mxu0 0
  %809 = vmatpush1.bf16.msra.mxu0 0
  %810 = vmatprep.subr.bf16.mxu0 0
  %811 = vmatpush1.bf16.msra.mxu0 0
  %812 = vmatprep.subr.bf16.mxu0 0
  %813 = vmatpush1.bf16.msra.mxu0 0
  %814 = vmatprep.subr.bf16.mxu0 0
  %815 = vmatpush1.bf16.msra.mxu0 0
  %816 = vmatprep.subr.bf16.mxu0 0
  %817 = vmatpush1.bf16.msra.mxu0 0
  %818 = vmatprep.subr.bf16.mxu0 0
  %819 = vmatpush1.bf16.msra.mxu0 0
  %820 = vmatprep.subr.bf16.mxu0 0
  %821 = vmatpush1.bf16.msra.mxu0 0
  %822 = vmatprep.mubr.bf16.mxu0 0
  %823 = vmatmul.mubr.bf16.gmra.mrb[0].mxu0 %v785
  %v824 = vpop.f32.mrb[0].mxu0
  %v825 = vadd.f32 0.0, %v824
  %v826 = vpop.f32.mrb[0].mxu0
  %v827 = vpop.f32.mrb[0].mxu0
  %v828 = vadd.f32 0.0, %v827
  %v829 = vpop.f32.mrb[0].mxu0
  %830 = vmatprep.mubr.bf16.mxu0 0
  %831 = vmatmul.mubr.bf16.gmra.mrb[0].mxu0 %v788
  %v832 = vpop.f32.mrb[0].mxu0
  %v833 = vadd.f32 0.0, %v832
  %v834 = vpop.f32.mrb[0].mxu0
  %v835 = vpop.f32.mrb[0].mxu0
  %v836 = vadd.f32 0.0, %v835
  %v837 = vpop.f32.mrb[0].mxu0
  %838 = vdwg.mxu0
  %v839 = vadd.f32 %v745, %v825
  %v840 = vadd.f32 %v746, %v828
  %v841 = vadd.f32 %v747, %v833
  %v842 = vadd.f32 %v748, %v836
  %s843 = scalar_lea.vmem %s4, 64
  %v844 = vld [vmem:[%s843] sm:$0xf]
  %v845 = vld [vmem:[%s843 + $0x4] sm:$0xf]
  %v846 = vld [vmem:[%s843 + $0x8] sm:$0xf]
  %v847 = vld [vmem:[%s843 + $0xc] sm:$0xf]
  %v848 = vpack.c.bf16 %v472, %v471
  %v849 = vpack.c.bf16 %v474, %v473
  %v854 = vunpack.c.l.b16 %v844
  %v855 = vunpack.c.l.b16 %v845
  %v856 = vunpack.c.l.b16 %v846
  %v857 = vunpack.c.l.b16 %v847
  %v858 = vpack.c.b16 %v855, %v854
  %v859 = vpack.c.b16 %v857, %v856
  %v861 = vsel %vm534, %v858, 0
  %v864 = vsel %vm534, %v859, 0
  %866 = vmatprep.subr.bf16.mxu0 0
  %867 = vmatpush1.bf16.msra.mxu0 %v848
  %868 = vmatprep.subr.bf16.mxu0 0
  %869 = vmatpush1.bf16.msra.mxu0 %v849
  %870 = vmatprep.subr.bf16.mxu0 0
  %871 = vmatpush1.bf16.msra.mxu0 0
  %872 = vmatprep.subr.bf16.mxu0 0
  %873 = vmatpush1.bf16.msra.mxu0 0
  %874 = vmatprep.subr.bf16.mxu0 0
  %875 = vmatpush1.bf16.msra.mxu0 0
  %876 = vmatprep.subr.bf16.mxu0 0
  %877 = vmatpush1.bf16.msra.mxu0 0
  %878 = vmatprep.subr.bf16.mxu0 0
  %879 = vmatpush1.bf16.msra.mxu0 0
  %880 = vmatprep.subr.bf16.mxu0 0
  %881 = vmatpush1.bf16.msra.mxu0 0
  %882 = vmatprep.subr.bf16.mxu0 0
  %883 = vmatpush1.bf16.msra.mxu0 0
  %884 = vmatprep.subr.bf16.mxu0 0
  %885 = vmatpush1.bf16.msra.mxu0 0
  %886 = vmatprep.subr.bf16.mxu0 0
  %887 = vmatpush1.bf16.msra.mxu0 0
  %888 = vmatprep.subr.bf16.mxu0 0
  %889 = vmatpush1.bf16.msra.mxu0 0
  %890 = vmatprep.subr.bf16.mxu0 0
  %891 = vmatpush1.bf16.msra.mxu0 0
  %892 = vmatprep.subr.bf16.mxu0 0
  %893 = vmatpush1.bf16.msra.mxu0 0
  %894 = vmatprep.subr.bf16.mxu0 0
  %895 = vmatpush1.bf16.msra.mxu0 0
  %896 = vmatprep.subr.bf16.mxu0 0
  %897 = vmatpush1.bf16.msra.mxu0 0
  %898 = vmatprep.mubr.bf16.mxu0 0
  %899 = vmatmul.mubr.bf16.gmra.mrb[0].mxu0 %v861
  %v900 = vpop.f32.mrb[0].mxu0
  %v901 = vadd.f32 0.0, %v900
  %v902 = vpop.f32.mrb[0].mxu0
  %v903 = vpop.f32.mrb[0].mxu0
  %v904 = vadd.f32 0.0, %v903
  %v905 = vpop.f32.mrb[0].mxu0
  %906 = vmatprep.mubr.bf16.mxu0 0
  %907 = vmatmul.mubr.bf16.gmra.mrb[0].mxu0 %v864
  %v908 = vpop.f32.mrb[0].mxu0
  %v909 = vadd.f32 0.0, %v908
  %v910 = vpop.f32.mrb[0].mxu0
  %v911 = vpop.f32.mrb[0].mxu0
  %v912 = vadd.f32 0.0, %v911
  %v913 = vpop.f32.mrb[0].mxu0
  %914 = vdwg.mxu0
  %v915 = vadd.f32 %v839, %v901
  %v916 = vadd.f32 %v840, %v904
  %v917 = vadd.f32 %v841, %v909
  %v918 = vadd.f32 %v842, %v912
  %919 = vrot.lane.b32.xlu0 %v471, 127
  %v920 = vpop.permute.xlu0 %919
  %921 = vrot.lane.b32.xlu0 %v472, 127
  %v922 = vpop.permute.xlu0 %921
  %923 = vrot.lane.b32.xlu0 %v473, 127
  %v924 = vpop.permute.xlu0 %923
  %925 = vrot.lane.b32.xlu0 %v474, 127
  %v926 = vpop.permute.xlu0 %925
  %v928 = vlaneseq
  %v929 = vshrl.u32 %v928, 7
  %v930 = vsub.s32 0, %v929
  %v931 = vrot.slane %v464, %v930
  %v933 = vmul.f32 %v920, %v931
  %v934 = vmul.f32 %v922, %v931
  %v935 = vmul.f32 %v924, %v931
  %v936 = vmul.f32 %v926, %v931
  %s937 = scalar_lea.vmem %s4, 80
  %v938 = vld [vmem:[%s937] sm:$0xf]
  %v939 = vld [vmem:[%s937 + $0x4] sm:$0xf]
  %v940 = vld [vmem:[%s937 + $0x8] sm:$0xf]
  %v941 = vld [vmem:[%s937 + $0xc] sm:$0xf]
  %v942 = vpack.c.bf16 %v934, %v933
  %v943 = vpack.c.bf16 %v936, %v935
  %v948 = vunpack.c.l.b16 %v938
  %v949 = vunpack.c.l.b16 %v939
  %v950 = vunpack.c.l.b16 %v940
  %v951 = vunpack.c.l.b16 %v941
  %v952 = vpack.c.b16 %v949, %v948
  %v953 = vpack.c.b16 %v951, %v950
  %v955 = vsel %vm534, %v952, 0
  %v958 = vsel %vm534, %v953, 0
  %960 = vmatprep.subr.bf16.mxu0 0
  %961 = vmatpush1.bf16.msra.mxu0 %v942
  %962 = vmatprep.subr.bf16.mxu0 0
  %963 = vmatpush1.bf16.msra.mxu0 %v943
  %964 = vmatprep.subr.bf16.mxu0 0
  %965 = vmatpush1.bf16.msra.mxu0 0
  %966 = vmatprep.subr.bf16.mxu0 0
  %967 = vmatpush1.bf16.msra.mxu0 0
  %968 = vmatprep.subr.bf16.mxu0 0
  %969 = vmatpush1.bf16.msra.mxu0 0
  %970 = vmatprep.subr.bf16.mxu0 0
  %971 = vmatpush1.bf16.msra.mxu0 0
  %972 = vmatprep.subr.bf16.mxu0 0
  %973 = vmatpush1.bf16.msra.mxu0 0
  %974 = vmatprep.subr.bf16.mxu0 0
  %975 = vmatpush1.bf16.msra.mxu0 0
  %976 = vmatprep.subr.bf16.mxu0 0
  %977 = vmatpush1.bf16.msra.mxu0 0
  %978 = vmatprep.subr.bf16.mxu0 0
  %979 = vmatpush1.bf16.msra.mxu0 0
  %980 = vmatprep.subr.bf16.mxu0 0
  %981 = vmatpush1.bf16.msra.mxu0 0
  %982 = vmatprep.subr.bf16.mxu0 0
  %983 = vmatpush1.bf16.msra.mxu0 0
  %984 = vmatprep.subr.bf16.mxu0 0
  %985 = vmatpush1.bf16.msra.mxu0 0
  %986 = vmatprep.subr.bf16.mxu0 0
  %987 = vmatpush1.bf16.msra.mxu0 0
  %988 = vmatprep.subr.bf16.mxu0 0
  %989 = vmatpush1.bf16.msra.mxu0 0
  %990 = vmatprep.subr.bf16.mxu0 0
  %991 = vmatpush1.bf16.msra.mxu0 0
  %992 = vmatprep.mubr.bf16.mxu0 0
  %993 = vmatmul.mubr.bf16.gmra.mrb[0].mxu0 %v955
  %v994 = vpop.f32.mrb[0].mxu0
  %v995 = vadd.f32 0.0, %v994
  %v996 = vpop.f32.mrb[0].mxu0
  %v997 = vpop.f32.mrb[0].mxu0
  %v998 = vadd.f32 0.0, %v997
  %v999 = vpop.f32.mrb[0].mxu0
  %1000 = vmatprep.mubr.bf16.mxu0 0
  %1001 = vmatmul.mubr.bf16.gmra.mrb[0].mxu0 %v958
  %v1002 = vpop.f32.mrb[0].mxu0
  %v1003 = vadd.f32 0.0, %v1002
  %v1004 = vpop.f32.mrb[0].mxu0
  %v1005 = vpop.f32.mrb[0].mxu0
  %v1006 = vadd.f32 0.0, %v1005
  %v1007 = vpop.f32.mrb[0].mxu0
  %1008 = vdwg.mxu0
  %v1009 = vadd.f32 %v915, %v995
  %v1010 = vadd.f32 %v916, %v998
  %v1011 = vadd.f32 %v917, %v1003
  %v1012 = vadd.f32 %v918, %v1006
  %1013 = vrot.lane.b32.xlu0 %v471, 121
  %v1014 = vpop.permute.xlu0 %1013
  %1015 = vrot.lane.b32.xlu0 %v472, 121
  %v1016 = vpop.permute.xlu0 %1015
  %1017 = vrot.lane.b32.xlu0 %v473, 121
  %v1018 = vpop.permute.xlu0 %1017
  %1019 = vrot.lane.b32.xlu0 %v474, 121
  %v1020 = vpop.permute.xlu0 %1019
  %v1022 = vlaneseq
  %v1023 = vshrl.u32 %v1022, 7
  %v1024 = vsub.s32 0, %v1023
  %v1025 = vrot.slane %v466, %v1024
  %v1027 = vmul.f32 %v1014, %v1025
  %v1028 = vmul.f32 %v1016, %v1025
  %v1029 = vmul.f32 %v1018, %v1025
  %v1030 = vmul.f32 %v1020, %v1025
  %s1031 = scalar_lea.vmem %s4, 96
  %v1032 = vld [vmem:[%s1031] sm:$0xf]
  %v1033 = vld [vmem:[%s1031 + $0x4] sm:$0xf]
  %v1034 = vld [vmem:[%s1031 + $0x8] sm:$0xf]
  %v1035 = vld [vmem:[%s1031 + $0xc] sm:$0xf]
  %v1036 = vpack.c.bf16 %v1028, %v1027
  %v1037 = vpack.c.bf16 %v1030, %v1029
  %v1042 = vunpack.c.l.b16 %v1032
  %v1043 = vunpack.c.l.b16 %v1033
  %v1044 = vunpack.c.l.b16 %v1034
  %v1045 = vunpack.c.l.b16 %v1035
  %v1046 = vpack.c.b16 %v1043, %v1042
  %v1047 = vpack.c.b16 %v1045, %v1044
  %v1049 = vsel %vm534, %v1046, 0
  %v1052 = vsel %vm534, %v1047, 0
  %1054 = vmatprep.subr.bf16.mxu0 0
  %1055 = vmatpush1.bf16.msra.mxu0 %v1036
  %1056 = vmatprep.subr.bf16.mxu0 0
  %1057 = vmatpush1.bf16.msra.mxu0 %v1037
  %1058 = vmatprep.subr.bf16.mxu0 0
  %1059 = vmatpush1.bf16.msra.mxu0 0
  %1060 = vmatprep.subr.bf16.mxu0 0
  %1061 = vmatpush1.bf16.msra.mxu0 0
  %1062 = vmatprep.subr.bf16.mxu0 0
  %1063 = vmatpush1.bf16.msra.mxu0 0
  %1064 = vmatprep.subr.bf16.mxu0 0
  %1065 = vmatpush1.bf16.msra.mxu0 0
  %1066 = vmatprep.subr.bf16.mxu0 0
  %1067 = vmatpush1.bf16.msra.mxu0 0
  %1068 = vmatprep.subr.bf16.mxu0 0
  %1069 = vmatpush1.bf16.msra.mxu0 0
  %1070 = vmatprep.subr.bf16.mxu0 0
  %1071 = vmatpush1.bf16.msra.mxu0 0
  %1072 = vmatprep.subr.bf16.mxu0 0
  %1073 = vmatpush1.bf16.msra.mxu0 0
  %1074 = vmatprep.subr.bf16.mxu0 0
  %1075 = vmatpush1.bf16.msra.mxu0 0
  %1076 = vmatprep.subr.bf16.mxu0 0
  %1077 = vmatpush1.bf16.msra.mxu0 0
  %1078 = vmatprep.subr.bf16.mxu0 0
  %1079 = vmatpush1.bf16.msra.mxu0 0
  %1080 = vmatprep.subr.bf16.mxu0 0
  %1081 = vmatpush1.bf16.msra.mxu0 0
  %1082 = vmatprep.subr.bf16.mxu0 0
  %1083 = vmatpush1.bf16.msra.mxu0 0
  %1084 = vmatprep.subr.bf16.mxu0 0
  %1085 = vmatpush1.bf16.msra.mxu0 0
  %1086 = vmatprep.mubr.bf16.mxu0 0
  %1087 = vmatmul.mubr.bf16.gmra.mrb[0].mxu0 %v1049
  %v1088 = vpop.f32.mrb[0].mxu0
  %v1089 = vadd.f32 0.0, %v1088
  %v1090 = vpop.f32.mrb[0].mxu0
  %v1091 = vpop.f32.mrb[0].mxu0
  %v1092 = vadd.f32 0.0, %v1091
  %v1093 = vpop.f32.mrb[0].mxu0
  %1094 = vmatprep.mubr.bf16.mxu0 0
  %1095 = vmatmul.mubr.bf16.gmra.mrb[0].mxu0 %v1052
  %v1096 = vpop.f32.mrb[0].mxu0
  %v1097 = vadd.f32 0.0, %v1096
  %v1098 = vpop.f32.mrb[0].mxu0
  %v1099 = vpop.f32.mrb[0].mxu0
  %v1100 = vadd.f32 0.0, %v1099
  %v1101 = vpop.f32.mrb[0].mxu0
  %1102 = vdwg.mxu0
  %v1103 = vadd.f32 %v1009, %v1089
  %v1104 = vadd.f32 %v1010, %v1092
  %v1105 = vadd.f32 %v1011, %v1097
  %v1106 = vadd.f32 %v1012, %v1100
  %1107 = vrot.lane.b32.xlu0 %v471, 120
  %v1108 = vpop.permute.xlu0 %1107
  %1109 = vrot.lane.b32.xlu0 %v472, 120
  %v1110 = vpop.permute.xlu0 %1109
  %1111 = vrot.lane.b32.xlu0 %v473, 120
  %v1112 = vpop.permute.xlu0 %1111
  %1113 = vrot.lane.b32.xlu0 %v474, 120
  %v1114 = vpop.permute.xlu0 %1113
  %v1116 = vlaneseq
  %v1117 = vshrl.u32 %v1116, 7
  %v1118 = vsub.s32 0, %v1117
  %v1119 = vrot.slane %v468, %v1118
  %v1121 = vmul.f32 %v1108, %v1119
  %v1122 = vmul.f32 %v1110, %v1119
  %v1123 = vmul.f32 %v1112, %v1119
  %v1124 = vmul.f32 %v1114, %v1119
  %s1125 = scalar_lea.vmem %s4, 112
  %v1126 = vld [vmem:[%s1125] sm:$0xf]
  %v1127 = vld [vmem:[%s1125 + $0x4] sm:$0xf]
  %v1128 = vld [vmem:[%s1125 + $0x8] sm:$0xf]
  %v1129 = vld [vmem:[%s1125 + $0xc] sm:$0xf]
  %v1130 = vpack.c.bf16 %v1122, %v1121
  %v1131 = vpack.c.bf16 %v1124, %v1123
  %v1136 = vunpack.c.l.b16 %v1126
  %v1137 = vunpack.c.l.b16 %v1127
  %v1138 = vunpack.c.l.b16 %v1128
  %v1139 = vunpack.c.l.b16 %v1129
  %v1140 = vpack.c.b16 %v1137, %v1136
  %v1141 = vpack.c.b16 %v1139, %v1138
  %v1143 = vsel %vm534, %v1140, 0
  %v1146 = vsel %vm534, %v1141, 0
  %1148 = vmatprep.subr.bf16.mxu0 0
  %1149 = vmatpush1.bf16.msra.mxu0 %v1130
  %1150 = vmatprep.subr.bf16.mxu0 0
  %1151 = vmatpush1.bf16.msra.mxu0 %v1131
  %1152 = vmatprep.subr.bf16.mxu0 0
  %1153 = vmatpush1.bf16.msra.mxu0 0
  %1154 = vmatprep.subr.bf16.mxu0 0
  %1155 = vmatpush1.bf16.msra.mxu0 0
  %1156 = vmatprep.subr.bf16.mxu0 0
  %1157 = vmatpush1.bf16.msra.mxu0 0
  %1158 = vmatprep.subr.bf16.mxu0 0
  %1159 = vmatpush1.bf16.msra.mxu0 0
  %1160 = vmatprep.subr.bf16.mxu0 0
  %1161 = vmatpush1.bf16.msra.mxu0 0
  %1162 = vmatprep.subr.bf16.mxu0 0
  %1163 = vmatpush1.bf16.msra.mxu0 0
  %1164 = vmatprep.subr.bf16.mxu0 0
  %1165 = vmatpush1.bf16.msra.mxu0 0
  %1166 = vmatprep.subr.bf16.mxu0 0
  %1167 = vmatpush1.bf16.msra.mxu0 0
  %1168 = vmatprep.subr.bf16.mxu0 0
  %1169 = vmatpush1.bf16.msra.mxu0 0
  %1170 = vmatprep.subr.bf16.mxu0 0
  %1171 = vmatpush1.bf16.msra.mxu0 0
  %1172 = vmatprep.subr.bf16.mxu0 0
  %1173 = vmatpush1.bf16.msra.mxu0 0
  %1174 = vmatprep.subr.bf16.mxu0 0
  %1175 = vmatpush1.bf16.msra.mxu0 0
  %1176 = vmatprep.subr.bf16.mxu0 0
  %1177 = vmatpush1.bf16.msra.mxu0 0
  %1178 = vmatprep.subr.bf16.mxu0 0
  %1179 = vmatpush1.bf16.msra.mxu0 0
  %1180 = vmatprep.mubr.bf16.mxu0 0
  %1181 = vmatmul.mubr.bf16.gmra.mrb[0].mxu0 %v1143
  %v1182 = vpop.f32.mrb[0].mxu0
  %v1183 = vadd.f32 0.0, %v1182
  %v1184 = vpop.f32.mrb[0].mxu0
  %v1185 = vpop.f32.mrb[0].mxu0
  %v1186 = vadd.f32 0.0, %v1185
  %v1187 = vpop.f32.mrb[0].mxu0
  %1188 = vmatprep.mubr.bf16.mxu0 0
  %1189 = vmatmul.mubr.bf16.gmra.mrb[0].mxu0 %v1146
  %v1190 = vpop.f32.mrb[0].mxu0
  %v1191 = vadd.f32 0.0, %v1190
  %v1192 = vpop.f32.mrb[0].mxu0
  %v1193 = vpop.f32.mrb[0].mxu0
  %v1194 = vadd.f32 0.0, %v1193
  %v1195 = vpop.f32.mrb[0].mxu0
  %1196 = vdwg.mxu0
  %v1197 = vadd.f32 %v1103, %v1183
  %v1198 = vadd.f32 %v1104, %v1186
  %v1199 = vadd.f32 %v1105, %v1191
  %v1200 = vadd.f32 %v1106, %v1194
  %1201 = vrot.lane.b32.xlu0 %v471, 119
  %v1202 = vpop.permute.xlu0 %1201
  %1203 = vrot.lane.b32.xlu0 %v472, 119
  %v1204 = vpop.permute.xlu0 %1203
  %1205 = vrot.lane.b32.xlu0 %v473, 119
  %v1206 = vpop.permute.xlu0 %1205
  %1207 = vrot.lane.b32.xlu0 %v474, 119
  %v1208 = vpop.permute.xlu0 %1207
  %v1210 = vlaneseq
  %v1211 = vshrl.u32 %v1210, 7
  %v1212 = vsub.s32 0, %v1211
  %v1213 = vrot.slane %v470, %v1212
  %v1215 = vmul.f32 %v1202, %v1213
  %v1216 = vmul.f32 %v1204, %v1213
  %v1217 = vmul.f32 %v1206, %v1213
  %v1218 = vmul.f32 %v1208, %v1213
  %s1219 = scalar_lea.vmem %s4, 128
  %v1220 = vld [vmem:[%s1219] sm:$0xf]
  %v1221 = vld [vmem:[%s1219 + $0x4] sm:$0xf]
  %v1222 = vld [vmem:[%s1219 + $0x8] sm:$0xf]
  %v1223 = vld [vmem:[%s1219 + $0xc] sm:$0xf]
  %v1224 = vpack.c.bf16 %v1216, %v1215
  %v1225 = vpack.c.bf16 %v1218, %v1217
  %v1230 = vunpack.c.l.b16 %v1220
  %v1231 = vunpack.c.l.b16 %v1221
  %v1232 = vunpack.c.l.b16 %v1222
  %v1233 = vunpack.c.l.b16 %v1223
  %v1234 = vpack.c.b16 %v1231, %v1230
  %v1235 = vpack.c.b16 %v1233, %v1232
  %v1237 = vsel %vm534, %v1234, 0
  %v1240 = vsel %vm534, %v1235, 0
  %1242 = vmatprep.subr.bf16.mxu0 0
  %1243 = vmatpush1.bf16.msra.mxu0 %v1224
  %1244 = vmatprep.subr.bf16.mxu0 0
  %1245 = vmatpush1.bf16.msra.mxu0 %v1225
  %1246 = vmatprep.subr.bf16.mxu0 0
  %1247 = vmatpush1.bf16.msra.mxu0 0
  %1248 = vmatprep.subr.bf16.mxu0 0
  %1249 = vmatpush1.bf16.msra.mxu0 0
  %1250 = vmatprep.subr.bf16.mxu0 0
  %1251 = vmatpush1.bf16.msra.mxu0 0
  %1252 = vmatprep.subr.bf16.mxu0 0
  %1253 = vmatpush1.bf16.msra.mxu0 0
  %1254 = vmatprep.subr.bf16.mxu0 0
  %1255 = vmatpush1.bf16.msra.mxu0 0
  %1256 = vmatprep.subr.bf16.mxu0 0
  %1257 = vmatpush1.bf16.msra.mxu0 0
  %1258 = vmatprep.subr.bf16.mxu0 0
  %1259 = vmatpush1.bf16.msra.mxu0 0
  %1260 = vmatprep.subr.bf16.mxu0 0
  %1261 = vmatpush1.bf16.msra.mxu0 0
  %1262 = vmatprep.subr.bf16.mxu0 0
  %1263 = vmatpush1.bf16.msra.mxu0 0
  %1264 = vmatprep.subr.bf16.mxu0 0
  %1265 = vmatpush1.bf16.msra.mxu0 0
  %1266 = vmatprep.subr.bf16.mxu0 0
  %1267 = vmatpush1.bf16.msra.mxu0 0
  %1268 = vmatprep.subr.bf16.mxu0 0
  %1269 = vmatpush1.bf16.msra.mxu0 0
  %1270 = vmatprep.subr.bf16.mxu0 0
  %1271 = vmatpush1.bf16.msra.mxu0 0
  %1272 = vmatprep.subr.bf16.mxu0 0
  %1273 = vmatpush1.bf16.msra.mxu0 0
  %1274 = vmatprep.mubr.bf16.mxu0 0
  %1275 = vmatmul.mubr.bf16.gmra.mrb[0].mxu0 %v1237
  %v1276 = vpop.f32.mrb[0].mxu0
  %v1277 = vadd.f32 0.0, %v1276
  %v1278 = vpop.f32.mrb[0].mxu0
  %v1279 = vpop.f32.mrb[0].mxu0
  %v1280 = vadd.f32 0.0, %v1279
  %v1281 = vpop.f32.mrb[0].mxu0
  %1282 = vmatprep.mubr.bf16.mxu0 0
  %1283 = vmatmul.mubr.bf16.gmra.mrb[0].mxu0 %v1240
  %v1284 = vpop.f32.mrb[0].mxu0
  %v1285 = vadd.f32 0.0, %v1284
  %v1286 = vpop.f32.mrb[0].mxu0
  %v1287 = vpop.f32.mrb[0].mxu0
  %v1288 = vadd.f32 0.0, %v1287
  %v1289 = vpop.f32.mrb[0].mxu0
  %1290 = vdwg.mxu0
  %v1291 = vadd.f32 %v1197, %v1277
  %v1292 = vadd.f32 %v1198, %v1280
  %v1293 = vadd.f32 %v1199, %v1285
  %v1294 = vadd.f32 %v1200, %v1288
  %v1295 = vld [vmem:[%s5] sm:$0xff]
  %v1296 = vld [vmem:[%s5 + $0x8] sm:$0xff]
  %v1297 = vld [vmem:[%s5 + $0x10] sm:$0xff]
  %v1298 = vld [vmem:[%s5 + $0x18] sm:$0xff]
  %1300 = vset.pattern.permute.xlu0 0
  %1301 = vperm.xlu0 %1300, %v1295
  %v1302 = vpop.permute.xlu0 %1301
  %1305 = vset.pattern.permute.xlu0 0
  %1306 = vperm.xlu0 %1305, %v1296
  %v1307 = vpop.permute.xlu0 %1306
  %1310 = vset.pattern.permute.xlu0 0
  %1311 = vperm.xlu0 %1310, %v1297
  %v1312 = vpop.permute.xlu0 %1311
  %1315 = vset.pattern.permute.xlu0 0
  %1316 = vperm.xlu0 %1315, %v1298
  %v1317 = vpop.permute.xlu0 %1316
  %v1319 = vadd.f32 %v1291, %v1302
  %v1320 = vadd.f32 %v1292, %v1307
  %v1321 = vadd.f32 %v1293, %v1312
  %v1322 = vadd.f32 %v1294, %v1317
  %v1323 = vmax.f32 %v1319, 0.0
  %v1324 = vmax.f32 %v1320, 0.0
  %v1325 = vmax.f32 %v1321, 0.0
  %v1326 = vmax.f32 %v1322, 0.0
  %v1327 = vpack.c.bf16 %v1324, %v1323
  %v1328 = vpack.c.bf16 %v1326, %v1325
  %v1329 = vld [vmem:[%s6] sm:$0xf]
  %v1330 = vld [vmem:[%s6 + $0x4] sm:$0xf]
  %v1331 = vld [vmem:[%s6 + $0x8] sm:$0xf]
  %v1332 = vld [vmem:[%s6 + $0xc] sm:$0xf]
  %v1337 = vunpack.c.l.b16 %v1329
  %v1338 = vunpack.c.l.b16 %v1330
  %v1339 = vunpack.c.l.b16 %v1331
  %v1340 = vunpack.c.l.b16 %v1332
  %v1341 = vpack.c.b16 %v1338, %v1337
  %v1342 = vpack.c.b16 %v1340, %v1339
  %v1344 = vsel %vm534, %v1341, 0
  %v1347 = vsel %vm534, %v1342, 0
  %1349 = vmatprep.subr.bf16.mxu0 0
  %1350 = vmatpush1.bf16.msra.mxu0 %v1327
  %1351 = vmatprep.subr.bf16.mxu0 0
  %1352 = vmatpush1.bf16.msra.mxu0 %v1328
  %1353 = vmatprep.subr.bf16.mxu0 0
  %1354 = vmatpush1.bf16.msra.mxu0 0
  %1355 = vmatprep.subr.bf16.mxu0 0
  %1356 = vmatpush1.bf16.msra.mxu0 0
  %1357 = vmatprep.subr.bf16.mxu0 0
  %1358 = vmatpush1.bf16.msra.mxu0 0
  %1359 = vmatprep.subr.bf16.mxu0 0
  %1360 = vmatpush1.bf16.msra.mxu0 0
  %1361 = vmatprep.subr.bf16.mxu0 0
  %1362 = vmatpush1.bf16.msra.mxu0 0
  %1363 = vmatprep.subr.bf16.mxu0 0
  %1364 = vmatpush1.bf16.msra.mxu0 0
  %1365 = vmatprep.subr.bf16.mxu0 0
  %1366 = vmatpush1.bf16.msra.mxu0 0
  %1367 = vmatprep.subr.bf16.mxu0 0
  %1368 = vmatpush1.bf16.msra.mxu0 0
  %1369 = vmatprep.subr.bf16.mxu0 0
  %1370 = vmatpush1.bf16.msra.mxu0 0
  %1371 = vmatprep.subr.bf16.mxu0 0
  %1372 = vmatpush1.bf16.msra.mxu0 0
  %1373 = vmatprep.subr.bf16.mxu0 0
  %1374 = vmatpush1.bf16.msra.mxu0 0
  %1375 = vmatprep.subr.bf16.mxu0 0
  %1376 = vmatpush1.bf16.msra.mxu0 0
  %1377 = vmatprep.subr.bf16.mxu0 0
  %1378 = vmatpush1.bf16.msra.mxu0 0
  %1379 = vmatprep.subr.bf16.mxu0 0
  %1380 = vmatpush1.bf16.msra.mxu0 0
  %1381 = vmatprep.mubr.bf16.mxu0 0
  %1382 = vmatmul.mubr.bf16.gmra.mrb[0].mxu0 %v1344
  %v1383 = vpop.f32.mrb[0].mxu0
  %v1384 = vadd.f32 0.0, %v1383
  %v1385 = vpop.f32.mrb[0].mxu0
  %v1386 = vpop.f32.mrb[0].mxu0
  %v1387 = vadd.f32 0.0, %v1386
  %v1388 = vpop.f32.mrb[0].mxu0
  %1389 = vmatprep.mubr.bf16.mxu0 0
  %1390 = vmatmul.mubr.bf16.gmra.mrb[0].mxu0 %v1347
  %v1391 = vpop.f32.mrb[0].mxu0
  %v1392 = vadd.f32 0.0, %v1391
  %v1393 = vpop.f32.mrb[0].mxu0
  %v1394 = vpop.f32.mrb[0].mxu0
  %v1395 = vadd.f32 0.0, %v1394
  %v1396 = vpop.f32.mrb[0].mxu0
  %1397 = vdwg.mxu0
  %v1398 = vadd.f32 %v442, %v1384
  %v1399 = vadd.f32 %v445, %v1387
  %v1400 = vadd.f32 %v450, %v1392
  %v1401 = vadd.f32 %v453, %v1395
  %v1402 = vld [vmem:[%s7] sm:$0xff]
  %v1403 = vld [vmem:[%s7 + $0x8] sm:$0xff]
  %v1404 = vld [vmem:[%s7 + $0x10] sm:$0xff]
  %v1405 = vld [vmem:[%s7 + $0x18] sm:$0xff]
  %1407 = vset.pattern.permute.xlu0 0
  %1408 = vperm.xlu0 %1407, %v1402
  %v1409 = vpop.permute.xlu0 %1408
  %1412 = vset.pattern.permute.xlu0 0
  %1413 = vperm.xlu0 %1412, %v1403
  %v1414 = vpop.permute.xlu0 %1413
  %1417 = vset.pattern.permute.xlu0 0
  %1418 = vperm.xlu0 %1417, %v1404
  %v1419 = vpop.permute.xlu0 %1418
  %1422 = vset.pattern.permute.xlu0 0
  %1423 = vperm.xlu0 %1422, %v1405
  %v1424 = vpop.permute.xlu0 %1423
  %v1426 = vadd.f32 %v1398, %v1409
  %v1427 = vadd.f32 %v1399, %v1414
  %v1428 = vadd.f32 %v1400, %v1419
  %v1429 = vadd.f32 %v1401, %v1424
  %v1430 = vmax.f32 %v1426, 0.0
  %v1431 = vmax.f32 %v1427, 0.0
  %v1432 = vmax.f32 %v1428, 0.0
  %v1433 = vmax.f32 %v1429, 0.0
  %1434 = vrot.lane.b32.xlu0 %v1430, 9
  %v1435 = vpop.permute.xlu0 %1434
  %1436 = vrot.lane.b32.xlu0 %v1431, 9
  %v1437 = vpop.permute.xlu0 %1436
  %1438 = vrot.lane.b32.xlu0 %v1432, 9
  %v1439 = vpop.permute.xlu0 %1438
  %1440 = vrot.lane.b32.xlu0 %v1433, 9
  %v1441 = vpop.permute.xlu0 %1440
  %v1442 = vmul.f32 %v1435, %v487
  %v1443 = vmul.f32 %v1437, %v487
  %v1444 = vmul.f32 %v1439, %v487
  %v1445 = vmul.f32 %v1441, %v487
  %s1446 = scalar_lea.vmem %s4, 144
  %v1447 = vld [vmem:[%s1446] sm:$0xf]
  %v1448 = vld [vmem:[%s1446 + $0x4] sm:$0xf]
  %v1449 = vld [vmem:[%s1446 + $0x8] sm:$0xf]
  %v1450 = vld [vmem:[%s1446 + $0xc] sm:$0xf]
  %v1451 = vpack.c.bf16 %v1443, %v1442
  %v1452 = vpack.c.bf16 %v1445, %v1444
  %1453 = vrot.lane.b32.xlu0 %v1430, 8
  %v1454 = vpop.permute.xlu0 %1453
  %1455 = vrot.lane.b32.xlu0 %v1431, 8
  %v1456 = vpop.permute.xlu0 %1455
  %1457 = vrot.lane.b32.xlu0 %v1432, 8
  %v1458 = vpop.permute.xlu0 %1457
  %1459 = vrot.lane.b32.xlu0 %v1433, 8
  %v1460 = vpop.permute.xlu0 %1459
  %v1461 = vmul.f32 %v1454, %v511
  %v1462 = vmul.f32 %v1456, %v511
  %v1463 = vmul.f32 %v1458, %v511
  %v1464 = vmul.f32 %v1460, %v511
  %s1465 = scalar_lea.vmem %s4, 160
  %v1466 = vld [vmem:[%s1465] sm:$0xf]
  %v1467 = vld [vmem:[%s1465 + $0x4] sm:$0xf]
  %v1468 = vld [vmem:[%s1465 + $0x8] sm:$0xf]
  %v1469 = vld [vmem:[%s1465 + $0xc] sm:$0xf]
  %v1470 = vpack.c.bf16 %v1462, %v1461
  %v1471 = vpack.c.bf16 %v1464, %v1463
  %v1476 = vunpack.c.l.b16 %v1466
  %v1477 = vunpack.c.l.b16 %v1467
  %v1478 = vunpack.c.l.b16 %v1468
  %v1479 = vunpack.c.l.b16 %v1469
  %v1480 = vpack.c.b16 %v1477, %v1476
  %v1481 = vpack.c.b16 %v1479, %v1478
  %v1483 = vsel %vm534, %v1480, 0
  %v1486 = vsel %vm534, %v1481, 0
  %1488 = vmatprep.subr.bf16.mxu0 0
  %1489 = vmatpush1.bf16.msra.mxu0 %v1470
  %1490 = vmatprep.subr.bf16.mxu0 0
  %1491 = vmatpush1.bf16.msra.mxu0 %v1471
  %1492 = vmatprep.subr.bf16.mxu0 0
  %1493 = vmatpush1.bf16.msra.mxu0 0
  %1494 = vmatprep.subr.bf16.mxu0 0
  %1495 = vmatpush1.bf16.msra.mxu0 0
  %1496 = vmatprep.subr.bf16.mxu0 0
  %1497 = vmatpush1.bf16.msra.mxu0 0
  %1498 = vmatprep.subr.bf16.mxu0 0
  %1499 = vmatpush1.bf16.msra.mxu0 0
  %1500 = vmatprep.subr.bf16.mxu0 0
  %1501 = vmatpush1.bf16.msra.mxu0 0
  %1502 = vmatprep.subr.bf16.mxu0 0
  %1503 = vmatpush1.bf16.msra.mxu0 0
  %1504 = vmatprep.subr.bf16.mxu0 0
  %1505 = vmatpush1.bf16.msra.mxu0 0
  %1506 = vmatprep.subr.bf16.mxu0 0
  %1507 = vmatpush1.bf16.msra.mxu0 0
  %1508 = vmatprep.subr.bf16.mxu0 0
  %1509 = vmatpush1.bf16.msra.mxu0 0
  %1510 = vmatprep.subr.bf16.mxu0 0
  %1511 = vmatpush1.bf16.msra.mxu0 0
  %1512 = vmatprep.subr.bf16.mxu0 0
  %1513 = vmatpush1.bf16.msra.mxu0 0
  %1514 = vmatprep.subr.bf16.mxu0 0
  %1515 = vmatpush1.bf16.msra.mxu0 0
  %1516 = vmatprep.subr.bf16.mxu0 0
  %1517 = vmatpush1.bf16.msra.mxu0 0
  %1518 = vmatprep.subr.bf16.mxu0 0
  %1519 = vmatpush1.bf16.msra.mxu0 0
  %1520 = vmatprep.mubr.bf16.mxu0 0
  %1521 = vmatmul.mubr.bf16.gmra.mrb[0].mxu0 %v1483
  %v1522 = vpop.f32.mrb[0].mxu0
  %v1523 = vadd.f32 0.0, %v1522
  %v1524 = vpop.f32.mrb[0].mxu0
  %v1525 = vpop.f32.mrb[0].mxu0
  %v1526 = vadd.f32 0.0, %v1525
  %v1527 = vpop.f32.mrb[0].mxu0
  %1528 = vmatprep.mubr.bf16.mxu0 0
  %1529 = vmatmul.mubr.bf16.gmra.mrb[0].mxu0 %v1486
  %v1530 = vpop.f32.mrb[0].mxu0
  %v1531 = vadd.f32 0.0, %v1530
  %v1532 = vpop.f32.mrb[0].mxu0
  %v1533 = vpop.f32.mrb[0].mxu0
  %v1534 = vadd.f32 0.0, %v1533
  %v1535 = vpop.f32.mrb[0].mxu0
  %1536 = vdwg.mxu0
  %v1541 = vunpack.c.l.b16 %v1447
  %v1542 = vunpack.c.l.b16 %v1448
  %v1543 = vunpack.c.l.b16 %v1449
  %v1544 = vunpack.c.l.b16 %v1450
  %v1545 = vpack.c.b16 %v1542, %v1541
  %v1546 = vpack.c.b16 %v1544, %v1543
  %v1548 = vsel %vm534, %v1545, 0
  %v1551 = vsel %vm534, %v1546, 0
  %1553 = vmatprep.subr.bf16.mxu0 0
  %1554 = vmatpush1.bf16.msra.mxu0 %v1451
  %1555 = vmatprep.subr.bf16.mxu0 0
  %1556 = vmatpush1.bf16.msra.mxu0 %v1452
  %1557 = vmatprep.subr.bf16.mxu0 0
  %1558 = vmatpush1.bf16.msra.mxu0 0
  %1559 = vmatprep.subr.bf16.mxu0 0
  %1560 = vmatpush1.bf16.msra.mxu0 0
  %1561 = vmatprep.subr.bf16.mxu0 0
  %1562 = vmatpush1.bf16.msra.mxu0 0
  %1563 = vmatprep.subr.bf16.mxu0 0
  %1564 = vmatpush1.bf16.msra.mxu0 0
  %1565 = vmatprep.subr.bf16.mxu0 0
  %1566 = vmatpush1.bf16.msra.mxu0 0
  %1567 = vmatprep.subr.bf16.mxu0 0
  %1568 = vmatpush1.bf16.msra.mxu0 0
  %1569 = vmatprep.subr.bf16.mxu0 0
  %1570 = vmatpush1.bf16.msra.mxu0 0
  %1571 = vmatprep.subr.bf16.mxu0 0
  %1572 = vmatpush1.bf16.msra.mxu0 0
  %1573 = vmatprep.subr.bf16.mxu0 0
  %1574 = vmatpush1.bf16.msra.mxu0 0
  %1575 = vmatprep.subr.bf16.mxu0 0
  %1576 = vmatpush1.bf16.msra.mxu0 0
  %1577 = vmatprep.subr.bf16.mxu0 0
  %1578 = vmatpush1.bf16.msra.mxu0 0
  %1579 = vmatprep.subr.bf16.mxu0 0
  %1580 = vmatpush1.bf16.msra.mxu0 0
  %1581 = vmatprep.subr.bf16.mxu0 0
  %1582 = vmatpush1.bf16.msra.mxu0 0
  %1583 = vmatprep.subr.bf16.mxu0 0
  %1584 = vmatpush1.bf16.msra.mxu0 0
  %1585 = vmatprep.mubr.bf16.mxu0 0
  %1586 = vmatmul.mubr.bf16.gmra.mrb[0].mxu0 %v1548
  %v1587 = vpop.f32.mrb[0].mxu0
  %v1588 = vadd.f32 %v1523, %v1587
  %v1589 = vpop.f32.mrb[0].mxu0
  %v1590 = vpop.f32.mrb[0].mxu0
  %v1591 = vadd.f32 %v1526, %v1590
  %v1592 = vpop.f32.mrb[0].mxu0
  %1593 = vmatprep.mubr.bf16.mxu0 0
  %1594 = vmatmul.mubr.bf16.gmra.mrb[0].mxu0 %v1551
  %v1595 = vpop.f32.mrb[0].mxu0
  %v1596 = vadd.f32 %v1531, %v1595
  %v1597 = vpop.f32.mrb[0].mxu0
  %v1598 = vpop.f32.mrb[0].mxu0
  %v1599 = vadd.f32 %v1534, %v1598
  %v1600 = vpop.f32.mrb[0].mxu0
  %1601 = vdwg.mxu0
  %1602 = vrot.lane.b32.xlu0 %v1430, 7
  %v1603 = vpop.permute.xlu0 %1602
  %1604 = vrot.lane.b32.xlu0 %v1431, 7
  %v1605 = vpop.permute.xlu0 %1604
  %1606 = vrot.lane.b32.xlu0 %v1432, 7
  %v1607 = vpop.permute.xlu0 %1606
  %1608 = vrot.lane.b32.xlu0 %v1433, 7
  %v1609 = vpop.permute.xlu0 %1608
  %v1610 = vmul.f32 %v1603, %v667
  %v1611 = vmul.f32 %v1605, %v667
  %v1612 = vmul.f32 %v1607, %v667
  %v1613 = vmul.f32 %v1609, %v667
  %s1614 = scalar_lea.vmem %s4, 176
  %v1615 = vld [vmem:[%s1614] sm:$0xf]
  %v1616 = vld [vmem:[%s1614 + $0x4] sm:$0xf]
  %v1617 = vld [vmem:[%s1614 + $0x8] sm:$0xf]
  %v1618 = vld [vmem:[%s1614 + $0xc] sm:$0xf]
  %v1619 = vpack.c.bf16 %v1611, %v1610
  %v1620 = vpack.c.bf16 %v1613, %v1612
  %v1625 = vunpack.c.l.b16 %v1615
  %v1626 = vunpack.c.l.b16 %v1616
  %v1627 = vunpack.c.l.b16 %v1617
  %v1628 = vunpack.c.l.b16 %v1618
  %v1629 = vpack.c.b16 %v1626, %v1625
  %v1630 = vpack.c.b16 %v1628, %v1627
  %v1632 = vsel %vm534, %v1629, 0
  %v1635 = vsel %vm534, %v1630, 0
  %1637 = vmatprep.subr.bf16.mxu0 0
  %1638 = vmatpush1.bf16.msra.mxu0 %v1619
  %1639 = vmatprep.subr.bf16.mxu0 0
  %1640 = vmatpush1.bf16.msra.mxu0 %v1620
  %1641 = vmatprep.subr.bf16.mxu0 0
  %1642 = vmatpush1.bf16.msra.mxu0 0
  %1643 = vmatprep.subr.bf16.mxu0 0
  %1644 = vmatpush1.bf16.msra.mxu0 0
  %1645 = vmatprep.subr.bf16.mxu0 0
  %1646 = vmatpush1.bf16.msra.mxu0 0
  %1647 = vmatprep.subr.bf16.mxu0 0
  %1648 = vmatpush1.bf16.msra.mxu0 0
  %1649 = vmatprep.subr.bf16.mxu0 0
  %1650 = vmatpush1.bf16.msra.mxu0 0
  %1651 = vmatprep.subr.bf16.mxu0 0
  %1652 = vmatpush1.bf16.msra.mxu0 0
  %1653 = vmatprep.subr.bf16.mxu0 0
  %1654 = vmatpush1.bf16.msra.mxu0 0
  %1655 = vmatprep.subr.bf16.mxu0 0
  %1656 = vmatpush1.bf16.msra.mxu0 0
  %1657 = vmatprep.subr.bf16.mxu0 0
  %1658 = vmatpush1.bf16.msra.mxu0 0
  %1659 = vmatprep.subr.bf16.mxu0 0
  %1660 = vmatpush1.bf16.msra.mxu0 0
  %1661 = vmatprep.subr.bf16.mxu0 0
  %1662 = vmatpush1.bf16.msra.mxu0 0
  %1663 = vmatprep.subr.bf16.mxu0 0
  %1664 = vmatpush1.bf16.msra.mxu0 0
  %1665 = vmatprep.subr.bf16.mxu0 0
  %1666 = vmatpush1.bf16.msra.mxu0 0
  %1667 = vmatprep.subr.bf16.mxu0 0
  %1668 = vmatpush1.bf16.msra.mxu0 0
  %1669 = vmatprep.mubr.bf16.mxu0 0
  %1670 = vmatmul.mubr.bf16.gmra.mrb[0].mxu0 %v1632
  %v1671 = vpop.f32.mrb[0].mxu0
  %v1672 = vadd.f32 0.0, %v1671
  %v1673 = vpop.f32.mrb[0].mxu0
  %v1674 = vpop.f32.mrb[0].mxu0
  %v1675 = vadd.f32 0.0, %v1674
  %v1676 = vpop.f32.mrb[0].mxu0
  %1677 = vmatprep.mubr.bf16.mxu0 0
  %1678 = vmatmul.mubr.bf16.gmra.mrb[0].mxu0 %v1635
  %v1679 = vpop.f32.mrb[0].mxu0
  %v1680 = vadd.f32 0.0, %v1679
  %v1681 = vpop.f32.mrb[0].mxu0
  %v1682 = vpop.f32.mrb[0].mxu0
  %v1683 = vadd.f32 0.0, %v1682
  %v1684 = vpop.f32.mrb[0].mxu0
  %1685 = vdwg.mxu0
  %v1686 = vadd.f32 %v1588, %v1672
  %v1687 = vadd.f32 %v1591, %v1675
  %v1688 = vadd.f32 %v1596, %v1680
  %v1689 = vadd.f32 %v1599, %v1683
  %1690 = vrot.lane.b32.xlu0 %v1430, 1
  %v1691 = vpop.permute.xlu0 %1690
  %1692 = vrot.lane.b32.xlu0 %v1431, 1
  %v1693 = vpop.permute.xlu0 %1692
  %1694 = vrot.lane.b32.xlu0 %v1432, 1
  %v1695 = vpop.permute.xlu0 %1694
  %1696 = vrot.lane.b32.xlu0 %v1433, 1
  %v1697 = vpop.permute.xlu0 %1696
  %v1698 = vmul.f32 %v1691, %v761
  %v1699 = vmul.f32 %v1693, %v761
  %v1700 = vmul.f32 %v1695, %v761
  %v1701 = vmul.f32 %v1697, %v761
  %s1702 = scalar_lea.vmem %s4, 192
  %v1703 = vld [vmem:[%s1702] sm:$0xf]
  %v1704 = vld [vmem:[%s1702 + $0x4] sm:$0xf]
  %v1705 = vld [vmem:[%s1702 + $0x8] sm:$0xf]
  %v1706 = vld [vmem:[%s1702 + $0xc] sm:$0xf]
  %v1707 = vpack.c.bf16 %v1699, %v1698
  %v1708 = vpack.c.bf16 %v1701, %v1700
  %v1713 = vunpack.c.l.b16 %v1703
  %v1714 = vunpack.c.l.b16 %v1704
  %v1715 = vunpack.c.l.b16 %v1705
  %v1716 = vunpack.c.l.b16 %v1706
  %v1717 = vpack.c.b16 %v1714, %v1713
  %v1718 = vpack.c.b16 %v1716, %v1715
  %v1720 = vsel %vm534, %v1717, 0
  %v1723 = vsel %vm534, %v1718, 0
  %1725 = vmatprep.subr.bf16.mxu0 0
  %1726 = vmatpush1.bf16.msra.mxu0 %v1707
  %1727 = vmatprep.subr.bf16.mxu0 0
  %1728 = vmatpush1.bf16.msra.mxu0 %v1708
  %1729 = vmatprep.subr.bf16.mxu0 0
  %1730 = vmatpush1.bf16.msra.mxu0 0
  %1731 = vmatprep.subr.bf16.mxu0 0
  %1732 = vmatpush1.bf16.msra.mxu0 0
  %1733 = vmatprep.subr.bf16.mxu0 0
  %1734 = vmatpush1.bf16.msra.mxu0 0
  %1735 = vmatprep.subr.bf16.mxu0 0
  %1736 = vmatpush1.bf16.msra.mxu0 0
  %1737 = vmatprep.subr.bf16.mxu0 0
  %1738 = vmatpush1.bf16.msra.mxu0 0
  %1739 = vmatprep.subr.bf16.mxu0 0
  %1740 = vmatpush1.bf16.msra.mxu0 0
  %1741 = vmatprep.subr.bf16.mxu0 0
  %1742 = vmatpush1.bf16.msra.mxu0 0
  %1743 = vmatprep.subr.bf16.mxu0 0
  %1744 = vmatpush1.bf16.msra.mxu0 0
  %1745 = vmatprep.subr.bf16.mxu0 0
  %1746 = vmatpush1.bf16.msra.mxu0 0
  %1747 = vmatprep.subr.bf16.mxu0 0
  %1748 = vmatpush1.bf16.msra.mxu0 0
  %1749 = vmatprep.subr.bf16.mxu0 0
  %1750 = vmatpush1.bf16.msra.mxu0 0
  %1751 = vmatprep.subr.bf16.mxu0 0
  %1752 = vmatpush1.bf16.msra.mxu0 0
  %1753 = vmatprep.subr.bf16.mxu0 0
  %1754 = vmatpush1.bf16.msra.mxu0 0
  %1755 = vmatprep.subr.bf16.mxu0 0
  %1756 = vmatpush1.bf16.msra.mxu0 0
  %1757 = vmatprep.mubr.bf16.mxu0 0
  %1758 = vmatmul.mubr.bf16.gmra.mrb[0].mxu0 %v1720
  %v1759 = vpop.f32.mrb[0].mxu0
  %v1760 = vadd.f32 0.0, %v1759
  %v1761 = vpop.f32.mrb[0].mxu0
  %v1762 = vpop.f32.mrb[0].mxu0
  %v1763 = vadd.f32 0.0, %v1762
  %v1764 = vpop.f32.mrb[0].mxu0
  %1765 = vmatprep.mubr.bf16.mxu0 0
  %1766 = vmatmul.mubr.bf16.gmra.mrb[0].mxu0 %v1723
  %v1767 = vpop.f32.mrb[0].mxu0
  %v1768 = vadd.f32 0.0, %v1767
  %v1769 = vpop.f32.mrb[0].mxu0
  %v1770 = vpop.f32.mrb[0].mxu0
  %v1771 = vadd.f32 0.0, %v1770
  %v1772 = vpop.f32.mrb[0].mxu0
  %1773 = vdwg.mxu0
  %v1774 = vadd.f32 %v1686, %v1760
  %v1775 = vadd.f32 %v1687, %v1763
  %v1776 = vadd.f32 %v1688, %v1768
  %v1777 = vadd.f32 %v1689, %v1771
  %s1778 = scalar_lea.vmem %s4, 208
  %v1779 = vld [vmem:[%s1778] sm:$0xf]
  %v1780 = vld [vmem:[%s1778 + $0x4] sm:$0xf]
  %v1781 = vld [vmem:[%s1778 + $0x8] sm:$0xf]
  %v1782 = vld [vmem:[%s1778 + $0xc] sm:$0xf]
  %v1783 = vpack.c.bf16 %v1431, %v1430
  %v1784 = vpack.c.bf16 %v1433, %v1432
  %v1789 = vunpack.c.l.b16 %v1779
  %v1790 = vunpack.c.l.b16 %v1780
  %v1791 = vunpack.c.l.b16 %v1781
  %v1792 = vunpack.c.l.b16 %v1782
  %v1793 = vpack.c.b16 %v1790, %v1789
  %v1794 = vpack.c.b16 %v1792, %v1791
  %v1796 = vsel %vm534, %v1793, 0
  %v1799 = vsel %vm534, %v1794, 0
  %1801 = vmatprep.subr.bf16.mxu0 0
  %1802 = vmatpush1.bf16.msra.mxu0 %v1783
  %1803 = vmatprep.subr.bf16.mxu0 0
  %1804 = vmatpush1.bf16.msra.mxu0 %v1784
  %1805 = vmatprep.subr.bf16.mxu0 0
  %1806 = vmatpush1.bf16.msra.mxu0 0
  %1807 = vmatprep.subr.bf16.mxu0 0
  %1808 = vmatpush1.bf16.msra.mxu0 0
  %1809 = vmatprep.subr.bf16.mxu0 0
  %1810 = vmatpush1.bf16.msra.mxu0 0
  %1811 = vmatprep.subr.bf16.mxu0 0
  %1812 = vmatpush1.bf16.msra.mxu0 0
  %1813 = vmatprep.subr.bf16.mxu0 0
  %1814 = vmatpush1.bf16.msra.mxu0 0
  %1815 = vmatprep.subr.bf16.mxu0 0
  %1816 = vmatpush1.bf16.msra.mxu0 0
  %1817 = vmatprep.subr.bf16.mxu0 0
  %1818 = vmatpush1.bf16.msra.mxu0 0
  %1819 = vmatprep.subr.bf16.mxu0 0
  %1820 = vmatpush1.bf16.msra.mxu0 0
  %1821 = vmatprep.subr.bf16.mxu0 0
  %1822 = vmatpush1.bf16.msra.mxu0 0
  %1823 = vmatprep.subr.bf16.mxu0 0
  %1824 = vmatpush1.bf16.msra.mxu0 0
  %1825 = vmatprep.subr.bf16.mxu0 0
  %1826 = vmatpush1.bf16.msra.mxu0 0
  %1827 = vmatprep.subr.bf16.mxu0 0
  %1828 = vmatpush1.bf16.msra.mxu0 0
  %1829 = vmatprep.subr.bf16.mxu0 0
  %1830 = vmatpush1.bf16.msra.mxu0 0
  %1831 = vmatprep.subr.bf16.mxu0 0
  %1832 = vmatpush1.bf16.msra.mxu0 0
  %1833 = vmatprep.mubr.bf16.mxu0 0
  %1834 = vmatmul.mubr.bf16.gmra.mrb[0].mxu0 %v1796
  %v1835 = vpop.f32.mrb[0].mxu0
  %v1836 = vadd.f32 0.0, %v1835
  %v1837 = vpop.f32.mrb[0].mxu0
  %v1838 = vpop.f32.mrb[0].mxu0
  %v1839 = vadd.f32 0.0, %v1838
  %v1840 = vpop.f32.mrb[0].mxu0
  %1841 = vmatprep.mubr.bf16.mxu0 0
  %1842 = vmatmul.mubr.bf16.gmra.mrb[0].mxu0 %v1799
  %v1843 = vpop.f32.mrb[0].mxu0
  %v1844 = vadd.f32 0.0, %v1843
  %v1845 = vpop.f32.mrb[0].mxu0
  %v1846 = vpop.f32.mrb[0].mxu0
  %v1847 = vadd.f32 0.0, %v1846
  %v1848 = vpop.f32.mrb[0].mxu0
  %1849 = vdwg.mxu0
  %v1850 = vadd.f32 %v1774, %v1836
  %v1851 = vadd.f32 %v1775, %v1839
  %v1852 = vadd.f32 %v1776, %v1844
  %v1853 = vadd.f32 %v1777, %v1847
  %1854 = vrot.lane.b32.xlu0 %v1430, 127
  %v1855 = vpop.permute.xlu0 %1854
  %1856 = vrot.lane.b32.xlu0 %v1431, 127
  %v1857 = vpop.permute.xlu0 %1856
  %1858 = vrot.lane.b32.xlu0 %v1432, 127
  %v1859 = vpop.permute.xlu0 %1858
  %1860 = vrot.lane.b32.xlu0 %v1433, 127
  %v1861 = vpop.permute.xlu0 %1860
  %v1862 = vmul.f32 %v1855, %v931
  %v1863 = vmul.f32 %v1857, %v931
  %v1864 = vmul.f32 %v1859, %v931
  %v1865 = vmul.f32 %v1861, %v931
  %s1866 = scalar_lea.vmem %s4, 224
  %v1867 = vld [vmem:[%s1866] sm:$0xf]
  %v1868 = vld [vmem:[%s1866 + $0x4] sm:$0xf]
  %v1869 = vld [vmem:[%s1866 + $0x8] sm:$0xf]
  %v1870 = vld [vmem:[%s1866 + $0xc] sm:$0xf]
  %v1871 = vpack.c.bf16 %v1863, %v1862
  %v1872 = vpack.c.bf16 %v1865, %v1864
  %v1877 = vunpack.c.l.b16 %v1867
  %v1878 = vunpack.c.l.b16 %v1868
  %v1879 = vunpack.c.l.b16 %v1869
  %v1880 = vunpack.c.l.b16 %v1870
  %v1881 = vpack.c.b16 %v1878, %v1877
  %v1882 = vpack.c.b16 %v1880, %v1879
  %v1884 = vsel %vm534, %v1881, 0
  %v1887 = vsel %vm534, %v1882, 0
  %1889 = vmatprep.subr.bf16.mxu0 0
  %1890 = vmatpush1.bf16.msra.mxu0 %v1871
  %1891 = vmatprep.subr.bf16.mxu0 0
  %1892 = vmatpush1.bf16.msra.mxu0 %v1872
  %1893 = vmatprep.subr.bf16.mxu0 0
  %1894 = vmatpush1.bf16.msra.mxu0 0
  %1895 = vmatprep.subr.bf16.mxu0 0
  %1896 = vmatpush1.bf16.msra.mxu0 0
  %1897 = vmatprep.subr.bf16.mxu0 0
  %1898 = vmatpush1.bf16.msra.mxu0 0
  %1899 = vmatprep.subr.bf16.mxu0 0
  %1900 = vmatpush1.bf16.msra.mxu0 0
  %1901 = vmatprep.subr.bf16.mxu0 0
  %1902 = vmatpush1.bf16.msra.mxu0 0
  %1903 = vmatprep.subr.bf16.mxu0 0
  %1904 = vmatpush1.bf16.msra.mxu0 0
  %1905 = vmatprep.subr.bf16.mxu0 0
  %1906 = vmatpush1.bf16.msra.mxu0 0
  %1907 = vmatprep.subr.bf16.mxu0 0
  %1908 = vmatpush1.bf16.msra.mxu0 0
  %1909 = vmatprep.subr.bf16.mxu0 0
  %1910 = vmatpush1.bf16.msra.mxu0 0
  %1911 = vmatprep.subr.bf16.mxu0 0
  %1912 = vmatpush1.bf16.msra.mxu0 0
  %1913 = vmatprep.subr.bf16.mxu0 0
  %1914 = vmatpush1.bf16.msra.mxu0 0
  %1915 = vmatprep.subr.bf16.mxu0 0
  %1916 = vmatpush1.bf16.msra.mxu0 0
  %1917 = vmatprep.subr.bf16.mxu0 0
  %1918 = vmatpush1.bf16.msra.mxu0 0
  %1919 = vmatprep.subr.bf16.mxu0 0
  %1920 = vmatpush1.bf16.msra.mxu0 0
  %1921 = vmatprep.mubr.bf16.mxu0 0
  %1922 = vmatmul.mubr.bf16.gmra.mrb[0].mxu0 %v1884
  %v1923 = vpop.f32.mrb[0].mxu0
  %v1924 = vadd.f32 0.0, %v1923
  %v1925 = vpop.f32.mrb[0].mxu0
  %v1926 = vpop.f32.mrb[0].mxu0
  %v1927 = vadd.f32 0.0, %v1926
  %v1928 = vpop.f32.mrb[0].mxu0
  %1929 = vmatprep.mubr.bf16.mxu0 0
  %1930 = vmatmul.mubr.bf16.gmra.mrb[0].mxu0 %v1887
  %v1931 = vpop.f32.mrb[0].mxu0
  %v1932 = vadd.f32 0.0, %v1931
  %v1933 = vpop.f32.mrb[0].mxu0
  %v1934 = vpop.f32.mrb[0].mxu0
  %v1935 = vadd.f32 0.0, %v1934
  %v1936 = vpop.f32.mrb[0].mxu0
  %1937 = vdwg.mxu0
  %v1938 = vadd.f32 %v1850, %v1924
  %v1939 = vadd.f32 %v1851, %v1927
  %v1940 = vadd.f32 %v1852, %v1932
  %v1941 = vadd.f32 %v1853, %v1935
  %1942 = vrot.lane.b32.xlu0 %v1430, 121
  %v1943 = vpop.permute.xlu0 %1942
  %1944 = vrot.lane.b32.xlu0 %v1431, 121
  %v1945 = vpop.permute.xlu0 %1944
  %1946 = vrot.lane.b32.xlu0 %v1432, 121
  %v1947 = vpop.permute.xlu0 %1946
  %1948 = vrot.lane.b32.xlu0 %v1433, 121
  %v1949 = vpop.permute.xlu0 %1948
  %v1950 = vmul.f32 %v1943, %v1025
  %v1951 = vmul.f32 %v1945, %v1025
  %v1952 = vmul.f32 %v1947, %v1025
  %v1953 = vmul.f32 %v1949, %v1025
  %s1954 = scalar_lea.vmem %s4, 240
  %v1955 = vld [vmem:[%s1954] sm:$0xf]
  %v1956 = vld [vmem:[%s1954 + $0x4] sm:$0xf]
  %v1957 = vld [vmem:[%s1954 + $0x8] sm:$0xf]
  %v1958 = vld [vmem:[%s1954 + $0xc] sm:$0xf]
  %v1959 = vpack.c.bf16 %v1951, %v1950
  %v1960 = vpack.c.bf16 %v1953, %v1952
  %v1965 = vunpack.c.l.b16 %v1955
  %v1966 = vunpack.c.l.b16 %v1956
  %v1967 = vunpack.c.l.b16 %v1957
  %v1968 = vunpack.c.l.b16 %v1958
  %v1969 = vpack.c.b16 %v1966, %v1965
  %v1970 = vpack.c.b16 %v1968, %v1967
  %v1972 = vsel %vm534, %v1969, 0
  %v1975 = vsel %vm534, %v1970, 0
  %1977 = vmatprep.subr.bf16.mxu0 0
  %1978 = vmatpush1.bf16.msra.mxu0 %v1959
  %1979 = vmatprep.subr.bf16.mxu0 0
  %1980 = vmatpush1.bf16.msra.mxu0 %v1960
  %1981 = vmatprep.subr.bf16.mxu0 0
  %1982 = vmatpush1.bf16.msra.mxu0 0
  %1983 = vmatprep.subr.bf16.mxu0 0
  %1984 = vmatpush1.bf16.msra.mxu0 0
  %1985 = vmatprep.subr.bf16.mxu0 0
  %1986 = vmatpush1.bf16.msra.mxu0 0
  %1987 = vmatprep.subr.bf16.mxu0 0
  %1988 = vmatpush1.bf16.msra.mxu0 0
  %1989 = vmatprep.subr.bf16.mxu0 0
  %1990 = vmatpush1.bf16.msra.mxu0 0
  %1991 = vmatprep.subr.bf16.mxu0 0
  %1992 = vmatpush1.bf16.msra.mxu0 0
  %1993 = vmatprep.subr.bf16.mxu0 0
  %1994 = vmatpush1.bf16.msra.mxu0 0
  %1995 = vmatprep.subr.bf16.mxu0 0
  %1996 = vmatpush1.bf16.msra.mxu0 0
  %1997 = vmatprep.subr.bf16.mxu0 0
  %1998 = vmatpush1.bf16.msra.mxu0 0
  %1999 = vmatprep.subr.bf16.mxu0 0
  %2000 = vmatpush1.bf16.msra.mxu0 0
  %2001 = vmatprep.subr.bf16.mxu0 0
  %2002 = vmatpush1.bf16.msra.mxu0 0
  %2003 = vmatprep.subr.bf16.mxu0 0
  %2004 = vmatpush1.bf16.msra.mxu0 0
  %2005 = vmatprep.subr.bf16.mxu0 0
  %2006 = vmatpush1.bf16.msra.mxu0 0
  %2007 = vmatprep.subr.bf16.mxu0 0
  %2008 = vmatpush1.bf16.msra.mxu0 0
  %2009 = vmatprep.mubr.bf16.mxu0 0
  %2010 = vmatmul.mubr.bf16.gmra.mrb[0].mxu0 %v1972
  %v2011 = vpop.f32.mrb[0].mxu0
  %v2012 = vadd.f32 0.0, %v2011
  %v2013 = vpop.f32.mrb[0].mxu0
  %v2014 = vpop.f32.mrb[0].mxu0
  %v2015 = vadd.f32 0.0, %v2014
  %v2016 = vpop.f32.mrb[0].mxu0
  %2017 = vmatprep.mubr.bf16.mxu0 0
  %2018 = vmatmul.mubr.bf16.gmra.mrb[0].mxu0 %v1975
  %v2019 = vpop.f32.mrb[0].mxu0
  %v2020 = vadd.f32 0.0, %v2019
  %v2021 = vpop.f32.mrb[0].mxu0
  %v2022 = vpop.f32.mrb[0].mxu0
  %v2023 = vadd.f32 0.0, %v2022
  %v2024 = vpop.f32.mrb[0].mxu0
  %2025 = vdwg.mxu0
  %v2026 = vadd.f32 %v1938, %v2012
  %v2027 = vadd.f32 %v1939, %v2015
  %v2028 = vadd.f32 %v1940, %v2020
  %v2029 = vadd.f32 %v1941, %v2023
  %2030 = vrot.lane.b32.xlu0 %v1430, 120
  %v2031 = vpop.permute.xlu0 %2030
  %2032 = vrot.lane.b32.xlu0 %v1431, 120
  %v2033 = vpop.permute.xlu0 %2032
  %2034 = vrot.lane.b32.xlu0 %v1432, 120
  %v2035 = vpop.permute.xlu0 %2034
  %2036 = vrot.lane.b32.xlu0 %v1433, 120
  %v2037 = vpop.permute.xlu0 %2036
  %v2038 = vmul.f32 %v2031, %v1119
  %v2039 = vmul.f32 %v2033, %v1119
  %v2040 = vmul.f32 %v2035, %v1119
  %v2041 = vmul.f32 %v2037, %v1119
  %s2042 = scalar_lea.vmem %s4, 256
  %v2043 = vld [vmem:[%s2042] sm:$0xf]
  %v2044 = vld [vmem:[%s2042 + $0x4] sm:$0xf]
  %v2045 = vld [vmem:[%s2042 + $0x8] sm:$0xf]
  %v2046 = vld [vmem:[%s2042 + $0xc] sm:$0xf]
  %v2047 = vpack.c.bf16 %v2039, %v2038
  %v2048 = vpack.c.bf16 %v2041, %v2040
  %v2053 = vunpack.c.l.b16 %v2043
  %v2054 = vunpack.c.l.b16 %v2044
  %v2055 = vunpack.c.l.b16 %v2045
  %v2056 = vunpack.c.l.b16 %v2046
  %v2057 = vpack.c.b16 %v2054, %v2053
  %v2058 = vpack.c.b16 %v2056, %v2055
  %v2060 = vsel %vm534, %v2057, 0
  %v2063 = vsel %vm534, %v2058, 0
  %2065 = vmatprep.subr.bf16.mxu0 0
  %2066 = vmatpush1.bf16.msra.mxu0 %v2047
  %2067 = vmatprep.subr.bf16.mxu0 0
  %2068 = vmatpush1.bf16.msra.mxu0 %v2048
  %2069 = vmatprep.subr.bf16.mxu0 0
  %2070 = vmatpush1.bf16.msra.mxu0 0
  %2071 = vmatprep.subr.bf16.mxu0 0
  %2072 = vmatpush1.bf16.msra.mxu0 0
  %2073 = vmatprep.subr.bf16.mxu0 0
  %2074 = vmatpush1.bf16.msra.mxu0 0
  %2075 = vmatprep.subr.bf16.mxu0 0
  %2076 = vmatpush1.bf16.msra.mxu0 0
  %2077 = vmatprep.subr.bf16.mxu0 0
  %2078 = vmatpush1.bf16.msra.mxu0 0
  %2079 = vmatprep.subr.bf16.mxu0 0
  %2080 = vmatpush1.bf16.msra.mxu0 0
  %2081 = vmatprep.subr.bf16.mxu0 0
  %2082 = vmatpush1.bf16.msra.mxu0 0
  %2083 = vmatprep.subr.bf16.mxu0 0
  %2084 = vmatpush1.bf16.msra.mxu0 0
  %2085 = vmatprep.subr.bf16.mxu0 0
  %2086 = vmatpush1.bf16.msra.mxu0 0
  %2087 = vmatprep.subr.bf16.mxu0 0
  %2088 = vmatpush1.bf16.msra.mxu0 0
  %2089 = vmatprep.subr.bf16.mxu0 0
  %2090 = vmatpush1.bf16.msra.mxu0 0
  %2091 = vmatprep.subr.bf16.mxu0 0
  %2092 = vmatpush1.bf16.msra.mxu0 0
  %2093 = vmatprep.subr.bf16.mxu0 0
  %2094 = vmatpush1.bf16.msra.mxu0 0
  %2095 = vmatprep.subr.bf16.mxu0 0
  %2096 = vmatpush1.bf16.msra.mxu0 0
  %2097 = vmatprep.mubr.bf16.mxu0 0
  %2098 = vmatmul.mubr.bf16.gmra.mrb[0].mxu0 %v2060
  %v2099 = vpop.f32.mrb[0].mxu0
  %v2100 = vadd.f32 0.0, %v2099
  %v2101 = vpop.f32.mrb[0].mxu0
  %v2102 = vpop.f32.mrb[0].mxu0
  %v2103 = vadd.f32 0.0, %v2102
  %v2104 = vpop.f32.mrb[0].mxu0
  %2105 = vmatprep.mubr.bf16.mxu0 0
  %2106 = vmatmul.mubr.bf16.gmra.mrb[0].mxu0 %v2063
  %v2107 = vpop.f32.mrb[0].mxu0
  %v2108 = vadd.f32 0.0, %v2107
  %v2109 = vpop.f32.mrb[0].mxu0
  %v2110 = vpop.f32.mrb[0].mxu0
  %v2111 = vadd.f32 0.0, %v2110
  %v2112 = vpop.f32.mrb[0].mxu0
  %2113 = vdwg.mxu0
  %v2114 = vadd.f32 %v2026, %v2100
  %v2115 = vadd.f32 %v2027, %v2103
  %v2116 = vadd.f32 %v2028, %v2108
  %v2117 = vadd.f32 %v2029, %v2111
  %2118 = vrot.lane.b32.xlu0 %v1430, 119
  %v2119 = vpop.permute.xlu0 %2118
  %2120 = vrot.lane.b32.xlu0 %v1431, 119
  %v2121 = vpop.permute.xlu0 %2120
  %2122 = vrot.lane.b32.xlu0 %v1432, 119
  %v2123 = vpop.permute.xlu0 %2122
  %2124 = vrot.lane.b32.xlu0 %v1433, 119
  %v2125 = vpop.permute.xlu0 %2124
  %v2126 = vmul.f32 %v2119, %v1213
  %v2127 = vmul.f32 %v2121, %v1213
  %v2128 = vmul.f32 %v2123, %v1213
  %v2129 = vmul.f32 %v2125, %v1213
  %s2130 = scalar_lea.vmem %s4, 272
  %v2131 = vld [vmem:[%s2130] sm:$0xf]
  %v2132 = vld [vmem:[%s2130 + $0x4] sm:$0xf]
  %v2133 = vld [vmem:[%s2130 + $0x8] sm:$0xf]
  %v2134 = vld [vmem:[%s2130 + $0xc] sm:$0xf]
  %v2135 = vpack.c.bf16 %v2127, %v2126
  %v2136 = vpack.c.bf16 %v2129, %v2128
  %v2141 = vunpack.c.l.b16 %v2131
  %v2142 = vunpack.c.l.b16 %v2132
  %v2143 = vunpack.c.l.b16 %v2133
  %v2144 = vunpack.c.l.b16 %v2134
  %v2145 = vpack.c.b16 %v2142, %v2141
  %v2146 = vpack.c.b16 %v2144, %v2143
  %v2148 = vsel %vm534, %v2145, 0
  %v2151 = vsel %vm534, %v2146, 0
  %2153 = vmatprep.subr.bf16.mxu0 0
  %2154 = vmatpush1.bf16.msra.mxu0 %v2135
  %2155 = vmatprep.subr.bf16.mxu0 0
  %2156 = vmatpush1.bf16.msra.mxu0 %v2136
  %2157 = vmatprep.subr.bf16.mxu0 0
  %2158 = vmatpush1.bf16.msra.mxu0 0
  %2159 = vmatprep.subr.bf16.mxu0 0
  %2160 = vmatpush1.bf16.msra.mxu0 0
  %2161 = vmatprep.subr.bf16.mxu0 0
  %2162 = vmatpush1.bf16.msra.mxu0 0
  %2163 = vmatprep.subr.bf16.mxu0 0
  %2164 = vmatpush1.bf16.msra.mxu0 0
  %2165 = vmatprep.subr.bf16.mxu0 0
  %2166 = vmatpush1.bf16.msra.mxu0 0
  %2167 = vmatprep.subr.bf16.mxu0 0
  %2168 = vmatpush1.bf16.msra.mxu0 0
  %2169 = vmatprep.subr.bf16.mxu0 0
  %2170 = vmatpush1.bf16.msra.mxu0 0
  %2171 = vmatprep.subr.bf16.mxu0 0
  %2172 = vmatpush1.bf16.msra.mxu0 0
  %2173 = vmatprep.subr.bf16.mxu0 0
  %2174 = vmatpush1.bf16.msra.mxu0 0
  %2175 = vmatprep.subr.bf16.mxu0 0
  %2176 = vmatpush1.bf16.msra.mxu0 0
  %2177 = vmatprep.subr.bf16.mxu0 0
  %2178 = vmatpush1.bf16.msra.mxu0 0
  %2179 = vmatprep.subr.bf16.mxu0 0
  %2180 = vmatpush1.bf16.msra.mxu0 0
  %2181 = vmatprep.subr.bf16.mxu0 0
  %2182 = vmatpush1.bf16.msra.mxu0 0
  %2183 = vmatprep.subr.bf16.mxu0 0
  %2184 = vmatpush1.bf16.msra.mxu0 0
  %2185 = vmatprep.mubr.bf16.mxu0 0
  %2186 = vmatmul.mubr.bf16.gmra.mrb[0].mxu0 %v2148
  %v2187 = vpop.f32.mrb[0].mxu0
  %v2188 = vadd.f32 0.0, %v2187
  %v2189 = vpop.f32.mrb[0].mxu0
  %v2190 = vpop.f32.mrb[0].mxu0
  %v2191 = vadd.f32 0.0, %v2190
  %v2192 = vpop.f32.mrb[0].mxu0
  %2193 = vmatprep.mubr.bf16.mxu0 0
  %2194 = vmatmul.mubr.bf16.gmra.mrb[0].mxu0 %v2151
  %v2195 = vpop.f32.mrb[0].mxu0
  %v2196 = vadd.f32 0.0, %v2195
  %v2197 = vpop.f32.mrb[0].mxu0
  %v2198 = vpop.f32.mrb[0].mxu0
  %v2199 = vadd.f32 0.0, %v2198
  %v2200 = vpop.f32.mrb[0].mxu0
  %2201 = vdwg.mxu0
  %v2202 = vadd.f32 %v2114, %v2188
  %v2203 = vadd.f32 %v2115, %v2191
  %v2204 = vadd.f32 %v2116, %v2196
  %v2205 = vadd.f32 %v2117, %v2199
  %s2206 = scalar_lea.vmem %s5, 32
  %v2207 = vld [vmem:[%s2206] sm:$0xff]
  %v2208 = vld [vmem:[%s2206 + $0x8] sm:$0xff]
  %v2209 = vld [vmem:[%s2206 + $0x10] sm:$0xff]
  %v2210 = vld [vmem:[%s2206 + $0x18] sm:$0xff]
  %2212 = vset.pattern.permute.xlu0 0
  %2213 = vperm.xlu0 %2212, %v2207
  %v2214 = vpop.permute.xlu0 %2213
  %2217 = vset.pattern.permute.xlu0 0
  %2218 = vperm.xlu0 %2217, %v2208
  %v2219 = vpop.permute.xlu0 %2218
  %2222 = vset.pattern.permute.xlu0 0
  %2223 = vperm.xlu0 %2222, %v2209
  %v2224 = vpop.permute.xlu0 %2223
  %2227 = vset.pattern.permute.xlu0 0
  %2228 = vperm.xlu0 %2227, %v2210
  %v2229 = vpop.permute.xlu0 %2228
  %v2231 = vadd.f32 %v2202, %v2214
  %v2232 = vadd.f32 %v2203, %v2219
  %v2233 = vadd.f32 %v2204, %v2224
  %v2234 = vadd.f32 %v2205, %v2229
  %v2235 = vmax.f32 %v2231, 0.0
  %v2236 = vmax.f32 %v2232, 0.0
  %v2237 = vmax.f32 %v2233, 0.0
  %v2238 = vmax.f32 %v2234, 0.0
  %v2239 = vpack.c.bf16 %v2236, %v2235
  %v2240 = vpack.c.bf16 %v2238, %v2237
  %s2241 = scalar_lea.vmem %s6, 16
  %v2242 = vld [vmem:[%s2241] sm:$0xf]
  %v2243 = vld [vmem:[%s2241 + $0x4] sm:$0xf]
  %v2244 = vld [vmem:[%s2241 + $0x8] sm:$0xf]
  %v2245 = vld [vmem:[%s2241 + $0xc] sm:$0xf]
  %v2250 = vunpack.c.l.b16 %v2242
  %v2251 = vunpack.c.l.b16 %v2243
  %v2252 = vunpack.c.l.b16 %v2244
  %v2253 = vunpack.c.l.b16 %v2245
  %v2254 = vpack.c.b16 %v2251, %v2250
  %v2255 = vpack.c.b16 %v2253, %v2252
  %v2257 = vsel %vm534, %v2254, 0
  %v2260 = vsel %vm534, %v2255, 0
  %2262 = vmatprep.subr.bf16.mxu0 0
  %2263 = vmatpush1.bf16.msra.mxu0 %v2239
  %2264 = vmatprep.subr.bf16.mxu0 0
  %2265 = vmatpush1.bf16.msra.mxu0 %v2240
  %2266 = vmatprep.subr.bf16.mxu0 0
  %2267 = vmatpush1.bf16.msra.mxu0 0
  %2268 = vmatprep.subr.bf16.mxu0 0
  %2269 = vmatpush1.bf16.msra.mxu0 0
  %2270 = vmatprep.subr.bf16.mxu0 0
  %2271 = vmatpush1.bf16.msra.mxu0 0
  %2272 = vmatprep.subr.bf16.mxu0 0
  %2273 = vmatpush1.bf16.msra.mxu0 0
  %2274 = vmatprep.subr.bf16.mxu0 0
  %2275 = vmatpush1.bf16.msra.mxu0 0
  %2276 = vmatprep.subr.bf16.mxu0 0
  %2277 = vmatpush1.bf16.msra.mxu0 0
  %2278 = vmatprep.subr.bf16.mxu0 0
  %2279 = vmatpush1.bf16.msra.mxu0 0
  %2280 = vmatprep.subr.bf16.mxu0 0
  %2281 = vmatpush1.bf16.msra.mxu0 0
  %2282 = vmatprep.subr.bf16.mxu0 0
  %2283 = vmatpush1.bf16.msra.mxu0 0
  %2284 = vmatprep.subr.bf16.mxu0 0
  %2285 = vmatpush1.bf16.msra.mxu0 0
  %2286 = vmatprep.subr.bf16.mxu0 0
  %2287 = vmatpush1.bf16.msra.mxu0 0
  %2288 = vmatprep.subr.bf16.mxu0 0
  %2289 = vmatpush1.bf16.msra.mxu0 0
  %2290 = vmatprep.subr.bf16.mxu0 0
  %2291 = vmatpush1.bf16.msra.mxu0 0
  %2292 = vmatprep.subr.bf16.mxu0 0
  %2293 = vmatpush1.bf16.msra.mxu0 0
  %2294 = vmatprep.mubr.bf16.mxu0 0
  %2295 = vmatmul.mubr.bf16.gmra.mrb[0].mxu0 %v2257
  %v2296 = vpop.f32.mrb[0].mxu0
  %v2297 = vadd.f32 0.0, %v2296
  %v2298 = vpop.f32.mrb[0].mxu0
  %v2299 = vpop.f32.mrb[0].mxu0
  %v2300 = vadd.f32 0.0, %v2299
  %v2301 = vpop.f32.mrb[0].mxu0
  %2302 = vmatprep.mubr.bf16.mxu0 0
  %2303 = vmatmul.mubr.bf16.gmra.mrb[0].mxu0 %v2260
  %v2304 = vpop.f32.mrb[0].mxu0
  %v2305 = vadd.f32 0.0, %v2304
  %v2306 = vpop.f32.mrb[0].mxu0
  %v2307 = vpop.f32.mrb[0].mxu0
  %v2308 = vadd.f32 0.0, %v2307
  %v2309 = vpop.f32.mrb[0].mxu0
  %2310 = vdwg.mxu0
  %v2311 = vadd.f32 %v1426, %v2297
  %v2312 = vadd.f32 %v1427, %v2300
  %v2313 = vadd.f32 %v1428, %v2305
  %v2314 = vadd.f32 %v1429, %v2308
  %s2315 = scalar_lea.vmem %s7, 32
  %v2316 = vld [vmem:[%s2315] sm:$0xff]
  %v2317 = vld [vmem:[%s2315 + $0x8] sm:$0xff]
  %v2318 = vld [vmem:[%s2315 + $0x10] sm:$0xff]
  %v2319 = vld [vmem:[%s2315 + $0x18] sm:$0xff]
  %2321 = vset.pattern.permute.xlu0 0
  %2322 = vperm.xlu0 %2321, %v2316
  %v2323 = vpop.permute.xlu0 %2322
  %2326 = vset.pattern.permute.xlu0 0
  %2327 = vperm.xlu0 %2326, %v2317
  %v2328 = vpop.permute.xlu0 %2327
  %2331 = vset.pattern.permute.xlu0 0
  %2332 = vperm.xlu0 %2331, %v2318
  %v2333 = vpop.permute.xlu0 %2332
  %2336 = vset.pattern.permute.xlu0 0
  %2337 = vperm.xlu0 %2336, %v2319
  %v2338 = vpop.permute.xlu0 %2337
  %v2340 = vadd.f32 %v2311, %v2323
  %v2341 = vadd.f32 %v2312, %v2328
  %v2342 = vadd.f32 %v2313, %v2333
  %v2343 = vadd.f32 %v2314, %v2338
  %2344 = vst [vmem:[%s8] sm:$0xff] %v2340
  %2345 = vst [vmem:[%s8 + $0x8] sm:$0xff] %v2341
  %2346 = vst [vmem:[%s8 + $0x10] sm:$0xff] %v2342
  %2347 = vst [vmem:[%s8 + $0x18] sm:$0xff] %v2343
  // Predicated region
  $region34: #{encoder_forward.3} parent=0 // pred_check
    _
  $region35: #{encoder_forward.3} parent=0 // pred_check_branch
    %2349 = sbr.rel (0) target = $region37
  $region36: #{encoder_forward.3} parent=0 // pred_region
    _
  $region37: #{encoder_forward.3} parent=0 // pred_fallthru
    _
  // Predicated region
  $region38: #{encoder_forward.3} parent=0 // pred_check
    _
  $region39: #{encoder_forward.3} parent=0 // pred_check_branch
    %2351 = sbr.rel (0) target = $region41
  $region40: #{encoder_forward.3} parent=0 // pred_region
    _
  $region41: #{encoder_forward.3} parent=0 // pred_fallthru
    _

</llo_original>
